<compile_context>
chip_gen: v7x
topology: tpu7x:2x2x1
jax: 0.10.0
libtpu: 0.0.40
codegen_flags: <defaults>
</compile_context>

<pallas_src>
import math
import functools

import jax
import jax.numpy as jnp
import numpy as np
from jax.experimental import pallas as pl
from jax.experimental.pallas import tpu as pltpu


# ----------------------------- kernel helpers ---------------------------------


def _layer_norm(x, w, b, eps=1e-5):
    mu = jnp.mean(x, axis=-1, keepdims=True)
    var = jnp.mean(jnp.square(x - mu), axis=-1, keepdims=True)
    return (x - mu) * jax.lax.rsqrt(var + eps) * w + b


def _mha(xq, xk, xv, wqkv, bqkv, wo, bo, *, nhead, mxu_dtype):
    """nn.MultiheadAttention for one batch element (dropout = identity).

    xq: (n_q, d); xk/xv: (n_kv, d)
    wqkv: (d, 3d) lane-packed [Wq | Wk | Wv], 1/sqrt(hd) folded into the Wq columns/bias
    bqkv: (1, 3d)
    wo:   (d, d)   bo: (1, d)
    returns: (n_q, d) float32
    """
    n_q, d = xq.shape
    hd = d // nhead
    f32 = jnp.float32

    w = wqkv.astype(mxu_dtype)
    # Lane-dense, full-depth projections: (n, d) @ (d, d) each (MXU fully fed in K and N).
    q = jnp.dot(xq.astype(mxu_dtype), w[:, 0:d],
                preferred_element_type=f32) + bqkv[:, 0:d]
    k = jnp.dot(xk.astype(mxu_dtype), w[:, d:2 * d],
                preferred_element_type=f32) + bqkv[:, d:2 * d]
    v = jnp.dot(xv.astype(mxu_dtype), w[:, 2 * d:3 * d],
                preferred_element_type=f32) + bqkv[:, 2 * d:3 * d]

    # Per-head scaled-dot-product attention (static unroll; score/context matmuls are
    # inherently hd-narrow in any multi-head formulation).
    ctx_heads = []
    for h in range(nhead):
        sl = slice(h * hd, (h + 1) * hd)
        q_h = q[:, sl].astype(mxu_dtype)
        k_h = k[:, sl].astype(mxu_dtype)
        v_h = v[:, sl].astype(mxu_dtype)
        s = jax.lax.dot_general(q_h, k_h, (((1,), (1,)), ((), ())),
                                preferred_element_type=f32)          # (n_q, n_kv)
        s = s - jnp.max(s, axis=-1, keepdims=True)
        p = jnp.exp(s)
        p = p * pl.reciprocal(jnp.sum(p, axis=-1, keepdims=True), approx=True)
        ctx_heads.append(jnp.dot(p.astype(mxu_dtype), v_h,
                                 preferred_element_type=f32))        # (n_q, hd)

    # Merge heads to a lane-packed (n_q, d) and do ONE full-depth output projection.
    ctx = jnp.concatenate(ctx_heads, axis=-1)
    return jnp.dot(ctx.astype(mxu_dtype), wo.astype(mxu_dtype),
                   preferred_element_type=f32) + bo


def _decoder_layer_kernel(
    tgt_ref, mem_ref, qpos_ref, pos_ref,
    sa_wqkv_ref, sa_wo_ref, ca_wqkv_ref, ca_wo_ref, qkv_b_ref,
    w1_ref, b1_ref, w2_ref, vec_ref,
    out_ref,
    *, nhead, mxu_dtype,
):
    f32 = jnp.float32
    tgt = tgt_ref[0].astype(f32)     # (T, d)
    mem = mem_ref[0].astype(f32)     # (S, d)
    qpos = qpos_ref[0].astype(f32)   # (T, d)
    pos = pos_ref[0].astype(f32)     # (S, d)

    vec = vec_ref[...].astype(f32)   # (9, d) slab: biases + LayerNorm params
    sa_bo, ca_bo, l2_b = vec[0:1], vec[1:2], vec[2:3]
    n1_w, n1_b = vec[3:4], vec[4:5]
    n2_w, n2_b = vec[5:6], vec[6:7]
    n3_w, n3_b = vec[7:8], vec[8:9]

    sa_bqkv = qkv_b_ref[0:1].astype(f32)   # (1, 3d)
    ca_bqkv = qkv_b_ref[1:2].astype(f32)

    # ---- self attention: q = k = tgt + query_pos, v = tgt ----
    q_in = tgt + qpos
    t2 = _mha(q_in, q_in, tgt, sa_wqkv_ref[...], sa_bqkv, sa_wo_ref[...], sa_bo,
              nhead=nhead, mxu_dtype=mxu_dtype)
    tgt = _layer_norm(tgt + t2, n1_w, n1_b)

    # ---- cross attention: q = tgt + query_pos, k = memory + pos, v = memory ----
    t2 = _mha(tgt + qpos, mem + pos, mem, ca_wqkv_ref[...], ca_bqkv, ca_wo_ref[...], ca_bo,
              nhead=nhead, mxu_dtype=mxu_dtype)
    tgt = _layer_norm(tgt + t2, n2_w, n2_b)

    # ---- feed forward (ReLU, dropout = identity); weights pre-transposed ----
    h = jnp.dot(tgt.astype(mxu_dtype), w1_ref[...].astype(mxu_dtype),
                preferred_element_type=f32) + b1_ref[...]
    h = jnp.maximum(h, 0.0)
    t2 = jnp.dot(h.astype(mxu_dtype), w2_ref[...].astype(mxu_dtype),
                 preferred_element_type=f32) + l2_b
    tgt = _layer_norm(tgt + t2, n3_w, n3_b)

    out_ref[0] = tgt.astype(out_ref.dtype)


# ----------------------------- wrapper ---------------------------------------


def _prep_mha_params(in_w, in_b, out_w, out_b, *, d, nhead):
    """Pack nn.MultiheadAttention weights into lane-dense matmul form (pure XLA)."""
    hd = d // nhead
    scale = 1.0 / math.sqrt(hd)
    wq = jnp.transpose(in_w[0:d]) * scale              # (d_in, d), scale folded into Q
    wk = jnp.transpose(in_w[d:2 * d])
    wv = jnp.transpose(in_w[2 * d:3 * d])
    wqkv = jnp.concatenate([wq, wk, wv], axis=1)       # (d, 3d)
    bqkv = jnp.concatenate([in_b[:, 0:d] * scale, in_b[:, d:2 * d], in_b[:, 2 * d:3 * d]],
                           axis=1)                     # (1, 3d)
    wo = jnp.transpose(out_w)                          # (d, d)
    bo = jnp.reshape(out_b, (1, d))
    return wqkv, bqkv, wo, bo


def transformer_decoder_layer(tgt, memory, params, *, nhead, pos=None, query_pos=None,
                              mxu_dtype=jnp.float32):
    """tgt: (T, B, d), memory: (S, B, d)  -- PyTorch MultiheadAttention layout."""
    T, B, d = tgt.shape
    S = memory.shape[0]
    assert d % nhead == 0
    if pos is None:
        pos = jnp.zeros_like(memory)
    if query_pos is None:
        query_pos = jnp.zeros_like(tgt)

    # (L, B, d) -> (B, L, d): batch-major so the grid axis is the leading dim.
    tgt_b = jnp.transpose(tgt, (1, 0, 2))
    mem_b = jnp.transpose(memory, (1, 0, 2))
    qpos_b = jnp.transpose(query_pos, (1, 0, 2))
    pos_b = jnp.transpose(pos, (1, 0, 2))

    sa_wqkv, sa_bqkv, sa_wo, sa_bo = _prep_mha_params(
        params["sa_in_w"], params["sa_in_b"], params["sa_out_w"], params["sa_out_b"],
        d=d, nhead=nhead)
    ca_wqkv, ca_bqkv, ca_wo, ca_bo = _prep_mha_params(
        params["ca_in_w"], params["ca_in_b"], params["ca_out_w"], params["ca_out_b"],
        d=d, nhead=nhead)

    # Pack the many small parameter tensors into a few slabs (fewer DMAs, less pad waste).
    qkv_b = jnp.concatenate([sa_bqkv, ca_bqkv], axis=0)                 # (2, 3d)
    vec = jnp.concatenate([sa_bo, ca_bo, params["l2_b"],
                           params["n1_w"], params["n1_b"],
                           params["n2_w"], params["n2_b"],
                           params["n3_w"], params["n3_b"]], axis=0)     # (9, d)
    w1 = jnp.transpose(params["l1_w"])    # (d, dim_ff)
    b1 = params["l1_b"]                   # (1, dim_ff)
    w2 = jnp.transpose(params["l2_w"])    # (dim_ff, d)

    inputs = (tgt_b, mem_b, qpos_b, pos_b,
              sa_wqkv, sa_wo, ca_wqkv, ca_wo, qkv_b, w1, b1, w2, vec)

    def act_spec(L):
        return pl.BlockSpec((1, L, d), lambda b: (b, 0, 0))

    in_specs = [act_spec(T), act_spec(S), act_spec(T), act_spec(S)]
    # Weights / bias slabs: full-array blocks, same block every grid step -> VMEM-resident.
    in_specs += [pl.BlockSpec(a.shape, lambda b: (0, 0)) for a in inputs[4:]]

    kernel = functools.partial(_decoder_layer_kernel, nhead=nhead, mxu_dtype=mxu_dtype)

    out_batched = pl.pallas_call(
        kernel,
        out_shape=jax.ShapeDtypeStruct((B, T, d), tgt.dtype),
        grid=(B,),
        in_specs=in_specs,
        out_specs=pl.BlockSpec((1, T, d), lambda b: (b, 0, 0)),
        compiler_params=pltpu.CompilerParams(
            dimension_semantics=("parallel",),      # megacore-shard the batch axis
            vmem_limit_bytes=32 * 1024 * 1024),
    )(*inputs)

    return jnp.transpose(out_batched, (1, 0, 2))    # back to (T, B, d)


# ----------------------------- reference (pure JAX) --------------------------


def _reference(tgt, memory, params, *, nhead, pos, query_pos):
    d = tgt.shape[-1]

    def ln(x, w, b):
        mu = x.mean(-1, keepdims=True)
        var = ((x - mu) ** 2).mean(-1, keepdims=True)
        return (x - mu) / jnp.sqrt(var + 1e-5) * w + b

    def mha(xq, xk, xv, w, b, ow, ob):
        hd = d // nhead
        q = xq @ w[0:d].T + b[:, 0:d]
        k = xk @ w[d:2 * d].T + b[:, d:2 * d]
        v = xv @ w[2 * d:3 * d].T + b[:, 2 * d:3 * d]
        outs = []
        for h in range(nhead):
            sl = slice(h * hd, (h + 1) * hd)
            s = (q[:, sl] @ k[:, sl].T) / math.sqrt(hd)
            p = jax.nn.softmax(s, axis=-1)
            outs.append(p @ v[:, sl])
        return jnp.concatenate(outs, -1) @ ow.T + ob

    def per_batch(t, m, qp, ps):
        t2 = mha(t + qp, t + qp, t, params["sa_in_w"], params["sa_in_b"],
                 params["sa_out_w"], params["sa_out_b"])
        t = ln(t + t2, params["n1_w"], params["n1_b"])
        t2 = mha(t + qp, m + ps, m, params["ca_in_w"], params["ca_in_b"],
                 params["ca_out_w"], params["ca_out_b"])
        t = ln(t + t2, params["n2_w"], params["n2_b"])
        h = jnp.maximum(t @ params["l1_w"].T + params["l1_b"], 0.0)
        t2 = h @ params["l2_w"].T + params["l2_b"]
        return ln(t + t2, params["n3_w"], params["n3_b"])

    f = jax.vmap(per_batch, in_axes=(1, 1, 1, 1), out_axes=1)
    return f(tgt, memory, query_pos, pos)


# ----------------------------- main -------------------------------------------


if __name__ == "__main__":
    d_model, nhead, dim_ff = 32, 4, 64
    T, S, B = 8, 16, 2

    key = jax.random.PRNGKey(0)
    ks = jax.random.split(key, 16)

    def nrm(k, shape, scale=0.05):
        return jax.random.normal(k, shape, dtype=jnp.float32) * scale

    params = {
        # self-attn (packed in_proj as in nn.MultiheadAttention)
        "sa_in_w": nrm(ks[0], (3 * d_model, d_model)),
        "sa_in_b": nrm(ks[1], (1, 3 * d_model), 0.01),
        "sa_out_w": nrm(ks[2], (d_model, d_model)),
        "sa_out_b": nrm(ks[3], (1, d_model), 0.01),
        # cross-attn
        "ca_in_w": nrm(ks[4], (3 * d_model, d_model)),
        "ca_in_b": nrm(ks[5], (1, 3 * d_model), 0.01),
        "ca_out_w": nrm(ks[6], (d_model, d_model)),
        "ca_out_b": nrm(ks[7], (1, d_model), 0.01),
        # FFN
        "l1_w": nrm(ks[8], (dim_ff, d_model)),
        "l1_b": nrm(ks[9], (1, dim_ff), 0.01),
        "l2_w": nrm(ks[10], (d_model, dim_ff)),
        "l2_b": nrm(ks[11], (1, d_model), 0.01),
        # LayerNorms (default init: weight=1, bias=0)
        "n1_w": jnp.ones((1, d_model), jnp.float32),
        "n1_b": jnp.zeros((1, d_model), jnp.float32),
        "n2_w": jnp.ones((1, d_model), jnp.float32),
        "n2_b": jnp.zeros((1, d_model), jnp.float32),
        "n3_w": jnp.ones((1, d_model), jnp.float32),
        "n3_b": jnp.zeros((1, d_model), jnp.float32),
    }

    tgt = jax.random.normal(ks[12], (T, B, d_model), dtype=jnp.float32)
    memory = jax.random.normal(ks[13], (S, B, d_model), dtype=jnp.float32)
    query_pos = jax.random.normal(ks[14], (T, B, d_model), dtype=jnp.float32)
    pos = jax.random.normal(ks[15], (S, B, d_model), dtype=jnp.float32)

    ref = _reference(tgt, memory, params, nhead=nhead, pos=pos, query_pos=query_pos)

    # --- f32 MXU path: tight tolerance (only approximation is the EUP reciprocal) ---
    layer_f32 = jax.jit(functools.partial(transformer_decoder_layer, nhead=nhead,
                                          mxu_dtype=jnp.float32))
    out_f32 = jax.block_until_ready(layer_f32(tgt, memory, params, pos=pos, query_pos=query_pos))
    np.testing.assert_allclose(np.asarray(out_f32), np.asarray(ref), rtol=1e-3, atol=1e-3)

    # --- bf16 MXU-operand path (recommended for v6e/v7x): looser tolerance ---
    layer_bf16 = jax.jit(functools.partial(transformer_decoder_layer, nhead=nhead,
                                           mxu_dtype=jnp.bfloat16))
    out_bf16 = jax.block_until_ready(layer_bf16(tgt, memory, params, pos=pos, query_pos=query_pos))
    np.testing.assert_allclose(np.asarray(out_bf16), np.asarray(ref), rtol=3e-2, atol=3e-2)

    print("KERNEL_OK")
</pallas_src>

<mosaic_0001>
module attributes {stable_mosaic.version = 11 : i64} {
  func.func @_decoder_layer_kernel(%arg0: i32, %arg1: memref<1x8x32xf32, #tpu.memory_space<vmem>>, %arg2: memref<1x16x32xf32, #tpu.memory_space<vmem>>, %arg3: memref<1x8x32xf32, #tpu.memory_space<vmem>>, %arg4: memref<1x16x32xf32, #tpu.memory_space<vmem>>, %arg5: memref<32x96xf32, #tpu.memory_space<vmem>>, %arg6: memref<32x32xf32, #tpu.memory_space<vmem>>, %arg7: memref<32x96xf32, #tpu.memory_space<vmem>>, %arg8: memref<32x32xf32, #tpu.memory_space<vmem>>, %arg9: memref<2x96xf32, #tpu.memory_space<vmem>>, %arg10: memref<32x64xf32, #tpu.memory_space<vmem>>, %arg11: memref<1x64xf32, #tpu.memory_space<vmem>>, %arg12: memref<64x32xf32, #tpu.memory_space<vmem>>, %arg13: memref<9x32xf32, #tpu.memory_space<vmem>>, %arg14: memref<1x8x32xf32, #tpu.memory_space<vmem>>) attributes {dimension_semantics = [#tpu.dimension_semantics<parallel>], iteration_bounds = array<i64: 2>, scalar_prefetch = 0 : i64, scratch_operands = 0 : i64, tpu.core_type = #tpu.core_type<tc>, window_params = [{transform_indices = @transform_0, window_bounds = array<i64: 1, 8, 32>}, {transform_indices = @transform_1, window_bounds = array<i64: 1, 16, 32>}, {transform_indices = @transform_2, window_bounds = array<i64: 1, 8, 32>}, {transform_indices = @transform_3, window_bounds = array<i64: 1, 16, 32>}, {pipeline_mode = #tpu.pipeline_mode<synchronous>, transform_indices = @transform_4, window_bounds = array<i64: 32, 96>}, {pipeline_mode = #tpu.pipeline_mode<synchronous>, transform_indices = @transform_5, window_bounds = array<i64: 32, 32>}, {pipeline_mode = #tpu.pipeline_mode<synchronous>, transform_indices = @transform_6, window_bounds = array<i64: 32, 96>}, {pipeline_mode = #tpu.pipeline_mode<synchronous>, transform_indices = @transform_7, window_bounds = array<i64: 32, 32>}, {pipeline_mode = #tpu.pipeline_mode<synchronous>, transform_indices = @transform_8, window_bounds = array<i64: 2, 96>}, {pipeline_mode = #tpu.pipeline_mode<synchronous>, transform_indices = @transform_9, window_bounds = array<i64: 32, 64>}, {pipeline_mode = #tpu.pipeline_mode<synchronous>, transform_indices = @transform_10, window_bounds = array<i64: 1, 64>}, {pipeline_mode = #tpu.pipeline_mode<synchronous>, transform_indices = @transform_11, window_bounds = array<i64: 64, 32>}, {pipeline_mode = #tpu.pipeline_mode<synchronous>, transform_indices = @transform_12, window_bounds = array<i64: 9, 32>}, {transform_indices = @transform_13, window_bounds = array<i64: 1, 8, 32>}]} {
    %c0 = arith.constant 0 : index
    %c0_0 = arith.constant 0 : index
    %c0_1 = arith.constant 0 : index
    %0 = vector.load %arg1[%c0, %c0_0, %c0_1] : memref<1x8x32xf32, #tpu.memory_space<vmem>>, vector<1x8x32xf32>
    %1 = vector.shape_cast %0 : vector<1x8x32xf32> to vector<8x32xf32>
    %c0_2 = arith.constant 0 : index
    %c0_3 = arith.constant 0 : index
    %c0_4 = arith.constant 0 : index
    %2 = vector.load %arg2[%c0_2, %c0_3, %c0_4] : memref<1x16x32xf32, #tpu.memory_space<vmem>>, vector<1x16x32xf32>
    %3 = vector.shape_cast %2 : vector<1x16x32xf32> to vector<16x32xf32>
    %c0_5 = arith.constant 0 : index
    %c0_6 = arith.constant 0 : index
    %c0_7 = arith.constant 0 : index
    %4 = vector.load %arg3[%c0_5, %c0_6, %c0_7] : memref<1x8x32xf32, #tpu.memory_space<vmem>>, vector<1x8x32xf32>
    %5 = vector.shape_cast %4 : vector<1x8x32xf32> to vector<8x32xf32>
    %c0_8 = arith.constant 0 : index
    %c0_9 = arith.constant 0 : index
    %c0_10 = arith.constant 0 : index
    %6 = vector.load %arg4[%c0_8, %c0_9, %c0_10] : memref<1x16x32xf32, #tpu.memory_space<vmem>>, vector<1x16x32xf32>
    %7 = vector.shape_cast %6 : vector<1x16x32xf32> to vector<16x32xf32>
    %c0_11 = arith.constant 0 : index
    %c0_12 = arith.constant 0 : index
    %8 = vector.load %arg13[%c0_11, %c0_12] : memref<9x32xf32, #tpu.memory_space<vmem>>, vector<9x32xf32>
    %9 = vector.extract_strided_slice %8 {offsets = [0, 0], sizes = [1, 32], strides = [1, 1]} : vector<9x32xf32> to vector<1x32xf32>
    %10 = vector.extract_strided_slice %8 {offsets = [1, 0], sizes = [1, 32], strides = [1, 1]} : vector<9x32xf32> to vector<1x32xf32>
    %11 = vector.extract_strided_slice %8 {offsets = [2, 0], sizes = [1, 32], strides = [1, 1]} : vector<9x32xf32> to vector<1x32xf32>
    %12 = vector.extract_strided_slice %8 {offsets = [3, 0], sizes = [1, 32], strides = [1, 1]} : vector<9x32xf32> to vector<1x32xf32>
    %13 = vector.extract_strided_slice %8 {offsets = [4, 0], sizes = [1, 32], strides = [1, 1]} : vector<9x32xf32> to vector<1x32xf32>
    %14 = vector.extract_strided_slice %8 {offsets = [5, 0], sizes = [1, 32], strides = [1, 1]} : vector<9x32xf32> to vector<1x32xf32>
    %15 = vector.extract_strided_slice %8 {offsets = [6, 0], sizes = [1, 32], strides = [1, 1]} : vector<9x32xf32> to vector<1x32xf32>
    %16 = vector.extract_strided_slice %8 {offsets = [7, 0], sizes = [1, 32], strides = [1, 1]} : vector<9x32xf32> to vector<1x32xf32>
    %17 = vector.extract_strided_slice %8 {offsets = [8, 0], sizes = [1, 32], strides = [1, 1]} : vector<9x32xf32> to vector<1x32xf32>
    %c0_13 = arith.constant 0 : index
    %c0_14 = arith.constant 0 : index
    %18 = vector.load %arg9[%c0_13, %c0_14] : memref<2x96xf32, #tpu.memory_space<vmem>>, vector<1x96xf32>
    %c1 = arith.constant 1 : index
    %c0_15 = arith.constant 0 : index
    %19 = vector.load %arg9[%c1, %c0_15] : memref<2x96xf32, #tpu.memory_space<vmem>>, vector<1x96xf32>
    %20 = arith.addf %1, %5 : vector<8x32xf32>
    %c0_16 = arith.constant 0 : index
    %c0_17 = arith.constant 0 : index
    %21 = vector.load %arg5[%c0_16, %c0_17] : memref<32x96xf32, #tpu.memory_space<vmem>>, vector<32x96xf32>
    %c0_18 = arith.constant 0 : index
    %c0_19 = arith.constant 0 : index
    %22 = vector.load %arg6[%c0_18, %c0_19] : memref<32x32xf32, #tpu.memory_space<vmem>>, vector<32x32xf32>
    %23 = vector.extract_strided_slice %21 {offsets = [0, 0], sizes = [32, 32], strides = [1, 1]} : vector<32x96xf32> to vector<32x32xf32>
    %cst = arith.constant dense<0.000000e+00> : vector<8x32xf32>
    %24 = tpu.matmul %20, %23, %cst {dimension_numbers = #tpu.dot_dimension_numbers<[1], [0], [0], [1], [0, 0, 1, 1], [], []>} : vector<8x32xf32>, vector<32x32xf32>, vector<8x32xf32> -> vector<8x32xf32>
    %25 = vector.extract_strided_slice %18 {offsets = [0, 0], sizes = [1, 32], strides = [1, 1]} : vector<1x96xf32> to vector<1x32xf32>
    %26 = vector.broadcast %25 : vector<1x32xf32> to vector<8x32xf32>
    %27 = arith.addf %24, %26 : vector<8x32xf32>
    %28 = vector.extract_strided_slice %21 {offsets = [0, 32], sizes = [32, 32], strides = [1, 1]} : vector<32x96xf32> to vector<32x32xf32>
    %cst_20 = arith.constant dense<0.000000e+00> : vector<8x32xf32>
    %29 = tpu.matmul %20, %28, %cst_20 {dimension_numbers = #tpu.dot_dimension_numbers<[1], [0], [0], [1], [0, 0, 1, 1], [], []>} : vector<8x32xf32>, vector<32x32xf32>, vector<8x32xf32> -> vector<8x32xf32>
    %30 = vector.extract_strided_slice %18 {offsets = [0, 32], sizes = [1, 32], strides = [1, 1]} : vector<1x96xf32> to vector<1x32xf32>
    %31 = vector.broadcast %30 : vector<1x32xf32> to vector<8x32xf32>
    %32 = arith.addf %29, %31 : vector<8x32xf32>
    %33 = vector.extract_strided_slice %21 {offsets = [0, 64], sizes = [32, 32], strides = [1, 1]} : vector<32x96xf32> to vector<32x32xf32>
    %cst_21 = arith.constant dense<0.000000e+00> : vector<8x32xf32>
    %34 = tpu.matmul %1, %33, %cst_21 {dimension_numbers = #tpu.dot_dimension_numbers<[1], [0], [0], [1], [0, 0, 1, 1], [], []>} : vector<8x32xf32>, vector<32x32xf32>, vector<8x32xf32> -> vector<8x32xf32>
    %35 = vector.extract_strided_slice %18 {offsets = [0, 64], sizes = [1, 32], strides = [1, 1]} : vector<1x96xf32> to vector<1x32xf32>
    %36 = vector.broadcast %35 : vector<1x32xf32> to vector<8x32xf32>
    %37 = arith.addf %34, %36 : vector<8x32xf32>
    %38 = vector.extract_strided_slice %27 {offsets = [0, 0], sizes = [8, 8], strides = [1, 1]} : vector<8x32xf32> to vector<8x8xf32>
    %39 = vector.extract_strided_slice %32 {offsets = [0, 0], sizes = [8, 8], strides = [1, 1]} : vector<8x32xf32> to vector<8x8xf32>
    %40 = vector.extract_strided_slice %37 {offsets = [0, 0], sizes = [8, 8], strides = [1, 1]} : vector<8x32xf32> to vector<8x8xf32>
    %cst_22 = arith.constant dense<0.000000e+00> : vector<8x8xf32>
    %41 = tpu.matmul %38, %39, %cst_22 {dimension_numbers = #tpu.dot_dimension_numbers<[1], [1], [0], [0], [0, 0, 1, 0], [], []>} : vector<8x8xf32>, vector<8x8xf32>, vector<8x8xf32> -> vector<8x8xf32>
    %cst_23 = arith.constant dense<0xFF800000> : vector<8xf32>
    %42 = vector.multi_reduction <maximumf>, %41, %cst_23 [1] : vector<8x8xf32> to vector<8xf32>
    %43 = vector.shape_cast %42 : vector<8xf32> to vector<8x1xf32>
    %44 = vector.broadcast %43 : vector<8x1xf32> to vector<8x8xf32>
    %45 = arith.subf %41, %44 : vector<8x8xf32>
    %46 = math.exp %45 : vector<8x8xf32>
    %cst_24 = arith.constant dense<0.000000e+00> : vector<8xf32>
    %47 = vector.multi_reduction <add>, %46, %cst_24 [1] : vector<8x8xf32> to vector<8xf32>
    %48 = vector.shape_cast %47 : vector<8xf32> to vector<8x1xf32>
    %49 = tpu.reciprocal %48 {approx = true} : vector<8x1xf32> -> vector<8x1xf32>
    %50 = vector.broadcast %49 : vector<8x1xf32> to vector<8x8xf32>
    %51 = arith.mulf %46, %50 : vector<8x8xf32>
    %cst_25 = arith.constant dense<0.000000e+00> : vector<8x8xf32>
    %52 = tpu.matmul %51, %40, %cst_25 {dimension_numbers = #tpu.dot_dimension_numbers<[1], [0], [0], [1], [0, 0, 1, 1], [], []>} : vector<8x8xf32>, vector<8x8xf32>, vector<8x8xf32> -> vector<8x8xf32>
    %53 = vector.extract_strided_slice %27 {offsets = [0, 8], sizes = [8, 8], strides = [1, 1]} : vector<8x32xf32> to vector<8x8xf32>
    %54 = vector.extract_strided_slice %32 {offsets = [0, 8], sizes = [8, 8], strides = [1, 1]} : vector<8x32xf32> to vector<8x8xf32>
    %55 = vector.extract_strided_slice %37 {offsets = [0, 8], sizes = [8, 8], strides = [1, 1]} : vector<8x32xf32> to vector<8x8xf32>
    %cst_26 = arith.constant dense<0.000000e+00> : vector<8x8xf32>
    %56 = tpu.matmul %53, %54, %cst_26 {dimension_numbers = #tpu.dot_dimension_numbers<[1], [1], [0], [0], [0, 0, 1, 0], [], []>} : vector<8x8xf32>, vector<8x8xf32>, vector<8x8xf32> -> vector<8x8xf32>
    %cst_27 = arith.constant dense<0xFF800000> : vector<8xf32>
    %57 = vector.multi_reduction <maximumf>, %56, %cst_27 [1] : vector<8x8xf32> to vector<8xf32>
    %58 = vector.shape_cast %57 : vector<8xf32> to vector<8x1xf32>
    %59 = vector.broadcast %58 : vector<8x1xf32> to vector<8x8xf32>
    %60 = arith.subf %56, %59 : vector<8x8xf32>
    %61 = math.exp %60 : vector<8x8xf32>
    %cst_28 = arith.constant dense<0.000000e+00> : vector<8xf32>
    %62 = vector.multi_reduction <add>, %61, %cst_28 [1] : vector<8x8xf32> to vector<8xf32>
    %63 = vector.shape_cast %62 : vector<8xf32> to vector<8x1xf32>
    %64 = tpu.reciprocal %63 {approx = true} : vector<8x1xf32> -> vector<8x1xf32>
    %65 = vector.broadcast %64 : vector<8x1xf32> to vector<8x8xf32>
    %66 = arith.mulf %61, %65 : vector<8x8xf32>
    %cst_29 = arith.constant dense<0.000000e+00> : vector<8x8xf32>
    %67 = tpu.matmul %66, %55, %cst_29 {dimension_numbers = #tpu.dot_dimension_numbers<[1], [0], [0], [1], [0, 0, 1, 1], [], []>} : vector<8x8xf32>, vector<8x8xf32>, vector<8x8xf32> -> vector<8x8xf32>
    %68 = vector.extract_strided_slice %27 {offsets = [0, 16], sizes = [8, 8], strides = [1, 1]} : vector<8x32xf32> to vector<8x8xf32>
    %69 = vector.extract_strided_slice %32 {offsets = [0, 16], sizes = [8, 8], strides = [1, 1]} : vector<8x32xf32> to vector<8x8xf32>
    %70 = vector.extract_strided_slice %37 {offsets = [0, 16], sizes = [8, 8], strides = [1, 1]} : vector<8x32xf32> to vector<8x8xf32>
    %cst_30 = arith.constant dense<0.000000e+00> : vector<8x8xf32>
    %71 = tpu.matmul %68, %69, %cst_30 {dimension_numbers = #tpu.dot_dimension_numbers<[1], [1], [0], [0], [0, 0, 1, 0], [], []>} : vector<8x8xf32>, vector<8x8xf32>, vector<8x8xf32> -> vector<8x8xf32>
    %cst_31 = arith.constant dense<0xFF800000> : vector<8xf32>
    %72 = vector.multi_reduction <maximumf>, %71, %cst_31 [1] : vector<8x8xf32> to vector<8xf32>
    %73 = vector.shape_cast %72 : vector<8xf32> to vector<8x1xf32>
    %74 = vector.broadcast %73 : vector<8x1xf32> to vector<8x8xf32>
    %75 = arith.subf %71, %74 : vector<8x8xf32>
    %76 = math.exp %75 : vector<8x8xf32>
    %cst_32 = arith.constant dense<0.000000e+00> : vector<8xf32>
    %77 = vector.multi_reduction <add>, %76, %cst_32 [1] : vector<8x8xf32> to vector<8xf32>
    %78 = vector.shape_cast %77 : vector<8xf32> to vector<8x1xf32>
    %79 = tpu.reciprocal %78 {approx = true} : vector<8x1xf32> -> vector<8x1xf32>
    %80 = vector.broadcast %79 : vector<8x1xf32> to vector<8x8xf32>
    %81 = arith.mulf %76, %80 : vector<8x8xf32>
    %cst_33 = arith.constant dense<0.000000e+00> : vector<8x8xf32>
    %82 = tpu.matmul %81, %70, %cst_33 {dimension_numbers = #tpu.dot_dimension_numbers<[1], [0], [0], [1], [0, 0, 1, 1], [], []>} : vector<8x8xf32>, vector<8x8xf32>, vector<8x8xf32> -> vector<8x8xf32>
    %83 = vector.extract_strided_slice %27 {offsets = [0, 24], sizes = [8, 8], strides = [1, 1]} : vector<8x32xf32> to vector<8x8xf32>
    %84 = vector.extract_strided_slice %32 {offsets = [0, 24], sizes = [8, 8], strides = [1, 1]} : vector<8x32xf32> to vector<8x8xf32>
    %85 = vector.extract_strided_slice %37 {offsets = [0, 24], sizes = [8, 8], strides = [1, 1]} : vector<8x32xf32> to vector<8x8xf32>
    %cst_34 = arith.constant dense<0.000000e+00> : vector<8x8xf32>
    %86 = tpu.matmul %83, %84, %cst_34 {dimension_numbers = #tpu.dot_dimension_numbers<[1], [1], [0], [0], [0, 0, 1, 0], [], []>} : vector<8x8xf32>, vector<8x8xf32>, vector<8x8xf32> -> vector<8x8xf32>
    %cst_35 = arith.constant dense<0xFF800000> : vector<8xf32>
    %87 = vector.multi_reduction <maximumf>, %86, %cst_35 [1] : vector<8x8xf32> to vector<8xf32>
    %88 = vector.shape_cast %87 : vector<8xf32> to vector<8x1xf32>
    %89 = vector.broadcast %88 : vector<8x1xf32> to vector<8x8xf32>
    %90 = arith.subf %86, %89 : vector<8x8xf32>
    %91 = math.exp %90 : vector<8x8xf32>
    %cst_36 = arith.constant dense<0.000000e+00> : vector<8xf32>
    %92 = vector.multi_reduction <add>, %91, %cst_36 [1] : vector<8x8xf32> to vector<8xf32>
    %93 = vector.shape_cast %92 : vector<8xf32> to vector<8x1xf32>
    %94 = tpu.reciprocal %93 {approx = true} : vector<8x1xf32> -> vector<8x1xf32>
    %95 = vector.broadcast %94 : vector<8x1xf32> to vector<8x8xf32>
    %96 = arith.mulf %91, %95 : vector<8x8xf32>
    %cst_37 = arith.constant dense<0.000000e+00> : vector<8x8xf32>
    %97 = tpu.matmul %96, %85, %cst_37 {dimension_numbers = #tpu.dot_dimension_numbers<[1], [0], [0], [1], [0, 0, 1, 1], [], []>} : vector<8x8xf32>, vector<8x8xf32>, vector<8x8xf32> -> vector<8x8xf32>
    %98 = tpu.concatenate %52, %67, %82, %97 in 1 : vector<8x8xf32>, vector<8x8xf32>, vector<8x8xf32>, vector<8x8xf32> -> vector<8x32xf32>
    %cst_38 = arith.constant dense<0.000000e+00> : vector<8x32xf32>
    %99 = tpu.matmul %98, %22, %cst_38 {dimension_numbers = #tpu.dot_dimension_numbers<[1], [0], [0], [1], [0, 0, 1, 1], [], []>} : vector<8x32xf32>, vector<32x32xf32>, vector<8x32xf32> -> vector<8x32xf32>
    %100 = vector.broadcast %9 : vector<1x32xf32> to vector<8x32xf32>
    %101 = arith.addf %99, %100 : vector<8x32xf32>
    %102 = arith.addf %1, %101 : vector<8x32xf32>
    %cst_39 = arith.constant dense<0.000000e+00> : vector<8xf32>
    %103 = vector.multi_reduction <add>, %102, %cst_39 [1] : vector<8x32xf32> to vector<8xf32>
    %104 = vector.shape_cast %103 : vector<8xf32> to vector<8x1xf32>
    %cst_40 = arith.constant 3.200000e+01 : f32
    %105 = vector.broadcast %cst_40 : f32 to vector<8x1xf32>
    %106 = arith.divf %104, %105 : vector<8x1xf32>
    %107 = vector.broadcast %106 : vector<8x1xf32> to vector<8x32xf32>
    %108 = arith.subf %102, %107 : vector<8x32xf32>
    %109 = arith.mulf %108, %108 : vector<8x32xf32>
    %cst_41 = arith.constant dense<0.000000e+00> : vector<8xf32>
    %110 = vector.multi_reduction <add>, %109, %cst_41 [1] : vector<8x32xf32> to vector<8xf32>
    %111 = vector.shape_cast %110 : vector<8xf32> to vector<8x1xf32>
    %cst_42 = arith.constant 3.200000e+01 : f32
    %112 = vector.broadcast %cst_42 : f32 to vector<8x1xf32>
    %113 = arith.divf %111, %112 : vector<8x1xf32>
    %114 = vector.broadcast %106 : vector<8x1xf32> to vector<8x32xf32>
    %115 = arith.subf %102, %114 : vector<8x32xf32>
    %cst_43 = arith.constant 9.99999974E-6 : f32
    %116 = vector.broadcast %cst_43 : f32 to vector<8x1xf32>
    %117 = arith.addf %113, %116 : vector<8x1xf32>
    %118 = math.rsqrt %117 : vector<8x1xf32>
    %119 = vector.broadcast %118 : vector<8x1xf32> to vector<8x32xf32>
    %120 = arith.mulf %115, %119 : vector<8x32xf32>
    %121 = vector.broadcast %12 : vector<1x32xf32> to vector<8x32xf32>
    %122 = arith.mulf %120, %121 : vector<8x32xf32>
    %123 = vector.broadcast %13 : vector<1x32xf32> to vector<8x32xf32>
    %124 = arith.addf %122, %123 : vector<8x32xf32>
    %125 = arith.addf %124, %5 : vector<8x32xf32>
    %126 = arith.addf %3, %7 : vector<16x32xf32>
    %c0_44 = arith.constant 0 : index
    %c0_45 = arith.constant 0 : index
    %127 = vector.load %arg7[%c0_44, %c0_45] : memref<32x96xf32, #tpu.memory_space<vmem>>, vector<32x96xf32>
    %c0_46 = arith.constant 0 : index
    %c0_47 = arith.constant 0 : index
    %128 = vector.load %arg8[%c0_46, %c0_47] : memref<32x32xf32, #tpu.memory_space<vmem>>, vector<32x32xf32>
    %129 = vector.extract_strided_slice %127 {offsets = [0, 0], sizes = [32, 32], strides = [1, 1]} : vector<32x96xf32> to vector<32x32xf32>
    %cst_48 = arith.constant dense<0.000000e+00> : vector<8x32xf32>
    %130 = tpu.matmul %125, %129, %cst_48 {dimension_numbers = #tpu.dot_dimension_numbers<[1], [0], [0], [1], [0, 0, 1, 1], [], []>} : vector<8x32xf32>, vector<32x32xf32>, vector<8x32xf32> -> vector<8x32xf32>
    %131 = vector.extract_strided_slice %19 {offsets = [0, 0], sizes = [1, 32], strides = [1, 1]} : vector<1x96xf32> to vector<1x32xf32>
    %132 = vector.broadcast %131 : vector<1x32xf32> to vector<8x32xf32>
    %133 = arith.addf %130, %132 : vector<8x32xf32>
    %134 = vector.extract_strided_slice %127 {offsets = [0, 32], sizes = [32, 32], strides = [1, 1]} : vector<32x96xf32> to vector<32x32xf32>
    %cst_49 = arith.constant dense<0.000000e+00> : vector<16x32xf32>
    %135 = tpu.matmul %126, %134, %cst_49 {dimension_numbers = #tpu.dot_dimension_numbers<[1], [0], [0], [1], [0, 0, 1, 1], [], []>} : vector<16x32xf32>, vector<32x32xf32>, vector<16x32xf32> -> vector<16x32xf32>
    %136 = vector.extract_strided_slice %19 {offsets = [0, 32], sizes = [1, 32], strides = [1, 1]} : vector<1x96xf32> to vector<1x32xf32>
    %137 = vector.broadcast %136 : vector<1x32xf32> to vector<16x32xf32>
    %138 = arith.addf %135, %137 : vector<16x32xf32>
    %139 = vector.extract_strided_slice %127 {offsets = [0, 64], sizes = [32, 32], strides = [1, 1]} : vector<32x96xf32> to vector<32x32xf32>
    %cst_50 = arith.constant dense<0.000000e+00> : vector<16x32xf32>
    %140 = tpu.matmul %3, %139, %cst_50 {dimension_numbers = #tpu.dot_dimension_numbers<[1], [0], [0], [1], [0, 0, 1, 1], [], []>} : vector<16x32xf32>, vector<32x32xf32>, vector<16x32xf32> -> vector<16x32xf32>
    %141 = vector.extract_strided_slice %19 {offsets = [0, 64], sizes = [1, 32], strides = [1, 1]} : vector<1x96xf32> to vector<1x32xf32>
    %142 = vector.broadcast %141 : vector<1x32xf32> to vector<16x32xf32>
    %143 = arith.addf %140, %142 : vector<16x32xf32>
    %144 = vector.extract_strided_slice %133 {offsets = [0, 0], sizes = [8, 8], strides = [1, 1]} : vector<8x32xf32> to vector<8x8xf32>
    %145 = vector.extract_strided_slice %138 {offsets = [0, 0], sizes = [16, 8], strides = [1, 1]} : vector<16x32xf32> to vector<16x8xf32>
    %146 = vector.extract_strided_slice %143 {offsets = [0, 0], sizes = [16, 8], strides = [1, 1]} : vector<16x32xf32> to vector<16x8xf32>
    %cst_51 = arith.constant dense<0.000000e+00> : vector<8x16xf32>
    %147 = tpu.matmul %144, %145, %cst_51 {dimension_numbers = #tpu.dot_dimension_numbers<[1], [1], [0], [0], [0, 0, 1, 0], [], []>} : vector<8x8xf32>, vector<16x8xf32>, vector<8x16xf32> -> vector<8x16xf32>
    %cst_52 = arith.constant dense<0xFF800000> : vector<8xf32>
    %148 = vector.multi_reduction <maximumf>, %147, %cst_52 [1] : vector<8x16xf32> to vector<8xf32>
    %149 = vector.shape_cast %148 : vector<8xf32> to vector<8x1xf32>
    %150 = vector.broadcast %149 : vector<8x1xf32> to vector<8x16xf32>
    %151 = arith.subf %147, %150 : vector<8x16xf32>
    %152 = math.exp %151 : vector<8x16xf32>
    %cst_53 = arith.constant dense<0.000000e+00> : vector<8xf32>
    %153 = vector.multi_reduction <add>, %152, %cst_53 [1] : vector<8x16xf32> to vector<8xf32>
    %154 = vector.shape_cast %153 : vector<8xf32> to vector<8x1xf32>
    %155 = tpu.reciprocal %154 {approx = true} : vector<8x1xf32> -> vector<8x1xf32>
    %156 = vector.broadcast %155 : vector<8x1xf32> to vector<8x16xf32>
    %157 = arith.mulf %152, %156 : vector<8x16xf32>
    %cst_54 = arith.constant dense<0.000000e+00> : vector<8x8xf32>
    %158 = tpu.matmul %157, %146, %cst_54 {dimension_numbers = #tpu.dot_dimension_numbers<[1], [0], [0], [1], [0, 0, 1, 1], [], []>} : vector<8x16xf32>, vector<16x8xf32>, vector<8x8xf32> -> vector<8x8xf32>
    %159 = vector.extract_strided_slice %133 {offsets = [0, 8], sizes = [8, 8], strides = [1, 1]} : vector<8x32xf32> to vector<8x8xf32>
    %160 = vector.extract_strided_slice %138 {offsets = [0, 8], sizes = [16, 8], strides = [1, 1]} : vector<16x32xf32> to vector<16x8xf32>
    %161 = vector.extract_strided_slice %143 {offsets = [0, 8], sizes = [16, 8], strides = [1, 1]} : vector<16x32xf32> to vector<16x8xf32>
    %cst_55 = arith.constant dense<0.000000e+00> : vector<8x16xf32>
    %162 = tpu.matmul %159, %160, %cst_55 {dimension_numbers = #tpu.dot_dimension_numbers<[1], [1], [0], [0], [0, 0, 1, 0], [], []>} : vector<8x8xf32>, vector<16x8xf32>, vector<8x16xf32> -> vector<8x16xf32>
    %cst_56 = arith.constant dense<0xFF800000> : vector<8xf32>
    %163 = vector.multi_reduction <maximumf>, %162, %cst_56 [1] : vector<8x16xf32> to vector<8xf32>
    %164 = vector.shape_cast %163 : vector<8xf32> to vector<8x1xf32>
    %165 = vector.broadcast %164 : vector<8x1xf32> to vector<8x16xf32>
    %166 = arith.subf %162, %165 : vector<8x16xf32>
    %167 = math.exp %166 : vector<8x16xf32>
    %cst_57 = arith.constant dense<0.000000e+00> : vector<8xf32>
    %168 = vector.multi_reduction <add>, %167, %cst_57 [1] : vector<8x16xf32> to vector<8xf32>
    %169 = vector.shape_cast %168 : vector<8xf32> to vector<8x1xf32>
    %170 = tpu.reciprocal %169 {approx = true} : vector<8x1xf32> -> vector<8x1xf32>
    %171 = vector.broadcast %170 : vector<8x1xf32> to vector<8x16xf32>
    %172 = arith.mulf %167, %171 : vector<8x16xf32>
    %cst_58 = arith.constant dense<0.000000e+00> : vector<8x8xf32>
    %173 = tpu.matmul %172, %161, %cst_58 {dimension_numbers = #tpu.dot_dimension_numbers<[1], [0], [0], [1], [0, 0, 1, 1], [], []>} : vector<8x16xf32>, vector<16x8xf32>, vector<8x8xf32> -> vector<8x8xf32>
    %174 = vector.extract_strided_slice %133 {offsets = [0, 16], sizes = [8, 8], strides = [1, 1]} : vector<8x32xf32> to vector<8x8xf32>
    %175 = vector.extract_strided_slice %138 {offsets = [0, 16], sizes = [16, 8], strides = [1, 1]} : vector<16x32xf32> to vector<16x8xf32>
    %176 = vector.extract_strided_slice %143 {offsets = [0, 16], sizes = [16, 8], strides = [1, 1]} : vector<16x32xf32> to vector<16x8xf32>
    %cst_59 = arith.constant dense<0.000000e+00> : vector<8x16xf32>
    %177 = tpu.matmul %174, %175, %cst_59 {dimension_numbers = #tpu.dot_dimension_numbers<[1], [1], [0], [0], [0, 0, 1, 0], [], []>} : vector<8x8xf32>, vector<16x8xf32>, vector<8x16xf32> -> vector<8x16xf32>
    %cst_60 = arith.constant dense<0xFF800000> : vector<8xf32>
    %178 = vector.multi_reduction <maximumf>, %177, %cst_60 [1] : vector<8x16xf32> to vector<8xf32>
    %179 = vector.shape_cast %178 : vector<8xf32> to vector<8x1xf32>
    %180 = vector.broadcast %179 : vector<8x1xf32> to vector<8x16xf32>
    %181 = arith.subf %177, %180 : vector<8x16xf32>
    %182 = math.exp %181 : vector<8x16xf32>
    %cst_61 = arith.constant dense<0.000000e+00> : vector<8xf32>
    %183 = vector.multi_reduction <add>, %182, %cst_61 [1] : vector<8x16xf32> to vector<8xf32>
    %184 = vector.shape_cast %183 : vector<8xf32> to vector<8x1xf32>
    %185 = tpu.reciprocal %184 {approx = true} : vector<8x1xf32> -> vector<8x1xf32>
    %186 = vector.broadcast %185 : vector<8x1xf32> to vector<8x16xf32>
    %187 = arith.mulf %182, %186 : vector<8x16xf32>
    %cst_62 = arith.constant dense<0.000000e+00> : vector<8x8xf32>
    %188 = tpu.matmul %187, %176, %cst_62 {dimension_numbers = #tpu.dot_dimension_numbers<[1], [0], [0], [1], [0, 0, 1, 1], [], []>} : vector<8x16xf32>, vector<16x8xf32>, vector<8x8xf32> -> vector<8x8xf32>
    %189 = vector.extract_strided_slice %133 {offsets = [0, 24], sizes = [8, 8], strides = [1, 1]} : vector<8x32xf32> to vector<8x8xf32>
    %190 = vector.extract_strided_slice %138 {offsets = [0, 24], sizes = [16, 8], strides = [1, 1]} : vector<16x32xf32> to vector<16x8xf32>
    %191 = vector.extract_strided_slice %143 {offsets = [0, 24], sizes = [16, 8], strides = [1, 1]} : vector<16x32xf32> to vector<16x8xf32>
    %cst_63 = arith.constant dense<0.000000e+00> : vector<8x16xf32>
    %192 = tpu.matmul %189, %190, %cst_63 {dimension_numbers = #tpu.dot_dimension_numbers<[1], [1], [0], [0], [0, 0, 1, 0], [], []>} : vector<8x8xf32>, vector<16x8xf32>, vector<8x16xf32> -> vector<8x16xf32>
    %cst_64 = arith.constant dense<0xFF800000> : vector<8xf32>
    %193 = vector.multi_reduction <maximumf>, %192, %cst_64 [1] : vector<8x16xf32> to vector<8xf32>
    %194 = vector.shape_cast %193 : vector<8xf32> to vector<8x1xf32>
    %195 = vector.broadcast %194 : vector<8x1xf32> to vector<8x16xf32>
    %196 = arith.subf %192, %195 : vector<8x16xf32>
    %197 = math.exp %196 : vector<8x16xf32>
    %cst_65 = arith.constant dense<0.000000e+00> : vector<8xf32>
    %198 = vector.multi_reduction <add>, %197, %cst_65 [1] : vector<8x16xf32> to vector<8xf32>
    %199 = vector.shape_cast %198 : vector<8xf32> to vector<8x1xf32>
    %200 = tpu.reciprocal %199 {approx = true} : vector<8x1xf32> -> vector<8x1xf32>
    %201 = vector.broadcast %200 : vector<8x1xf32> to vector<8x16xf32>
    %202 = arith.mulf %197, %201 : vector<8x16xf32>
    %cst_66 = arith.constant dense<0.000000e+00> : vector<8x8xf32>
    %203 = tpu.matmul %202, %191, %cst_66 {dimension_numbers = #tpu.dot_dimension_numbers<[1], [0], [0], [1], [0, 0, 1, 1], [], []>} : vector<8x16xf32>, vector<16x8xf32>, vector<8x8xf32> -> vector<8x8xf32>
    %204 = tpu.concatenate %158, %173, %188, %203 in 1 : vector<8x8xf32>, vector<8x8xf32>, vector<8x8xf32>, vector<8x8xf32> -> vector<8x32xf32>
    %cst_67 = arith.constant dense<0.000000e+00> : vector<8x32xf32>
    %205 = tpu.matmul %204, %128, %cst_67 {dimension_numbers = #tpu.dot_dimension_numbers<[1], [0], [0], [1], [0, 0, 1, 1], [], []>} : vector<8x32xf32>, vector<32x32xf32>, vector<8x32xf32> -> vector<8x32xf32>
    %206 = vector.broadcast %10 : vector<1x32xf32> to vector<8x32xf32>
    %207 = arith.addf %205, %206 : vector<8x32xf32>
    %208 = arith.addf %124, %207 : vector<8x32xf32>
    %cst_68 = arith.constant dense<0.000000e+00> : vector<8xf32>
    %209 = vector.multi_reduction <add>, %208, %cst_68 [1] : vector<8x32xf32> to vector<8xf32>
    %210 = vector.shape_cast %209 : vector<8xf32> to vector<8x1xf32>
    %cst_69 = arith.constant 3.200000e+01 : f32
    %211 = vector.broadcast %cst_69 : f32 to vector<8x1xf32>
    %212 = arith.divf %210, %211 : vector<8x1xf32>
    %213 = vector.broadcast %212 : vector<8x1xf32> to vector<8x32xf32>
    %214 = arith.subf %208, %213 : vector<8x32xf32>
    %215 = arith.mulf %214, %214 : vector<8x32xf32>
    %cst_70 = arith.constant dense<0.000000e+00> : vector<8xf32>
    %216 = vector.multi_reduction <add>, %215, %cst_70 [1] : vector<8x32xf32> to vector<8xf32>
    %217 = vector.shape_cast %216 : vector<8xf32> to vector<8x1xf32>
    %cst_71 = arith.constant 3.200000e+01 : f32
    %218 = vector.broadcast %cst_71 : f32 to vector<8x1xf32>
    %219 = arith.divf %217, %218 : vector<8x1xf32>
    %220 = vector.broadcast %212 : vector<8x1xf32> to vector<8x32xf32>
    %221 = arith.subf %208, %220 : vector<8x32xf32>
    %cst_72 = arith.constant 9.99999974E-6 : f32
    %222 = vector.broadcast %cst_72 : f32 to vector<8x1xf32>
    %223 = arith.addf %219, %222 : vector<8x1xf32>
    %224 = math.rsqrt %223 : vector<8x1xf32>
    %225 = vector.broadcast %224 : vector<8x1xf32> to vector<8x32xf32>
    %226 = arith.mulf %221, %225 : vector<8x32xf32>
    %227 = vector.broadcast %14 : vector<1x32xf32> to vector<8x32xf32>
    %228 = arith.mulf %226, %227 : vector<8x32xf32>
    %229 = vector.broadcast %15 : vector<1x32xf32> to vector<8x32xf32>
    %230 = arith.addf %228, %229 : vector<8x32xf32>
    %c0_73 = arith.constant 0 : index
    %c0_74 = arith.constant 0 : index
    %231 = vector.load %arg10[%c0_73, %c0_74] : memref<32x64xf32, #tpu.memory_space<vmem>>, vector<32x64xf32>
    %cst_75 = arith.constant dense<0.000000e+00> : vector<8x64xf32>
    %232 = tpu.matmul %230, %231, %cst_75 {dimension_numbers = #tpu.dot_dimension_numbers<[1], [0], [0], [1], [0, 0, 1, 1], [], []>} : vector<8x32xf32>, vector<32x64xf32>, vector<8x64xf32> -> vector<8x64xf32>
    %c0_76 = arith.constant 0 : index
    %c0_77 = arith.constant 0 : index
    %233 = vector.load %arg11[%c0_76, %c0_77] : memref<1x64xf32, #tpu.memory_space<vmem>>, vector<1x64xf32>
    %234 = vector.broadcast %233 : vector<1x64xf32> to vector<8x64xf32>
    %235 = arith.addf %232, %234 : vector<8x64xf32>
    %cst_78 = arith.constant 0.000000e+00 : f32
    %236 = vector.broadcast %cst_78 : f32 to vector<8x64xf32>
    %237 = arith.maximumf %235, %236 : vector<8x64xf32>
    %c0_79 = arith.constant 0 : index
    %c0_80 = arith.constant 0 : index
    %238 = vector.load %arg12[%c0_79, %c0_80] : memref<64x32xf32, #tpu.memory_space<vmem>>, vector<64x32xf32>
    %cst_81 = arith.constant dense<0.000000e+00> : vector<8x32xf32>
    %239 = tpu.matmul %237, %238, %cst_81 {dimension_numbers = #tpu.dot_dimension_numbers<[1], [0], [0], [1], [0, 0, 1, 1], [], []>} : vector<8x64xf32>, vector<64x32xf32>, vector<8x32xf32> -> vector<8x32xf32>
    %240 = vector.broadcast %11 : vector<1x32xf32> to vector<8x32xf32>
    %241 = arith.addf %239, %240 : vector<8x32xf32>
    %242 = arith.addf %230, %241 : vector<8x32xf32>
    %cst_82 = arith.constant dense<0.000000e+00> : vector<8xf32>
    %243 = vector.multi_reduction <add>, %242, %cst_82 [1] : vector<8x32xf32> to vector<8xf32>
    %244 = vector.shape_cast %243 : vector<8xf32> to vector<8x1xf32>
    %cst_83 = arith.constant 3.200000e+01 : f32
    %245 = vector.broadcast %cst_83 : f32 to vector<8x1xf32>
    %246 = arith.divf %244, %245 : vector<8x1xf32>
    %247 = vector.broadcast %246 : vector<8x1xf32> to vector<8x32xf32>
    %248 = arith.subf %242, %247 : vector<8x32xf32>
    %249 = arith.mulf %248, %248 : vector<8x32xf32>
    %cst_84 = arith.constant dense<0.000000e+00> : vector<8xf32>
    %250 = vector.multi_reduction <add>, %249, %cst_84 [1] : vector<8x32xf32> to vector<8xf32>
    %251 = vector.shape_cast %250 : vector<8xf32> to vector<8x1xf32>
    %cst_85 = arith.constant 3.200000e+01 : f32
    %252 = vector.broadcast %cst_85 : f32 to vector<8x1xf32>
    %253 = arith.divf %251, %252 : vector<8x1xf32>
    %254 = vector.broadcast %246 : vector<8x1xf32> to vector<8x32xf32>
    %255 = arith.subf %242, %254 : vector<8x32xf32>
    %cst_86 = arith.constant 9.99999974E-6 : f32
    %256 = vector.broadcast %cst_86 : f32 to vector<8x1xf32>
    %257 = arith.addf %253, %256 : vector<8x1xf32>
    %258 = math.rsqrt %257 : vector<8x1xf32>
    %259 = vector.broadcast %258 : vector<8x1xf32> to vector<8x32xf32>
    %260 = arith.mulf %255, %259 : vector<8x32xf32>
    %261 = vector.broadcast %16 : vector<1x32xf32> to vector<8x32xf32>
    %262 = arith.mulf %260, %261 : vector<8x32xf32>
    %263 = vector.broadcast %17 : vector<1x32xf32> to vector<8x32xf32>
    %264 = arith.addf %262, %263 : vector<8x32xf32>
    %c0_87 = arith.constant 0 : index
    %c0_88 = arith.constant 0 : index
    %c0_89 = arith.constant 0 : index
    %265 = vector.load %arg14[%c0_87, %c0_88, %c0_89] : memref<1x8x32xf32, #tpu.memory_space<vmem>>, vector<1x8x32xf32>
    %266 = vector.shape_cast %265 : vector<1x8x32xf32> to vector<8x32xf32>
    %267 = vector.shape_cast %264 : vector<8x32xf32> to vector<1x8x32xf32>
    tpu.vector_store %arg14[%c0_87, %c0_88, %c0_89], %267 {strides = array<i32>} : memref<1x8x32xf32, #tpu.memory_space<vmem>>, vector<1x8x32xf32>,
    return
  }
  func.func @transform_0(%arg0: i32) -> (i32, i32, i32) {
    %c0_i32 = arith.constant 0 : i32
    %c0_i32_0 = arith.constant 0 : i32
    %c0_i32_1 = arith.constant 0 : i32
    return %arg0, %c0_i32, %c0_i32_0 : i32, i32, i32
  }
  func.func @transform_1(%arg0: i32) -> (i32, i32, i32) {
    %c0_i32 = arith.constant 0 : i32
    %c0_i32_0 = arith.constant 0 : i32
    %c0_i32_1 = arith.constant 0 : i32
    return %arg0, %c0_i32, %c0_i32_0 : i32, i32, i32
  }
  func.func @transform_2(%arg0: i32) -> (i32, i32, i32) {
    %c0_i32 = arith.constant 0 : i32
    %c0_i32_0 = arith.constant 0 : i32
    %c0_i32_1 = arith.constant 0 : i32
    return %arg0, %c0_i32, %c0_i32_0 : i32, i32, i32
  }
  func.func @transform_3(%arg0: i32) -> (i32, i32, i32) {
    %c0_i32 = arith.constant 0 : i32
    %c0_i32_0 = arith.constant 0 : i32
    %c0_i32_1 = arith.constant 0 : i32
    return %arg0, %c0_i32, %c0_i32_0 : i32, i32, i32
  }
  func.func @transform_4(%arg0: i32) -> (i32, i32) {
    %c0_i32 = arith.constant 0 : i32
    %c0_i32_0 = arith.constant 0 : i32
    %c0_i32_1 = arith.constant 0 : i32
    return %c0_i32, %c0_i32_0 : i32, i32
  }
  func.func @transform_5(%arg0: i32) -> (i32, i32) {
    %c0_i32 = arith.constant 0 : i32
    %c0_i32_0 = arith.constant 0 : i32
    %c0_i32_1 = arith.constant 0 : i32
    return %c0_i32, %c0_i32_0 : i32, i32
  }
  func.func @transform_6(%arg0: i32) -> (i32, i32) {
    %c0_i32 = arith.constant 0 : i32
    %c0_i32_0 = arith.constant 0 : i32
    %c0_i32_1 = arith.constant 0 : i32
    return %c0_i32, %c0_i32_0 : i32, i32
  }
  func.func @transform_7(%arg0: i32) -> (i32, i32) {
    %c0_i32 = arith.constant 0 : i32
    %c0_i32_0 = arith.constant 0 : i32
    %c0_i32_1 = arith.constant 0 : i32
    return %c0_i32, %c0_i32_0 : i32, i32
  }
  func.func @transform_8(%arg0: i32) -> (i32, i32) {
    %c0_i32 = arith.constant 0 : i32
    %c0_i32_0 = arith.constant 0 : i32
    %c0_i32_1 = arith.constant 0 : i32
    return %c0_i32, %c0_i32_0 : i32, i32
  }
  func.func @transform_9(%arg0: i32) -> (i32, i32) {
    %c0_i32 = arith.constant 0 : i32
    %c0_i32_0 = arith.constant 0 : i32
    %c0_i32_1 = arith.constant 0 : i32
    return %c0_i32, %c0_i32_0 : i32, i32
  }
  func.func @transform_10(%arg0: i32) -> (i32, i32) {
    %c0_i32 = arith.constant 0 : i32
    %c0_i32_0 = arith.constant 0 : i32
    %c0_i32_1 = arith.constant 0 : i32
    return %c0_i32, %c0_i32_0 : i32, i32
  }
  func.func @transform_11(%arg0: i32) -> (i32, i32) {
    %c0_i32 = arith.constant 0 : i32
    %c0_i32_0 = arith.constant 0 : i32
    %c0_i32_1 = arith.constant 0 : i32
    return %c0_i32, %c0_i32_0 : i32, i32
  }
  func.func @transform_12(%arg0: i32) -> (i32, i32) {
    %c0_i32 = arith.constant 0 : i32
    %c0_i32_0 = arith.constant 0 : i32
    %c0_i32_1 = arith.constant 0 : i32
    return %c0_i32, %c0_i32_0 : i32, i32
  }
  func.func @transform_13(%arg0: i32) -> (i32, i32, i32) {
    %c0_i32 = arith.constant 0 : i32
    %c0_i32_0 = arith.constant 0 : i32
    %c0_i32_1 = arith.constant 0 : i32
    return %arg0, %c0_i32, %c0_i32_0 : i32, i32, i32
  }
}

</mosaic_0001>

<llo_original>
// kernel: transformer_decoder_layer.1
$region0: #{transformer_decoder_layer.1}
  #allocation0 [shape = 'u32[]', space=smem, size = 0x4, offset = 0x4, fixed_abs, tag = 'smem constant byte address 0x4 - core index']
  #allocation1 [shape = 'u32[144,128]{1,0:T(1,128)}', space=vmem, size = 0x12000, scoped, tag = 'internal scratch']
  %s0 = inlined_call_operand.vmem [shape: f32[2,8,32], index: 0, kind: input, shape index: {}]
  %s1 = inlined_call_operand.vmem [shape: f32[2,16,32], index: 1, kind: input, shape index: {}]
  %s2 = inlined_call_operand.vmem [shape: f32[2,8,32], index: 2, kind: input, shape index: {}]
  %s3 = inlined_call_operand.vmem [shape: f32[2,16,32], index: 3, kind: input, shape index: {}]
  %s4 = inlined_call_operand.vmem [shape: f32[32,96], index: 4, kind: input, shape index: {}]
  %s5 = inlined_call_operand.vmem [shape: f32[32,32], index: 5, kind: input, shape index: {}]
  %s6 = inlined_call_operand.vmem [shape: f32[32,96], index: 6, kind: input, shape index: {}]
  %s7 = inlined_call_operand.vmem [shape: f32[32,32], index: 7, kind: input, shape index: {}]
  %s8 = inlined_call_operand.vmem [shape: f32[2,96], index: 8, kind: input, shape index: {}]
  %s9 = inlined_call_operand.vmem [shape: f32[32,64], index: 9, kind: input, shape index: {}]
  %s10 = inlined_call_operand.vmem [shape: f32[1,64], index: 10, kind: input, shape index: {}]
  %s11 = inlined_call_operand.vmem [shape: f32[64,32], index: 11, kind: input, shape index: {}]
  %s12 = inlined_call_operand.vmem [shape: f32[9,32], index: 12, kind: input, shape index: {}]
  %s13 = inlined_call_operand.vmem [shape: f32[2,8,32], index: 13, kind: output, shape index: {}]
  %s14 = sld [smem:[#allocation0]]
  $region85: #{transformer_decoder_layer.1} parent=0
    _
  %s16 = ssub.s32 1, %s14
  %s17 = scalar_select 0, %s16, %s14
  loop: start=0, step=1, limit=4
  $region2: #{transformer_decoder_layer.1} parent=0 // loop_pre_header
    _
  $region3: #{transformer_decoder_layer.1} parent=0 // loop_header
    %s19 = sphi 0, %s23
    %p20 = scmp.ge.s32.totalorder %s19, 4
    %s29 = sphi 0, %s31
    %s32 = sphi 0, %s29
    %s33 = sphi 0, %s32
    %s49 = sphi 0, %s33
    %s55 = sphi 0, %s57
    %s58 = sphi 0, %s55
    %s59 = sphi 0, %s58
    %s75 = sphi 0, %s59
    %s81 = sphi 0, %s83
    %s84 = sphi 0, %s81
    %s85 = sphi 0, %s84
    %s101 = sphi 0, %s85
    %s107 = sphi 0, %s109
    %s110 = sphi 0, %s107
    %s111 = sphi 0, %s110
    %s127 = sphi 0, %s111
    %s131 = sphi 0, %s131
    %s133 = sphi 0, %s131
    %s134 = sphi 0, %s133
    %s148 = sphi 0, %s134
    %s152 = sphi 0, %s152
    %s154 = sphi 0, %s152
    %s155 = sphi 0, %s154
    %s169 = sphi 0, %s155
    %s173 = sphi 0, %s173
    %s175 = sphi 0, %s173
    %s176 = sphi 0, %s175
    %s190 = sphi 0, %s176
    %s194 = sphi 0, %s194
    %s196 = sphi 0, %s194
    %s197 = sphi 0, %s196
    %s211 = sphi 0, %s197
    %s215 = sphi 0, %s215
    %s217 = sphi 0, %s215
    %s218 = sphi 0, %s217
    %s232 = sphi 0, %s218
    %s236 = sphi 0, %s236
    %s238 = sphi 0, %s236
    %s239 = sphi 0, %s238
    %s253 = sphi 0, %s239
    %s257 = sphi 0, %s257
    %s259 = sphi 0, %s257
    %s260 = sphi 0, %s259
    %s274 = sphi 0, %s260
    %s278 = sphi 0, %s278
    %s280 = sphi 0, %s278
    %s281 = sphi 0, %s280
    %s295 = sphi 0, %s281
    %s299 = sphi 0, %s299
    %s301 = sphi 0, %s299
    %s302 = sphi 0, %s301
    %s316 = sphi 0, %s302
    %s322 = sphi 0, %s324
    %s325 = sphi 0, %s322
    %s326 = sphi 0, %s325
    %s342 = sphi 0, %s326
  $region4: #{transformer_decoder_layer.1} parent=0 // loop_header_branch
    %22 = sbr.rel (%p20) target = $region8
  $region5: #{transformer_decoder_layer.1} parent=0 // loop_body
    %s24 = ssub.s32 %s19, 1
    %s25 = ssub.s32 %s19, 2
    %s26 = sadd.s32 %s19, 1
    %s27 = ssub.s32 %s19, %s26
    %p28 = scmp.eq.s32.totalorder %s27, 0
    %s30 = sadd.s32 %s29, 1
    %s31 = scalar_select %p28, %s29, %s30
    %p34 = pneg %p28
    %p35 = scmp.eq.s32.totalorder %s19, 1
    %p36 = por %p34, %p35
    %p37 = scmp.ne.s32.totalorder %s29, %s32
    %p38 = scmp.eq.s32.totalorder %s19, 0
    %p39 = por %p37, %p38
    %p40 = scmp.ne.s32.totalorder %s29, %s32
    %p41 = scmp.eq.s32.totalorder %s24, 1
    %p42 = por %p40, %p41
    %p43 = scmp.ne.s32.totalorder %s32, %s33
    %p44 = scmp.eq.s32.totalorder %s24, 0
    %p45 = por %p43, %p44
    %p46 = scmp.ne.s32.totalorder %s32, %s33
    %p47 = scmp.eq.s32.totalorder %s25, 1
    %p48 = por %p46, %p47
    %p50 = scmp.ne.s32.totalorder %s33, %s49
    %p51 = scmp.eq.s32.totalorder %s25, 0
    %p52 = por %p50, %p51
    %s53 = ssub.s32 %s19, %s26
    %p54 = scmp.eq.s32.totalorder %s53, 0
    %s56 = sadd.s32 %s55, 1
    %s57 = scalar_select %p54, %s55, %s56
    %p60 = pneg %p54
    %p61 = scmp.eq.s32.totalorder %s19, 1
    %p62 = por %p60, %p61
    %p63 = scmp.ne.s32.totalorder %s55, %s58
    %p64 = scmp.eq.s32.totalorder %s19, 0
    %p65 = por %p63, %p64
    %p66 = scmp.ne.s32.totalorder %s55, %s58
    %p67 = scmp.eq.s32.totalorder %s24, 1
    %p68 = por %p66, %p67
    %p69 = scmp.ne.s32.totalorder %s58, %s59
    %p70 = scmp.eq.s32.totalorder %s24, 0
    %p71 = por %p69, %p70
    %p72 = scmp.ne.s32.totalorder %s58, %s59
    %p73 = scmp.eq.s32.totalorder %s25, 1
    %p74 = por %p72, %p73
    %p76 = scmp.ne.s32.totalorder %s59, %s75
    %p77 = scmp.eq.s32.totalorder %s25, 0
    %p78 = por %p76, %p77
    %s79 = ssub.s32 %s19, %s26
    %p80 = scmp.eq.s32.totalorder %s79, 0
    %s82 = sadd.s32 %s81, 1
    %s83 = scalar_select %p80, %s81, %s82
    %p86 = pneg %p80
    %p87 = scmp.eq.s32.totalorder %s19, 1
    %p88 = por %p86, %p87
    %p89 = scmp.ne.s32.totalorder %s81, %s84
    %p90 = scmp.eq.s32.totalorder %s19, 0
    %p91 = por %p89, %p90
    %p92 = scmp.ne.s32.totalorder %s81, %s84
    %p93 = scmp.eq.s32.totalorder %s24, 1
    %p94 = por %p92, %p93
    %p95 = scmp.ne.s32.totalorder %s84, %s85
    %p96 = scmp.eq.s32.totalorder %s24, 0
    %p97 = por %p95, %p96
    %p98 = scmp.ne.s32.totalorder %s84, %s85
    %p99 = scmp.eq.s32.totalorder %s25, 1
    %p100 = por %p98, %p99
    %p102 = scmp.ne.s32.totalorder %s85, %s101
    %p103 = scmp.eq.s32.totalorder %s25, 0
    %p104 = por %p102, %p103
    %s105 = ssub.s32 %s19, %s26
    %p106 = scmp.eq.s32.totalorder %s105, 0
    %s108 = sadd.s32 %s107, 1
    %s109 = scalar_select %p106, %s107, %s108
    %p112 = pneg %p106
    %p113 = scmp.eq.s32.totalorder %s19, 1
    %p114 = por %p112, %p113
    %p115 = scmp.ne.s32.totalorder %s107, %s110
    %p116 = scmp.eq.s32.totalorder %s19, 0
    %p117 = por %p115, %p116
    %p118 = scmp.ne.s32.totalorder %s107, %s110
    %p119 = scmp.eq.s32.totalorder %s24, 1
    %p120 = por %p118, %p119
    %p121 = scmp.ne.s32.totalorder %s110, %s111
    %p122 = scmp.eq.s32.totalorder %s24, 0
    %p123 = por %p121, %p122
    %p124 = scmp.ne.s32.totalorder %s110, %s111
    %p125 = scmp.eq.s32.totalorder %s25, 1
    %p126 = por %p124, %p125
    %p128 = scmp.ne.s32.totalorder %s111, %s127
    %p129 = scmp.eq.s32.totalorder %s25, 0
    %p130 = por %p128, %p129
    %s132 = sadd.s32 %s131, 1
    %p135 = scmp.eq.s32.totalorder %s19, 1
    %p136 = scmp.ne.s32.totalorder %s131, %s133
    %p137 = scmp.eq.s32.totalorder %s19, 0
    %p138 = por %p136, %p137
    %p139 = scmp.ne.s32.totalorder %s131, %s133
    %p140 = scmp.eq.s32.totalorder %s24, 1
    %p141 = por %p139, %p140
    %p142 = scmp.ne.s32.totalorder %s133, %s134
    %p143 = scmp.eq.s32.totalorder %s24, 0
    %p144 = por %p142, %p143
    %p145 = scmp.ne.s32.totalorder %s133, %s134
    %p146 = scmp.eq.s32.totalorder %s25, 1
    %p147 = por %p145, %p146
    %p149 = scmp.ne.s32.totalorder %s134, %s148
    %p150 = scmp.eq.s32.totalorder %s25, 0
    %p151 = por %p149, %p150
    %s153 = sadd.s32 %s152, 1
    %p156 = scmp.eq.s32.totalorder %s19, 1
    %p157 = scmp.ne.s32.totalorder %s152, %s154
    %p158 = scmp.eq.s32.totalorder %s19, 0
    %p159 = por %p157, %p158
    %p160 = scmp.ne.s32.totalorder %s152, %s154
    %p161 = scmp.eq.s32.totalorder %s24, 1
    %p162 = por %p160, %p161
    %p163 = scmp.ne.s32.totalorder %s154, %s155
    %p164 = scmp.eq.s32.totalorder %s24, 0
    %p165 = por %p163, %p164
    %p166 = scmp.ne.s32.totalorder %s154, %s155
    %p167 = scmp.eq.s32.totalorder %s25, 1
    %p168 = por %p166, %p167
    %p170 = scmp.ne.s32.totalorder %s155, %s169
    %p171 = scmp.eq.s32.totalorder %s25, 0
    %p172 = por %p170, %p171
    %s174 = sadd.s32 %s173, 1
    %p177 = scmp.eq.s32.totalorder %s19, 1
    %p178 = scmp.ne.s32.totalorder %s173, %s175
    %p179 = scmp.eq.s32.totalorder %s19, 0
    %p180 = por %p178, %p179
    %p181 = scmp.ne.s32.totalorder %s173, %s175
    %p182 = scmp.eq.s32.totalorder %s24, 1
    %p183 = por %p181, %p182
    %p184 = scmp.ne.s32.totalorder %s175, %s176
    %p185 = scmp.eq.s32.totalorder %s24, 0
    %p186 = por %p184, %p185
    %p187 = scmp.ne.s32.totalorder %s175, %s176
    %p188 = scmp.eq.s32.totalorder %s25, 1
    %p189 = por %p187, %p188
    %p191 = scmp.ne.s32.totalorder %s176, %s190
    %p192 = scmp.eq.s32.totalorder %s25, 0
    %p193 = por %p191, %p192
    %s195 = sadd.s32 %s194, 1
    %p198 = scmp.eq.s32.totalorder %s19, 1
    %p199 = scmp.ne.s32.totalorder %s194, %s196
    %p200 = scmp.eq.s32.totalorder %s19, 0
    %p201 = por %p199, %p200
    %p202 = scmp.ne.s32.totalorder %s194, %s196
    %p203 = scmp.eq.s32.totalorder %s24, 1
    %p204 = por %p202, %p203
    %p205 = scmp.ne.s32.totalorder %s196, %s197
    %p206 = scmp.eq.s32.totalorder %s24, 0
    %p207 = por %p205, %p206
    %p208 = scmp.ne.s32.totalorder %s196, %s197
    %p209 = scmp.eq.s32.totalorder %s25, 1
    %p210 = por %p208, %p209
    %p212 = scmp.ne.s32.totalorder %s197, %s211
    %p213 = scmp.eq.s32.totalorder %s25, 0
    %p214 = por %p212, %p213
    %s216 = sadd.s32 %s215, 1
    %p219 = scmp.eq.s32.totalorder %s19, 1
    %p220 = scmp.ne.s32.totalorder %s215, %s217
    %p221 = scmp.eq.s32.totalorder %s19, 0
    %p222 = por %p220, %p221
    %p223 = scmp.ne.s32.totalorder %s215, %s217
    %p224 = scmp.eq.s32.totalorder %s24, 1
    %p225 = por %p223, %p224
    %p226 = scmp.ne.s32.totalorder %s217, %s218
    %p227 = scmp.eq.s32.totalorder %s24, 0
    %p228 = por %p226, %p227
    %p229 = scmp.ne.s32.totalorder %s217, %s218
    %p230 = scmp.eq.s32.totalorder %s25, 1
    %p231 = por %p229, %p230
    %p233 = scmp.ne.s32.totalorder %s218, %s232
    %p234 = scmp.eq.s32.totalorder %s25, 0
    %p235 = por %p233, %p234
    %s237 = sadd.s32 %s236, 1
    %p240 = scmp.eq.s32.totalorder %s19, 1
    %p241 = scmp.ne.s32.totalorder %s236, %s238
    %p242 = scmp.eq.s32.totalorder %s19, 0
    %p243 = por %p241, %p242
    %p244 = scmp.ne.s32.totalorder %s236, %s238
    %p245 = scmp.eq.s32.totalorder %s24, 1
    %p246 = por %p244, %p245
    %p247 = scmp.ne.s32.totalorder %s238, %s239
    %p248 = scmp.eq.s32.totalorder %s24, 0
    %p249 = por %p247, %p248
    %p250 = scmp.ne.s32.totalorder %s238, %s239
    %p251 = scmp.eq.s32.totalorder %s25, 1
    %p252 = por %p250, %p251
    %p254 = scmp.ne.s32.totalorder %s239, %s253
    %p255 = scmp.eq.s32.totalorder %s25, 0
    %p256 = por %p254, %p255
    %s258 = sadd.s32 %s257, 1
    %p261 = scmp.eq.s32.totalorder %s19, 1
    %p262 = scmp.ne.s32.totalorder %s257, %s259
    %p263 = scmp.eq.s32.totalorder %s19, 0
    %p264 = por %p262, %p263
    %p265 = scmp.ne.s32.totalorder %s257, %s259
    %p266 = scmp.eq.s32.totalorder %s24, 1
    %p267 = por %p265, %p266
    %p268 = scmp.ne.s32.totalorder %s259, %s260
    %p269 = scmp.eq.s32.totalorder %s24, 0
    %p270 = por %p268, %p269
    %p271 = scmp.ne.s32.totalorder %s259, %s260
    %p272 = scmp.eq.s32.totalorder %s25, 1
    %p273 = por %p271, %p272
    %p275 = scmp.ne.s32.totalorder %s260, %s274
    %p276 = scmp.eq.s32.totalorder %s25, 0
    %p277 = por %p275, %p276
    %s279 = sadd.s32 %s278, 1
    %p282 = scmp.eq.s32.totalorder %s19, 1
    %p283 = scmp.ne.s32.totalorder %s278, %s280
    %p284 = scmp.eq.s32.totalorder %s19, 0
    %p285 = por %p283, %p284
    %p286 = scmp.ne.s32.totalorder %s278, %s280
    %p287 = scmp.eq.s32.totalorder %s24, 1
    %p288 = por %p286, %p287
    %p289 = scmp.ne.s32.totalorder %s280, %s281
    %p290 = scmp.eq.s32.totalorder %s24, 0
    %p291 = por %p289, %p290
    %p292 = scmp.ne.s32.totalorder %s280, %s281
    %p293 = scmp.eq.s32.totalorder %s25, 1
    %p294 = por %p292, %p293
    %p296 = scmp.ne.s32.totalorder %s281, %s295
    %p297 = scmp.eq.s32.totalorder %s25, 0
    %p298 = por %p296, %p297
    %s300 = sadd.s32 %s299, 1
    %p303 = scmp.eq.s32.totalorder %s19, 1
    %p304 = scmp.ne.s32.totalorder %s299, %s301
    %p305 = scmp.eq.s32.totalorder %s19, 0
    %p306 = por %p304, %p305
    %p307 = scmp.ne.s32.totalorder %s299, %s301
    %p308 = scmp.eq.s32.totalorder %s24, 1
    %p309 = por %p307, %p308
    %p310 = scmp.ne.s32.totalorder %s301, %s302
    %p311 = scmp.eq.s32.totalorder %s24, 0
    %p312 = por %p310, %p311
    %p313 = scmp.ne.s32.totalorder %s301, %s302
    %p314 = scmp.eq.s32.totalorder %s25, 1
    %p315 = por %p313, %p314
    %p317 = scmp.ne.s32.totalorder %s302, %s316
    %p318 = scmp.eq.s32.totalorder %s25, 0
    %p319 = por %p317, %p318
    %s320 = ssub.s32 %s19, %s26
    %p321 = scmp.eq.s32.totalorder %s320, 0
    %s323 = sadd.s32 %s322, 1
    %s324 = scalar_select %p321, %s322, %s323
    %p327 = pneg %p321
    %p328 = scmp.eq.s32.totalorder %s19, 1
    %p329 = por %p327, %p328
    %p330 = scmp.ne.s32.totalorder %s322, %s325
    %p331 = scmp.eq.s32.totalorder %s19, 0
    %p332 = por %p330, %p331
    %p333 = scmp.ne.s32.totalorder %s322, %s325
    %p334 = scmp.eq.s32.totalorder %s24, 1
    %p335 = por %p333, %p334
    %p336 = scmp.ne.s32.totalorder %s325, %s326
    %p337 = scmp.eq.s32.totalorder %s24, 0
    %p338 = por %p336, %p337
    %p339 = scmp.ne.s32.totalorder %s325, %s326
    %p340 = scmp.eq.s32.totalorder %s25, 1
    %p341 = por %p339, %p340
    %p343 = scmp.ne.s32.totalorder %s326, %s342
    %p344 = scmp.eq.s32.totalorder %s25, 0
    %p345 = por %p343, %p344
    %p346 = scmp.le.s32.totalorder 1, %s19
    %p347 = scmp.lt.s32.totalorder %s19, 3
    %p348 = pnand %p346, %p347
    %p349 = pneg %p348
    // Predicated region
    $region9: #{transformer_decoder_layer.1} parent=5 // pred_check
      _
    $region10: #{transformer_decoder_layer.1} parent=5 // pred_check_branch
      %351 = sbr.rel (%p348) target = $region12
    $region11: #{transformer_decoder_layer.1} parent=5 // pred_region
      %s352 = ssub.s32 %s19, 1
      // Predicated region
      $region13: #{transformer_decoder_layer.1} parent=11 // pred_check
        %p353 = pneg %p144
      $region14: #{transformer_decoder_layer.1} parent=11 // pred_check_branch
        %355 = sbr.rel (%p353) target = $region16
      $region15: #{transformer_decoder_layer.1} parent=11 // pred_region
        _
      $region16: #{transformer_decoder_layer.1} parent=11 // pred_fallthru
        _
      // Predicated region
      $region17: #{transformer_decoder_layer.1} parent=11 // pred_check
        %p356 = pneg %p165
      $region18: #{transformer_decoder_layer.1} parent=11 // pred_check_branch
        %358 = sbr.rel (%p356) target = $region20
      $region19: #{transformer_decoder_layer.1} parent=11 // pred_region
        _
      $region20: #{transformer_decoder_layer.1} parent=11 // pred_fallthru
        _
      // Predicated region
      $region21: #{transformer_decoder_layer.1} parent=11 // pred_check
        %p359 = pneg %p186
      $region22: #{transformer_decoder_layer.1} parent=11 // pred_check_branch
        %361 = sbr.rel (%p359) target = $region24
      $region23: #{transformer_decoder_layer.1} parent=11 // pred_region
        _
      $region24: #{transformer_decoder_layer.1} parent=11 // pred_fallthru
        _
      // Predicated region
      $region25: #{transformer_decoder_layer.1} parent=11 // pred_check
        %p362 = pneg %p207
      $region26: #{transformer_decoder_layer.1} parent=11 // pred_check_branch
        %364 = sbr.rel (%p362) target = $region28
      $region27: #{transformer_decoder_layer.1} parent=11 // pred_region
        _
      $region28: #{transformer_decoder_layer.1} parent=11 // pred_fallthru
        _
      // Predicated region
      $region29: #{transformer_decoder_layer.1} parent=11 // pred_check
        %p365 = pneg %p228
      $region30: #{transformer_decoder_layer.1} parent=11 // pred_check_branch
        %367 = sbr.rel (%p365) target = $region32
      $region31: #{transformer_decoder_layer.1} parent=11 // pred_region
        _
      $region32: #{transformer_decoder_layer.1} parent=11 // pred_fallthru
        _
      // Predicated region
      $region33: #{transformer_decoder_layer.1} parent=11 // pred_check
        %p368 = pneg %p249
      $region34: #{transformer_decoder_layer.1} parent=11 // pred_check_branch
        %370 = sbr.rel (%p368) target = $region36
      $region35: #{transformer_decoder_layer.1} parent=11 // pred_region
        _
      $region36: #{transformer_decoder_layer.1} parent=11 // pred_fallthru
        _
      // Predicated region
      $region37: #{transformer_decoder_layer.1} parent=11 // pred_check
        %p371 = pneg %p270
      $region38: #{transformer_decoder_layer.1} parent=11 // pred_check_branch
        %373 = sbr.rel (%p371) target = $region40
      $region39: #{transformer_decoder_layer.1} parent=11 // pred_region
        _
      $region40: #{transformer_decoder_layer.1} parent=11 // pred_fallthru
        _
      // Predicated region
      $region41: #{transformer_decoder_layer.1} parent=11 // pred_check
        %p374 = pneg %p291
      $region42: #{transformer_decoder_layer.1} parent=11 // pred_check_branch
        %376 = sbr.rel (%p374) target = $region44
      $region43: #{transformer_decoder_layer.1} parent=11 // pred_region
        _
      $region44: #{transformer_decoder_layer.1} parent=11 // pred_fallthru
        _
      // Predicated region
      $region45: #{transformer_decoder_layer.1} parent=11 // pred_check
        %p377 = pneg %p312
      $region46: #{transformer_decoder_layer.1} parent=11 // pred_check_branch
        %379 = sbr.rel (%p377) target = $region48
      $region47: #{transformer_decoder_layer.1} parent=11 // pred_region
        _
      $region48: #{transformer_decoder_layer.1} parent=11 // pred_fallthru
        _
    $region12: #{transformer_decoder_layer.1} parent=5 // pred_fallthru
      _
    %p380 = scmp.lt.s32.totalorder %s19, 2
    // Predicated region
    $region49: #{transformer_decoder_layer.1} parent=5 // pred_check
      %p381 = pneg %p380
    $region50: #{transformer_decoder_layer.1} parent=5 // pred_check_branch
      %383 = sbr.rel (%p381) target = $region52
    $region51: #{transformer_decoder_layer.1} parent=5 // pred_region
      // Predicated region
      $region53: #{transformer_decoder_layer.1} parent=51 // pred_check
        %p384 = pneg %p39
      $region54: #{transformer_decoder_layer.1} parent=51 // pred_check_branch
        %386 = sbr.rel (%p384) target = $region56
      $region55: #{transformer_decoder_layer.1} parent=51 // pred_region
        %p387 = scmp.lt.s32.totalorder %s19, 1
        %s388 = scalar_select %p387, %s19, 1
        %s389 = smul.addr %s388, 8
        %s390 = scalar_lea.vmem %s0, %s389
      $region56: #{transformer_decoder_layer.1} parent=51 // pred_fallthru
        _
      // Predicated region
      $region57: #{transformer_decoder_layer.1} parent=51 // pred_check
        %p391 = pneg %p65
      $region58: #{transformer_decoder_layer.1} parent=51 // pred_check_branch
        %393 = sbr.rel (%p391) target = $region60
      $region59: #{transformer_decoder_layer.1} parent=51 // pred_region
        %p394 = scmp.lt.s32.totalorder %s19, 1
        %s395 = scalar_select %p394, %s19, 1
        %s396 = smul.addr %s395, 2
        %s397 = smul.addr %s396, 8
        %s398 = scalar_lea.vmem %s1, %s397
      $region60: #{transformer_decoder_layer.1} parent=51 // pred_fallthru
        _
      // Predicated region
      $region61: #{transformer_decoder_layer.1} parent=51 // pred_check
        %p399 = pneg %p91
      $region62: #{transformer_decoder_layer.1} parent=51 // pred_check_branch
        %401 = sbr.rel (%p399) target = $region64
      $region63: #{transformer_decoder_layer.1} parent=51 // pred_region
        %p402 = scmp.lt.s32.totalorder %s19, 1
        %s403 = scalar_select %p402, %s19, 1
        %s404 = smul.addr %s403, 8
        %s405 = scalar_lea.vmem %s2, %s404
      $region64: #{transformer_decoder_layer.1} parent=51 // pred_fallthru
        _
      // Predicated region
      $region65: #{transformer_decoder_layer.1} parent=51 // pred_check
        %p406 = pneg %p117
      $region66: #{transformer_decoder_layer.1} parent=51 // pred_check_branch
        %408 = sbr.rel (%p406) target = $region68
      $region67: #{transformer_decoder_layer.1} parent=51 // pred_region
        %p409 = scmp.lt.s32.totalorder %s19, 1
        %s410 = scalar_select %p409, %s19, 1
        %s411 = smul.addr %s410, 2
        %s412 = smul.addr %s411, 8
        %s413 = scalar_lea.vmem %s3, %s412
      $region68: #{transformer_decoder_layer.1} parent=51 // pred_fallthru
        _
    $region52: #{transformer_decoder_layer.1} parent=5 // pred_fallthru
      _
    %p414 = scmp.le.s32.totalorder 1, %s19
    %p415 = scmp.lt.s32.totalorder %s19, 3
    %p416 = pnand %p414, %p415
    %p417 = pneg %p416
    // Predicated region
    $region69: #{transformer_decoder_layer.1} parent=5 // pred_check
      _
    $region70: #{transformer_decoder_layer.1} parent=5 // pred_check_branch
      %419 = sbr.rel (%p416) target = $region72
    $region71: #{transformer_decoder_layer.1} parent=5 // pred_region
      %s420 = ssub.s32 %s19, 1
      %p421 = scmp.lt.s32.totalorder %s24, 1
      %s422 = scalar_select %p421, %s24, 1
      %s423 = smul.addr %s422, 8
      %s424 = scalar_lea.vmem %s0, %s423
      %p425 = pneg %p45
      %p426 = pneg %p42
      %p427 = scmp.lt.s32.totalorder %s24, 1
      %s428 = scalar_select %p427, %s24, 1
      %s429 = smul.addr %s428, 2
      %s430 = smul.addr %s429, 8
      %s431 = scalar_lea.vmem %s1, %s430
      %p432 = pneg %p71
      %p433 = pneg %p68
      %p434 = scmp.lt.s32.totalorder %s24, 1
      %s435 = scalar_select %p434, %s24, 1
      %s436 = smul.addr %s435, 8
      %s437 = scalar_lea.vmem %s2, %s436
      %p438 = pneg %p97
      %p439 = pneg %p94
      %p440 = scmp.lt.s32.totalorder %s24, 1
      %s441 = scalar_select %p440, %s24, 1
      %s442 = smul.addr %s441, 2
      %s443 = smul.addr %s442, 8
      %s444 = scalar_lea.vmem %s3, %s443
      %p445 = pneg %p123
      %p446 = pneg %p120
      %p447 = pneg %p144
      %p448 = pneg %p141
      %p449 = pneg %p165
      %p450 = pneg %p162
      %p451 = pneg %p186
      %p452 = pneg %p183
      %p453 = pneg %p207
      %p454 = pneg %p204
      %p455 = pneg %p228
      %p456 = pneg %p225
      %p457 = pneg %p249
      %p458 = pneg %p246
      %p459 = pneg %p270
      %p460 = pneg %p267
      %p461 = pneg %p291
      %p462 = pneg %p288
      %p463 = pneg %p312
      %p464 = pneg %p309
      %p465 = pneg %p338
      %p466 = pneg %p335
      %p467 = scmp.lt.s32.totalorder %s24, 1
      %s468 = scalar_select %p467, %s24, 1
      %s469 = smul.addr %s468, 8
      %s470 = scalar_lea.vmem %s13, %s469
      %p471 = scmp.lt.s32.totalorder %s24, 1
      %s472 = scalar_select %p471, %s24, 1
      %s473 = smul.addr %s472, 8
      %s474 = scalar_lea.vmem %s0, %s473
      %p475 = scmp.lt.s32.totalorder %s24, 1
      %s476 = scalar_select %p475, %s24, 1
      %s477 = smul.addr %s476, 2
      %s478 = smul.addr %s477, 8
      %s479 = scalar_lea.vmem %s1, %s478
      %p480 = scmp.lt.s32.totalorder %s24, 1
      %s481 = scalar_select %p480, %s24, 1
      %s482 = smul.addr %s481, 8
      %s483 = scalar_lea.vmem %s2, %s482
      %p484 = scmp.lt.s32.totalorder %s24, 1
      %s485 = scalar_select %p484, %s24, 1
      %s486 = smul.addr %s485, 2
      %s487 = smul.addr %s486, 8
      %s488 = scalar_lea.vmem %s3, %s487
      %p489 = scmp.lt.s32.totalorder %s24, 1
      %s490 = scalar_select %p489, %s24, 1
      %s491 = smul.addr %s490, 8
      %s492 = scalar_lea.vmem %s13, %s491
      %v493 = vld [vmem:[%s474] sm:$0xff]
      %v494 = vld [vmem:[%s479] sm:$0xff]
      %v495 = vld [vmem:[%s479 + $0x8] sm:$0xff]
      %v496 = vld [vmem:[%s483] sm:$0xff]
      %v497 = vld [vmem:[%s488] sm:$0xff]
      %v498 = vld [vmem:[%s488 + $0x8] sm:$0xff]
      %v499 = vld [vmem:[%s12] sm:$0xff]
      %v500 = vld [vmem:[%s12 + $0x8] sm:$0x1]
      %v501 = vld [vmem:[%s8] sm:$0x1]
      %v502 = vld [vmem:[%s8 + $0x1] sm:$0x1]
      %v503 = vadd.f32 %v493, %v496
      %v504 = vld [vmem:[%s4] sm:$0xff]
      %v505 = vld [vmem:[%s4 + $0x8] sm:$0xff]
      %v506 = vld [vmem:[%s4 + $0x10] sm:$0xff]
      %v507 = vld [vmem:[%s4 + $0x18] sm:$0xff]
      %v508 = vld [vmem:[%s5] sm:$0xff]
      %v509 = vld [vmem:[%s5 + $0x8] sm:$0xff]
      %v510 = vld [vmem:[%s5 + $0x10] sm:$0xff]
      %v511 = vld [vmem:[%s5 + $0x18] sm:$0xff]
      %v512 = vlaneseq
      %v513 = vshrl.u32 %v512, 7
      %v514 = vsub.s32 0, %v513
      %v515 = vrot.slane %v501, %v514
      %vm516 = vcmask 261120
      %v518 = vsel %vm516, %v503, 0
      %520 = vmatprep.subr.mxu0 0.0
      %521 = vmatpush1.msra.mxu0 %v504
      %522 = vmatprep.subr.mxu0 0.0
      %523 = vmatpush1.msra.mxu0 %v505
      %524 = vmatprep.subr.mxu0 0.0
      %525 = vmatpush1.msra.mxu0 %v506
      %526 = vmatprep.subr.mxu0 0.0
      %527 = vmatpush1.msra.mxu0 %v507
      %528 = vmatprep.subr.mxu0 0.0
      %529 = vmatpush1.msra.mxu0 0.0
      %530 = vmatprep.subr.mxu0 0.0
      %531 = vmatpush1.msra.mxu0 0.0
      %532 = vmatprep.subr.mxu0 0.0
      %533 = vmatpush1.msra.mxu0 0.0
      %534 = vmatprep.subr.mxu0 0.0
      %535 = vmatpush1.msra.mxu0 0.0
      %536 = vmatprep.subr.mxu0 0.0
      %537 = vmatpush1.msra.mxu0 0.0
      %538 = vmatprep.subr.mxu0 0.0
      %539 = vmatpush1.msra.mxu0 0.0
      %540 = vmatprep.subr.mxu0 0.0
      %541 = vmatpush1.msra.mxu0 0.0
      %542 = vmatprep.subr.mxu0 0.0
      %543 = vmatpush1.msra.mxu0 0.0
      %544 = vmatprep.subr.mxu0 0.0
      %545 = vmatpush1.msra.mxu0 0.0
      %546 = vmatprep.subr.mxu0 0.0
      %547 = vmatpush1.msra.mxu0 0.0
      %548 = vmatprep.subr.mxu0 0.0
      %549 = vmatpush1.msra.mxu0 0.0
      %550 = vmatprep.subr.mxu0 0.0
      %551 = vmatpush1.msra.mxu0 0.0
      %552 = vmatprep.subr.mxu0 0.0
      %553 = vmatpush1.msra.mxu0 0.0
      %554 = vmatprep.subr.mxu0 0.0
      %555 = vmatpush1.msra.mxu0 0.0
      %556 = vmatprep.subr.mxu0 0.0
      %557 = vmatpush1.msra.mxu0 0.0
      %558 = vmatprep.subr.mxu0 0.0
      %559 = vmatpush1.msra.mxu0 0.0
      %560 = vmatprep.subr.mxu0 0.0
      %561 = vmatpush1.msra.mxu0 0.0
      %562 = vmatprep.subr.mxu0 0.0
      %563 = vmatpush1.msra.mxu0 0.0
      %564 = vmatprep.subr.mxu0 0.0
      %565 = vmatpush1.msra.mxu0 0.0
      %566 = vmatprep.subr.mxu0 0.0
      %567 = vmatpush1.msra.mxu0 0.0
      %568 = vmatprep.subr.mxu0 0.0
      %569 = vmatpush1.msra.mxu0 0.0
      %570 = vmatprep.subr.mxu0 0.0
      %571 = vmatpush1.msra.mxu0 0.0
      %572 = vmatprep.subr.mxu0 0.0
      %573 = vmatpush1.msra.mxu0 0.0
      %574 = vmatprep.subr.mxu0 0.0
      %575 = vmatpush1.msra.mxu0 0.0
      %576 = vmatprep.subr.mxu0 0.0
      %577 = vmatpush1.msra.mxu0 0.0
      %578 = vmatprep.subr.mxu0 0.0
      %579 = vmatpush1.msra.mxu0 0.0
      %580 = vmatprep.subr.mxu0 0.0
      %581 = vmatpush1.msra.mxu0 0.0
      %582 = vmatprep.subr.mxu0 0.0
      %583 = vmatpush1.msra.mxu0 0.0
      %584 = vmatprep.mubr.f32.mxu0 0.0
      %585 = vmatmul.mubr.f32.gmra.mrb[0].mxu0 %v518
      %v586 = vpop.f32.mrb[0].mxu0
      %v587 = vadd.f32 %v515, %v586
      %v588 = vpop.f32.mrb[0].mxu0
      %589 = vdwg.mxu0
      %594 = vrot.lane.b32.xlu0 %v504, 96
      %v595 = vpop.permute.xlu0 %594
      %596 = vrot.lane.b32.xlu0 %v505, 96
      %v597 = vpop.permute.xlu0 %596
      %598 = vrot.lane.b32.xlu0 %v506, 96
      %v599 = vpop.permute.xlu0 %598
      %600 = vrot.lane.b32.xlu0 %v507, 96
      %v601 = vpop.permute.xlu0 %600
      %607 = vrot.lane.b32.xlu0 %v515, 96
      %v608 = vpop.permute.xlu0 %607
      %610 = vmatprep.subr.mxu0 0.0
      %611 = vmatpush1.msra.mxu0 %v595
      %612 = vmatprep.subr.mxu0 0.0
      %613 = vmatpush1.msra.mxu0 %v597
      %614 = vmatprep.subr.mxu0 0.0
      %615 = vmatpush1.msra.mxu0 %v599
      %616 = vmatprep.subr.mxu0 0.0
      %617 = vmatpush1.msra.mxu0 %v601
      %618 = vmatprep.subr.mxu0 0.0
      %619 = vmatpush1.msra.mxu0 0.0
      %620 = vmatprep.subr.mxu0 0.0
      %621 = vmatpush1.msra.mxu0 0.0
      %622 = vmatprep.subr.mxu0 0.0
      %623 = vmatpush1.msra.mxu0 0.0
      %624 = vmatprep.subr.mxu0 0.0
      %625 = vmatpush1.msra.mxu0 0.0
      %626 = vmatprep.subr.mxu0 0.0
      %627 = vmatpush1.msra.mxu0 0.0
      %628 = vmatprep.subr.mxu0 0.0
      %629 = vmatpush1.msra.mxu0 0.0
      %630 = vmatprep.subr.mxu0 0.0
      %631 = vmatpush1.msra.mxu0 0.0
      %632 = vmatprep.subr.mxu0 0.0
      %633 = vmatpush1.msra.mxu0 0.0
      %634 = vmatprep.subr.mxu0 0.0
      %635 = vmatpush1.msra.mxu0 0.0
      %636 = vmatprep.subr.mxu0 0.0
      %637 = vmatpush1.msra.mxu0 0.0
      %638 = vmatprep.subr.mxu0 0.0
      %639 = vmatpush1.msra.mxu0 0.0
      %640 = vmatprep.subr.mxu0 0.0
      %641 = vmatpush1.msra.mxu0 0.0
      %642 = vmatprep.subr.mxu0 0.0
      %643 = vmatpush1.msra.mxu0 0.0
      %644 = vmatprep.subr.mxu0 0.0
      %645 = vmatpush1.msra.mxu0 0.0
      %646 = vmatprep.subr.mxu0 0.0
      %647 = vmatpush1.msra.mxu0 0.0
      %648 = vmatprep.subr.mxu0 0.0
      %649 = vmatpush1.msra.mxu0 0.0
      %650 = vmatprep.subr.mxu0 0.0
      %651 = vmatpush1.msra.mxu0 0.0
      %652 = vmatprep.subr.mxu0 0.0
      %653 = vmatpush1.msra.mxu0 0.0
      %654 = vmatprep.subr.mxu0 0.0
      %655 = vmatpush1.msra.mxu0 0.0
      %656 = vmatprep.subr.mxu0 0.0
      %657 = vmatpush1.msra.mxu0 0.0
      %658 = vmatprep.subr.mxu0 0.0
      %659 = vmatpush1.msra.mxu0 0.0
      %660 = vmatprep.subr.mxu0 0.0
      %661 = vmatpush1.msra.mxu0 0.0
      %662 = vmatprep.subr.mxu0 0.0
      %663 = vmatpush1.msra.mxu0 0.0
      %664 = vmatprep.subr.mxu0 0.0
      %665 = vmatpush1.msra.mxu0 0.0
      %666 = vmatprep.subr.mxu0 0.0
      %667 = vmatpush1.msra.mxu0 0.0
      %668 = vmatprep.subr.mxu0 0.0
      %669 = vmatpush1.msra.mxu0 0.0
      %670 = vmatprep.subr.mxu0 0.0
      %671 = vmatpush1.msra.mxu0 0.0
      %672 = vmatprep.subr.mxu0 0.0
      %673 = vmatpush1.msra.mxu0 0.0
      %674 = vmatprep.mubr.f32.mxu0 0.0
      %675 = vmatmul.mubr.f32.gmra.mrb[0].mxu0 %v518
      %v676 = vpop.f32.mrb[0].mxu0
      %v677 = vadd.f32 %v608, %v676
      %v678 = vpop.f32.mrb[0].mxu0
      %679 = vdwg.mxu0
      %680 = vrot.lane.b32.xlu0 %v504, 64
      %v681 = vpop.permute.xlu0 %680
      %682 = vrot.lane.b32.xlu0 %v505, 64
      %v683 = vpop.permute.xlu0 %682
      %684 = vrot.lane.b32.xlu0 %v506, 64
      %v685 = vpop.permute.xlu0 %684
      %686 = vrot.lane.b32.xlu0 %v507, 64
      %v687 = vpop.permute.xlu0 %686
      %692 = vrot.lane.b32.xlu0 %v515, 64
      %v693 = vpop.permute.xlu0 %692
      %v696 = vsel %vm516, %v493, 0
      %698 = vmatprep.subr.mxu0 0.0
      %699 = vmatpush1.msra.mxu0 %v681
      %700 = vmatprep.subr.mxu0 0.0
      %701 = vmatpush1.msra.mxu0 %v683
      %702 = vmatprep.subr.mxu0 0.0
      %703 = vmatpush1.msra.mxu0 %v685
      %704 = vmatprep.subr.mxu0 0.0
      %705 = vmatpush1.msra.mxu0 %v687
      %706 = vmatprep.subr.mxu0 0.0
      %707 = vmatpush1.msra.mxu0 0.0
      %708 = vmatprep.subr.mxu0 0.0
      %709 = vmatpush1.msra.mxu0 0.0
      %710 = vmatprep.subr.mxu0 0.0
      %711 = vmatpush1.msra.mxu0 0.0
      %712 = vmatprep.subr.mxu0 0.0
      %713 = vmatpush1.msra.mxu0 0.0
      %714 = vmatprep.subr.mxu0 0.0
      %715 = vmatpush1.msra.mxu0 0.0
      %716 = vmatprep.subr.mxu0 0.0
      %717 = vmatpush1.msra.mxu0 0.0
      %718 = vmatprep.subr.mxu0 0.0
      %719 = vmatpush1.msra.mxu0 0.0
      %720 = vmatprep.subr.mxu0 0.0
      %721 = vmatpush1.msra.mxu0 0.0
      %722 = vmatprep.subr.mxu0 0.0
      %723 = vmatpush1.msra.mxu0 0.0
      %724 = vmatprep.subr.mxu0 0.0
      %725 = vmatpush1.msra.mxu0 0.0
      %726 = vmatprep.subr.mxu0 0.0
      %727 = vmatpush1.msra.mxu0 0.0
      %728 = vmatprep.subr.mxu0 0.0
      %729 = vmatpush1.msra.mxu0 0.0
      %730 = vmatprep.subr.mxu0 0.0
      %731 = vmatpush1.msra.mxu0 0.0
      %732 = vmatprep.subr.mxu0 0.0
      %733 = vmatpush1.msra.mxu0 0.0
      %734 = vmatprep.subr.mxu0 0.0
      %735 = vmatpush1.msra.mxu0 0.0
      %736 = vmatprep.subr.mxu0 0.0
      %737 = vmatpush1.msra.mxu0 0.0
      %738 = vmatprep.subr.mxu0 0.0
      %739 = vmatpush1.msra.mxu0 0.0
      %740 = vmatprep.subr.mxu0 0.0
      %741 = vmatpush1.msra.mxu0 0.0
      %742 = vmatprep.subr.mxu0 0.0
      %743 = vmatpush1.msra.mxu0 0.0
      %744 = vmatprep.subr.mxu0 0.0
      %745 = vmatpush1.msra.mxu0 0.0
      %746 = vmatprep.subr.mxu0 0.0
      %747 = vmatpush1.msra.mxu0 0.0
      %748 = vmatprep.subr.mxu0 0.0
      %749 = vmatpush1.msra.mxu0 0.0
      %750 = vmatprep.subr.mxu0 0.0
      %751 = vmatpush1.msra.mxu0 0.0
      %752 = vmatprep.subr.mxu0 0.0
      %753 = vmatpush1.msra.mxu0 0.0
      %754 = vmatprep.subr.mxu0 0.0
      %755 = vmatpush1.msra.mxu0 0.0
      %756 = vmatprep.subr.mxu0 0.0
      %757 = vmatpush1.msra.mxu0 0.0
      %758 = vmatprep.subr.mxu0 0.0
      %759 = vmatpush1.msra.mxu0 0.0
      %760 = vmatprep.subr.mxu0 0.0
      %761 = vmatpush1.msra.mxu0 0.0
      %762 = vmatprep.mubr.f32.mxu0 0.0
      %763 = vmatmul.mubr.f32.gmra.mrb[0].mxu0 %v696
      %v764 = vpop.f32.mrb[0].mxu0
      %v765 = vadd.f32 %v693, %v764
      %v766 = vpop.f32.mrb[0].mxu0
      %767 = vdwg.mxu0
      %vm768 = vcmask 64512
      %v770 = vsel %vm768, %v587, 0
      %v773 = vsel %vm768, %v677, 0
      %775 = vmatprep.subr.mxu0 0.0
      %776 = vmatpush1.xpose.msra.mxu0 %v773
      %777 = vmatprep.subr.mxu0 0.0
      %778 = vmatpush1.xpose.msra.mxu0 0.0
      %779 = vmatprep.subr.mxu0 0.0
      %780 = vmatpush1.xpose.msra.mxu0 0.0
      %781 = vmatprep.subr.mxu0 0.0
      %782 = vmatpush1.xpose.msra.mxu0 0.0
      %783 = vmatprep.subr.mxu0 0.0
      %784 = vmatpush1.xpose.msra.mxu0 0.0
      %785 = vmatprep.subr.mxu0 0.0
      %786 = vmatpush1.xpose.msra.mxu0 0.0
      %787 = vmatprep.subr.mxu0 0.0
      %788 = vmatpush1.xpose.msra.mxu0 0.0
      %789 = vmatprep.subr.mxu0 0.0
      %790 = vmatpush1.xpose.msra.mxu0 0.0
      %791 = vmatprep.subr.mxu0 0.0
      %792 = vmatpush1.xpose.msra.mxu0 0.0
      %793 = vmatprep.subr.mxu0 0.0
      %794 = vmatpush1.xpose.msra.mxu0 0.0
      %795 = vmatprep.subr.mxu0 0.0
      %796 = vmatpush1.xpose.msra.mxu0 0.0
      %797 = vmatprep.subr.mxu0 0.0
      %798 = vmatpush1.xpose.msra.mxu0 0.0
      %799 = vmatprep.subr.mxu0 0.0
      %800 = vmatpush1.xpose.msra.mxu0 0.0
      %801 = vmatprep.subr.mxu0 0.0
      %802 = vmatpush1.xpose.msra.mxu0 0.0
      %803 = vmatprep.subr.mxu0 0.0
      %804 = vmatpush1.xpose.msra.mxu0 0.0
      %805 = vmatprep.subr.mxu0 0.0
      %806 = vmatpush1.xpose.msra.mxu0 0.0
      %807 = vmatprep.subr.mxu0 0.0
      %808 = vmatpush1.xpose.msra.mxu0 0.0
      %809 = vmatprep.subr.mxu0 0.0
      %810 = vmatpush1.xpose.msra.mxu0 0.0
      %811 = vmatprep.subr.mxu0 0.0
      %812 = vmatpush1.xpose.msra.mxu0 0.0
      %813 = vmatprep.subr.mxu0 0.0
      %814 = vmatpush1.xpose.msra.mxu0 0.0
      %815 = vmatprep.subr.mxu0 0.0
      %816 = vmatpush1.xpose.msra.mxu0 0.0
      %817 = vmatprep.subr.mxu0 0.0
      %818 = vmatpush1.xpose.msra.mxu0 0.0
      %819 = vmatprep.subr.mxu0 0.0
      %820 = vmatpush1.xpose.msra.mxu0 0.0
      %821 = vmatprep.subr.mxu0 0.0
      %822 = vmatpush1.xpose.msra.mxu0 0.0
      %823 = vmatprep.subr.mxu0 0.0
      %824 = vmatpush1.xpose.msra.mxu0 0.0
      %825 = vmatprep.subr.mxu0 0.0
      %826 = vmatpush1.xpose.msra.mxu0 0.0
      %827 = vmatprep.subr.mxu0 0.0
      %828 = vmatpush1.xpose.msra.mxu0 0.0
      %829 = vmatprep.subr.mxu0 0.0
      %830 = vmatpush1.xpose.msra.mxu0 0.0
      %831 = vmatprep.subr.mxu0 0.0
      %832 = vmatpush1.xpose.msra.mxu0 0.0
      %833 = vmatprep.subr.mxu0 0.0
      %834 = vmatpush1.xpose.msra.mxu0 0.0
      %835 = vmatprep.subr.mxu0 0.0
      %836 = vmatpush1.xpose.msra.mxu0 0.0
      %837 = vmatprep.subr.mxu0 0.0
      %838 = vmatpush1.xpose.msra.mxu0 0.0
      %839 = vmatprep.mubr.f32.mxu0 0.0
      %840 = vmatmul.mubr.f32.gmra.mrb[0].mxu0 %v770
      %v841 = vpop.f32.mrb[0].mxu0
      %v842 = vadd.f32 0.0, %v841
      %v843 = vpop.f32.mrb[0].mxu0
      %844 = vdwg.mxu0
      %v845 = vsel %vm768, %v842, -inf
      %846 = vmax.xlane.f32.xlu0 %v845
      %v847 = vpop.xlane.xlu0 %846
      %v848 = vsub.f32 %v842, %v847
      %v849 = vmul.f32 %v848, 1.442695
      %v850 = vpow.pop %v849
      %v851 = vsel %vm768, %v850, 0.0
      %852 = vadd.xlane.f32.xlu0 %v851
      %v853 = vpop.xlane.xlu0 %852
      %v854 = vrcp.pop %v853
      %v855 = vmul.f32 %v850, %v854
      %v857 = vsel %vm768, %v855, 0
      %859 = vmatprep.subr.mxu0 0.0
      %860 = vmatpush1.msra.mxu0 %v765
      %861 = vmatprep.subr.mxu0 0.0
      %862 = vmatpush1.msra.mxu0 0.0
      %863 = vmatprep.subr.mxu0 0.0
      %864 = vmatpush1.msra.mxu0 0.0
      %865 = vmatprep.subr.mxu0 0.0
      %866 = vmatpush1.msra.mxu0 0.0
      %867 = vmatprep.subr.mxu0 0.0
      %868 = vmatpush1.msra.mxu0 0.0
      %869 = vmatprep.subr.mxu0 0.0
      %870 = vmatpush1.msra.mxu0 0.0
      %871 = vmatprep.subr.mxu0 0.0
      %872 = vmatpush1.msra.mxu0 0.0
      %873 = vmatprep.subr.mxu0 0.0
      %874 = vmatpush1.msra.mxu0 0.0
      %875 = vmatprep.subr.mxu0 0.0
      %876 = vmatpush1.msra.mxu0 0.0
      %877 = vmatprep.subr.mxu0 0.0
      %878 = vmatpush1.msra.mxu0 0.0
      %879 = vmatprep.subr.mxu0 0.0
      %880 = vmatpush1.msra.mxu0 0.0
      %881 = vmatprep.subr.mxu0 0.0
      %882 = vmatpush1.msra.mxu0 0.0
      %883 = vmatprep.subr.mxu0 0.0
      %884 = vmatpush1.msra.mxu0 0.0
      %885 = vmatprep.subr.mxu0 0.0
      %886 = vmatpush1.msra.mxu0 0.0
      %887 = vmatprep.subr.mxu0 0.0
      %888 = vmatpush1.msra.mxu0 0.0
      %889 = vmatprep.subr.mxu0 0.0
      %890 = vmatpush1.msra.mxu0 0.0
      %891 = vmatprep.subr.mxu0 0.0
      %892 = vmatpush1.msra.mxu0 0.0
      %893 = vmatprep.subr.mxu0 0.0
      %894 = vmatpush1.msra.mxu0 0.0
      %895 = vmatprep.subr.mxu0 0.0
      %896 = vmatpush1.msra.mxu0 0.0
      %897 = vmatprep.subr.mxu0 0.0
      %898 = vmatpush1.msra.mxu0 0.0
      %899 = vmatprep.subr.mxu0 0.0
      %900 = vmatpush1.msra.mxu0 0.0
      %901 = vmatprep.subr.mxu0 0.0
      %902 = vmatpush1.msra.mxu0 0.0
      %903 = vmatprep.subr.mxu0 0.0
      %904 = vmatpush1.msra.mxu0 0.0
      %905 = vmatprep.subr.mxu0 0.0
      %906 = vmatpush1.msra.mxu0 0.0
      %907 = vmatprep.subr.mxu0 0.0
      %908 = vmatpush1.msra.mxu0 0.0
      %909 = vmatprep.subr.mxu0 0.0
      %910 = vmatpush1.msra.mxu0 0.0
      %911 = vmatprep.subr.mxu0 0.0
      %912 = vmatpush1.msra.mxu0 0.0
      %913 = vmatprep.subr.mxu0 0.0
      %914 = vmatpush1.msra.mxu0 0.0
      %915 = vmatprep.subr.mxu0 0.0
      %916 = vmatpush1.msra.mxu0 0.0
      %917 = vmatprep.subr.mxu0 0.0
      %918 = vmatpush1.msra.mxu0 0.0
      %919 = vmatprep.subr.mxu0 0.0
      %920 = vmatpush1.msra.mxu0 0.0
      %921 = vmatprep.subr.mxu0 0.0
      %922 = vmatpush1.msra.mxu0 0.0
      %923 = vmatprep.mubr.f32.mxu0 0.0
      %924 = vmatmul.mubr.f32.gmra.mrb[0].mxu0 %v857
      %v925 = vpop.f32.mrb[0].mxu0
      %v926 = vadd.f32 0.0, %v925
      %v927 = vpop.f32.mrb[0].mxu0
      %928 = vdwg.mxu0
      %929 = vrot.lane.b32.xlu0 %v587, 120
      %v930 = vpop.permute.xlu0 %929
      %931 = vrot.lane.b32.xlu0 %v677, 120
      %v932 = vpop.permute.xlu0 %931
      %v933 = vsel %vm768, %v930, 0
      %v935 = vsel %vm768, %v932, 0
      %937 = vmatprep.subr.mxu0 0.0
      %938 = vmatpush1.xpose.msra.mxu0 %v935
      %939 = vmatprep.subr.mxu0 0.0
      %940 = vmatpush1.xpose.msra.mxu0 0.0
      %941 = vmatprep.subr.mxu0 0.0
      %942 = vmatpush1.xpose.msra.mxu0 0.0
      %943 = vmatprep.subr.mxu0 0.0
      %944 = vmatpush1.xpose.msra.mxu0 0.0
      %945 = vmatprep.subr.mxu0 0.0
      %946 = vmatpush1.xpose.msra.mxu0 0.0
      %947 = vmatprep.subr.mxu0 0.0
      %948 = vmatpush1.xpose.msra.mxu0 0.0
      %949 = vmatprep.subr.mxu0 0.0
      %950 = vmatpush1.xpose.msra.mxu0 0.0
      %951 = vmatprep.subr.mxu0 0.0
      %952 = vmatpush1.xpose.msra.mxu0 0.0
      %953 = vmatprep.subr.mxu0 0.0
      %954 = vmatpush1.xpose.msra.mxu0 0.0
      %955 = vmatprep.subr.mxu0 0.0
      %956 = vmatpush1.xpose.msra.mxu0 0.0
      %957 = vmatprep.subr.mxu0 0.0
      %958 = vmatpush1.xpose.msra.mxu0 0.0
      %959 = vmatprep.subr.mxu0 0.0
      %960 = vmatpush1.xpose.msra.mxu0 0.0
      %961 = vmatprep.subr.mxu0 0.0
      %962 = vmatpush1.xpose.msra.mxu0 0.0
      %963 = vmatprep.subr.mxu0 0.0
      %964 = vmatpush1.xpose.msra.mxu0 0.0
      %965 = vmatprep.subr.mxu0 0.0
      %966 = vmatpush1.xpose.msra.mxu0 0.0
      %967 = vmatprep.subr.mxu0 0.0
      %968 = vmatpush1.xpose.msra.mxu0 0.0
      %969 = vmatprep.subr.mxu0 0.0
      %970 = vmatpush1.xpose.msra.mxu0 0.0
      %971 = vmatprep.subr.mxu0 0.0
      %972 = vmatpush1.xpose.msra.mxu0 0.0
      %973 = vmatprep.subr.mxu0 0.0
      %974 = vmatpush1.xpose.msra.mxu0 0.0
      %975 = vmatprep.subr.mxu0 0.0
      %976 = vmatpush1.xpose.msra.mxu0 0.0
      %977 = vmatprep.subr.mxu0 0.0
      %978 = vmatpush1.xpose.msra.mxu0 0.0
      %979 = vmatprep.subr.mxu0 0.0
      %980 = vmatpush1.xpose.msra.mxu0 0.0
      %981 = vmatprep.subr.mxu0 0.0
      %982 = vmatpush1.xpose.msra.mxu0 0.0
      %983 = vmatprep.subr.mxu0 0.0
      %984 = vmatpush1.xpose.msra.mxu0 0.0
      %985 = vmatprep.subr.mxu0 0.0
      %986 = vmatpush1.xpose.msra.mxu0 0.0
      %987 = vmatprep.subr.mxu0 0.0
      %988 = vmatpush1.xpose.msra.mxu0 0.0
      %989 = vmatprep.subr.mxu0 0.0
      %990 = vmatpush1.xpose.msra.mxu0 0.0
      %991 = vmatprep.subr.mxu0 0.0
      %992 = vmatpush1.xpose.msra.mxu0 0.0
      %993 = vmatprep.subr.mxu0 0.0
      %994 = vmatpush1.xpose.msra.mxu0 0.0
      %995 = vmatprep.subr.mxu0 0.0
      %996 = vmatpush1.xpose.msra.mxu0 0.0
      %997 = vmatprep.subr.mxu0 0.0
      %998 = vmatpush1.xpose.msra.mxu0 0.0
      %999 = vmatprep.subr.mxu0 0.0
      %1000 = vmatpush1.xpose.msra.mxu0 0.0
      %1001 = vmatprep.mubr.f32.mxu0 0.0
      %1002 = vmatmul.mubr.f32.gmra.mrb[0].mxu0 %v933
      %v1003 = vpop.f32.mrb[0].mxu0
      %v1004 = vadd.f32 0.0, %v1003
      %v1005 = vpop.f32.mrb[0].mxu0
      %1006 = vdwg.mxu0
      %v1007 = vsel %vm768, %v1004, -inf
      %1008 = vmax.xlane.f32.xlu0 %v1007
      %v1009 = vpop.xlane.xlu0 %1008
      %v1010 = vsub.f32 %v1004, %v1009
      %v1011 = vmul.f32 %v1010, 1.442695
      %v1012 = vpow.pop %v1011
      %v1013 = vsel %vm768, %v1012, 0.0
      %1014 = vadd.xlane.f32.xlu0 %v1013
      %v1015 = vpop.xlane.xlu0 %1014
      %v1016 = vrcp.pop %v1015
      %v1017 = vmul.f32 %v1012, %v1016
      %1019 = vrot.lane.b32.xlu0 %v765, 120
      %v1020 = vpop.permute.xlu0 %1019
      %v1023 = vsel %vm768, %v1017, 0
      %1025 = vmatprep.subr.mxu0 0.0
      %1026 = vmatpush1.msra.mxu0 %v1020
      %1027 = vmatprep.subr.mxu0 0.0
      %1028 = vmatpush1.msra.mxu0 0.0
      %1029 = vmatprep.subr.mxu0 0.0
      %1030 = vmatpush1.msra.mxu0 0.0
      %1031 = vmatprep.subr.mxu0 0.0
      %1032 = vmatpush1.msra.mxu0 0.0
      %1033 = vmatprep.subr.mxu0 0.0
      %1034 = vmatpush1.msra.mxu0 0.0
      %1035 = vmatprep.subr.mxu0 0.0
      %1036 = vmatpush1.msra.mxu0 0.0
      %1037 = vmatprep.subr.mxu0 0.0
      %1038 = vmatpush1.msra.mxu0 0.0
      %1039 = vmatprep.subr.mxu0 0.0
      %1040 = vmatpush1.msra.mxu0 0.0
      %1041 = vmatprep.subr.mxu0 0.0
      %1042 = vmatpush1.msra.mxu0 0.0
      %1043 = vmatprep.subr.mxu0 0.0
      %1044 = vmatpush1.msra.mxu0 0.0
      %1045 = vmatprep.subr.mxu0 0.0
      %1046 = vmatpush1.msra.mxu0 0.0
      %1047 = vmatprep.subr.mxu0 0.0
      %1048 = vmatpush1.msra.mxu0 0.0
      %1049 = vmatprep.subr.mxu0 0.0
      %1050 = vmatpush1.msra.mxu0 0.0
      %1051 = vmatprep.subr.mxu0 0.0
      %1052 = vmatpush1.msra.mxu0 0.0
      %1053 = vmatprep.subr.mxu0 0.0
      %1054 = vmatpush1.msra.mxu0 0.0
      %1055 = vmatprep.subr.mxu0 0.0
      %1056 = vmatpush1.msra.mxu0 0.0
      %1057 = vmatprep.subr.mxu0 0.0
      %1058 = vmatpush1.msra.mxu0 0.0
      %1059 = vmatprep.subr.mxu0 0.0
      %1060 = vmatpush1.msra.mxu0 0.0
      %1061 = vmatprep.subr.mxu0 0.0
      %1062 = vmatpush1.msra.mxu0 0.0
      %1063 = vmatprep.subr.mxu0 0.0
      %1064 = vmatpush1.msra.mxu0 0.0
      %1065 = vmatprep.subr.mxu0 0.0
      %1066 = vmatpush1.msra.mxu0 0.0
      %1067 = vmatprep.subr.mxu0 0.0
      %1068 = vmatpush1.msra.mxu0 0.0
      %1069 = vmatprep.subr.mxu0 0.0
      %1070 = vmatpush1.msra.mxu0 0.0
      %1071 = vmatprep.subr.mxu0 0.0
      %1072 = vmatpush1.msra.mxu0 0.0
      %1073 = vmatprep.subr.mxu0 0.0
      %1074 = vmatpush1.msra.mxu0 0.0
      %1075 = vmatprep.subr.mxu0 0.0
      %1076 = vmatpush1.msra.mxu0 0.0
      %1077 = vmatprep.subr.mxu0 0.0
      %1078 = vmatpush1.msra.mxu0 0.0
      %1079 = vmatprep.subr.mxu0 0.0
      %1080 = vmatpush1.msra.mxu0 0.0
      %1081 = vmatprep.subr.mxu0 0.0
      %1082 = vmatpush1.msra.mxu0 0.0
      %1083 = vmatprep.subr.mxu0 0.0
      %1084 = vmatpush1.msra.mxu0 0.0
      %1085 = vmatprep.subr.mxu0 0.0
      %1086 = vmatpush1.msra.mxu0 0.0
      %1087 = vmatprep.subr.mxu0 0.0
      %1088 = vmatpush1.msra.mxu0 0.0
      %1089 = vmatprep.mubr.f32.mxu0 0.0
      %1090 = vmatmul.mubr.f32.gmra.mrb[0].mxu0 %v1023
      %v1091 = vpop.f32.mrb[0].mxu0
      %v1092 = vadd.f32 0.0, %v1091
      %v1093 = vpop.f32.mrb[0].mxu0
      %1094 = vdwg.mxu0
      %1095 = vrot.lane.b32.xlu0 %v587, 112
      %v1096 = vpop.permute.xlu0 %1095
      %1097 = vrot.lane.b32.xlu0 %v677, 112
      %v1098 = vpop.permute.xlu0 %1097
      %v1099 = vsel %vm768, %v1096, 0
      %v1101 = vsel %vm768, %v1098, 0
      %1103 = vmatprep.subr.mxu0 0.0
      %1104 = vmatpush1.xpose.msra.mxu0 %v1101
      %1105 = vmatprep.subr.mxu0 0.0
      %1106 = vmatpush1.xpose.msra.mxu0 0.0
      %1107 = vmatprep.subr.mxu0 0.0
      %1108 = vmatpush1.xpose.msra.mxu0 0.0
      %1109 = vmatprep.subr.mxu0 0.0
      %1110 = vmatpush1.xpose.msra.mxu0 0.0
      %1111 = vmatprep.subr.mxu0 0.0
      %1112 = vmatpush1.xpose.msra.mxu0 0.0
      %1113 = vmatprep.subr.mxu0 0.0
      %1114 = vmatpush1.xpose.msra.mxu0 0.0
      %1115 = vmatprep.subr.mxu0 0.0
      %1116 = vmatpush1.xpose.msra.mxu0 0.0
      %1117 = vmatprep.subr.mxu0 0.0
      %1118 = vmatpush1.xpose.msra.mxu0 0.0
      %1119 = vmatprep.subr.mxu0 0.0
      %1120 = vmatpush1.xpose.msra.mxu0 0.0
      %1121 = vmatprep.subr.mxu0 0.0
      %1122 = vmatpush1.xpose.msra.mxu0 0.0
      %1123 = vmatprep.subr.mxu0 0.0
      %1124 = vmatpush1.xpose.msra.mxu0 0.0
      %1125 = vmatprep.subr.mxu0 0.0
      %1126 = vmatpush1.xpose.msra.mxu0 0.0
      %1127 = vmatprep.subr.mxu0 0.0
      %1128 = vmatpush1.xpose.msra.mxu0 0.0
      %1129 = vmatprep.subr.mxu0 0.0
      %1130 = vmatpush1.xpose.msra.mxu0 0.0
      %1131 = vmatprep.subr.mxu0 0.0
      %1132 = vmatpush1.xpose.msra.mxu0 0.0
      %1133 = vmatprep.subr.mxu0 0.0
      %1134 = vmatpush1.xpose.msra.mxu0 0.0
      %1135 = vmatprep.subr.mxu0 0.0
      %1136 = vmatpush1.xpose.msra.mxu0 0.0
      %1137 = vmatprep.subr.mxu0 0.0
      %1138 = vmatpush1.xpose.msra.mxu0 0.0
      %1139 = vmatprep.subr.mxu0 0.0
      %1140 = vmatpush1.xpose.msra.mxu0 0.0
      %1141 = vmatprep.subr.mxu0 0.0
      %1142 = vmatpush1.xpose.msra.mxu0 0.0
      %1143 = vmatprep.subr.mxu0 0.0
      %1144 = vmatpush1.xpose.msra.mxu0 0.0
      %1145 = vmatprep.subr.mxu0 0.0
      %1146 = vmatpush1.xpose.msra.mxu0 0.0
      %1147 = vmatprep.subr.mxu0 0.0
      %1148 = vmatpush1.xpose.msra.mxu0 0.0
      %1149 = vmatprep.subr.mxu0 0.0
      %1150 = vmatpush1.xpose.msra.mxu0 0.0
      %1151 = vmatprep.subr.mxu0 0.0
      %1152 = vmatpush1.xpose.msra.mxu0 0.0
      %1153 = vmatprep.subr.mxu0 0.0
      %1154 = vmatpush1.xpose.msra.mxu0 0.0
      %1155 = vmatprep.subr.mxu0 0.0
      %1156 = vmatpush1.xpose.msra.mxu0 0.0
      %1157 = vmatprep.subr.mxu0 0.0
      %1158 = vmatpush1.xpose.msra.mxu0 0.0
      %1159 = vmatprep.subr.mxu0 0.0
      %1160 = vmatpush1.xpose.msra.mxu0 0.0
      %1161 = vmatprep.subr.mxu0 0.0
      %1162 = vmatpush1.xpose.msra.mxu0 0.0
      %1163 = vmatprep.subr.mxu0 0.0
      %1164 = vmatpush1.xpose.msra.mxu0 0.0
      %1165 = vmatprep.subr.mxu0 0.0
      %1166 = vmatpush1.xpose.msra.mxu0 0.0
      %1167 = vmatprep.mubr.f32.mxu0 0.0
      %1168 = vmatmul.mubr.f32.gmra.mrb[0].mxu0 %v1099
      %v1169 = vpop.f32.mrb[0].mxu0
      %v1170 = vadd.f32 0.0, %v1169
      %v1171 = vpop.f32.mrb[0].mxu0
      %1172 = vdwg.mxu0
      %v1173 = vsel %vm768, %v1170, -inf
      %1174 = vmax.xlane.f32.xlu0 %v1173
      %v1175 = vpop.xlane.xlu0 %1174
      %v1176 = vsub.f32 %v1170, %v1175
      %v1177 = vmul.f32 %v1176, 1.442695
      %v1178 = vpow.pop %v1177
      %v1179 = vsel %vm768, %v1178, 0.0
      %1180 = vadd.xlane.f32.xlu0 %v1179
      %v1181 = vpop.xlane.xlu0 %1180
      %v1182 = vrcp.pop %v1181
      %v1183 = vmul.f32 %v1178, %v1182
      %1184 = vrot.lane.b32.xlu0 %v765, 112
      %v1185 = vpop.permute.xlu0 %1184
      %v1188 = vsel %vm768, %v1183, 0
      %1190 = vmatprep.subr.mxu0 0.0
      %1191 = vmatpush1.msra.mxu0 %v1185
      %1192 = vmatprep.subr.mxu0 0.0
      %1193 = vmatpush1.msra.mxu0 0.0
      %1194 = vmatprep.subr.mxu0 0.0
      %1195 = vmatpush1.msra.mxu0 0.0
      %1196 = vmatprep.subr.mxu0 0.0
      %1197 = vmatpush1.msra.mxu0 0.0
      %1198 = vmatprep.subr.mxu0 0.0
      %1199 = vmatpush1.msra.mxu0 0.0
      %1200 = vmatprep.subr.mxu0 0.0
      %1201 = vmatpush1.msra.mxu0 0.0
      %1202 = vmatprep.subr.mxu0 0.0
      %1203 = vmatpush1.msra.mxu0 0.0
      %1204 = vmatprep.subr.mxu0 0.0
      %1205 = vmatpush1.msra.mxu0 0.0
      %1206 = vmatprep.subr.mxu0 0.0
      %1207 = vmatpush1.msra.mxu0 0.0
      %1208 = vmatprep.subr.mxu0 0.0
      %1209 = vmatpush1.msra.mxu0 0.0
      %1210 = vmatprep.subr.mxu0 0.0
      %1211 = vmatpush1.msra.mxu0 0.0
      %1212 = vmatprep.subr.mxu0 0.0
      %1213 = vmatpush1.msra.mxu0 0.0
      %1214 = vmatprep.subr.mxu0 0.0
      %1215 = vmatpush1.msra.mxu0 0.0
      %1216 = vmatprep.subr.mxu0 0.0
      %1217 = vmatpush1.msra.mxu0 0.0
      %1218 = vmatprep.subr.mxu0 0.0
      %1219 = vmatpush1.msra.mxu0 0.0
      %1220 = vmatprep.subr.mxu0 0.0
      %1221 = vmatpush1.msra.mxu0 0.0
      %1222 = vmatprep.subr.mxu0 0.0
      %1223 = vmatpush1.msra.mxu0 0.0
      %1224 = vmatprep.subr.mxu0 0.0
      %1225 = vmatpush1.msra.mxu0 0.0
      %1226 = vmatprep.subr.mxu0 0.0
      %1227 = vmatpush1.msra.mxu0 0.0
      %1228 = vmatprep.subr.mxu0 0.0
      %1229 = vmatpush1.msra.mxu0 0.0
      %1230 = vmatprep.subr.mxu0 0.0
      %1231 = vmatpush1.msra.mxu0 0.0
      %1232 = vmatprep.subr.mxu0 0.0
      %1233 = vmatpush1.msra.mxu0 0.0
      %1234 = vmatprep.subr.mxu0 0.0
      %1235 = vmatpush1.msra.mxu0 0.0
      %1236 = vmatprep.subr.mxu0 0.0
      %1237 = vmatpush1.msra.mxu0 0.0
      %1238 = vmatprep.subr.mxu0 0.0
      %1239 = vmatpush1.msra.mxu0 0.0
      %1240 = vmatprep.subr.mxu0 0.0
      %1241 = vmatpush1.msra.mxu0 0.0
      %1242 = vmatprep.subr.mxu0 0.0
      %1243 = vmatpush1.msra.mxu0 0.0
      %1244 = vmatprep.subr.mxu0 0.0
      %1245 = vmatpush1.msra.mxu0 0.0
      %1246 = vmatprep.subr.mxu0 0.0
      %1247 = vmatpush1.msra.mxu0 0.0
      %1248 = vmatprep.subr.mxu0 0.0
      %1249 = vmatpush1.msra.mxu0 0.0
      %1250 = vmatprep.subr.mxu0 0.0
      %1251 = vmatpush1.msra.mxu0 0.0
      %1252 = vmatprep.subr.mxu0 0.0
      %1253 = vmatpush1.msra.mxu0 0.0
      %1254 = vmatprep.mubr.f32.mxu0 0.0
      %1255 = vmatmul.mubr.f32.gmra.mrb[0].mxu0 %v1188
      %v1256 = vpop.f32.mrb[0].mxu0
      %v1257 = vadd.f32 0.0, %v1256
      %v1258 = vpop.f32.mrb[0].mxu0
      %1259 = vdwg.mxu0
      %1260 = vrot.lane.b32.xlu0 %v587, 104
      %v1261 = vpop.permute.xlu0 %1260
      %1262 = vrot.lane.b32.xlu0 %v677, 104
      %v1263 = vpop.permute.xlu0 %1262
      %v1264 = vsel %vm768, %v1261, 0
      %v1266 = vsel %vm768, %v1263, 0
      %1268 = vmatprep.subr.mxu0 0.0
      %1269 = vmatpush1.xpose.msra.mxu0 %v1266
      %1270 = vmatprep.subr.mxu0 0.0
      %1271 = vmatpush1.xpose.msra.mxu0 0.0
      %1272 = vmatprep.subr.mxu0 0.0
      %1273 = vmatpush1.xpose.msra.mxu0 0.0
      %1274 = vmatprep.subr.mxu0 0.0
      %1275 = vmatpush1.xpose.msra.mxu0 0.0
      %1276 = vmatprep.subr.mxu0 0.0
      %1277 = vmatpush1.xpose.msra.mxu0 0.0
      %1278 = vmatprep.subr.mxu0 0.0
      %1279 = vmatpush1.xpose.msra.mxu0 0.0
      %1280 = vmatprep.subr.mxu0 0.0
      %1281 = vmatpush1.xpose.msra.mxu0 0.0
      %1282 = vmatprep.subr.mxu0 0.0
      %1283 = vmatpush1.xpose.msra.mxu0 0.0
      %1284 = vmatprep.subr.mxu0 0.0
      %1285 = vmatpush1.xpose.msra.mxu0 0.0
      %1286 = vmatprep.subr.mxu0 0.0
      %1287 = vmatpush1.xpose.msra.mxu0 0.0
      %1288 = vmatprep.subr.mxu0 0.0
      %1289 = vmatpush1.xpose.msra.mxu0 0.0
      %1290 = vmatprep.subr.mxu0 0.0
      %1291 = vmatpush1.xpose.msra.mxu0 0.0
      %1292 = vmatprep.subr.mxu0 0.0
      %1293 = vmatpush1.xpose.msra.mxu0 0.0
      %1294 = vmatprep.subr.mxu0 0.0
      %1295 = vmatpush1.xpose.msra.mxu0 0.0
      %1296 = vmatprep.subr.mxu0 0.0
      %1297 = vmatpush1.xpose.msra.mxu0 0.0
      %1298 = vmatprep.subr.mxu0 0.0
      %1299 = vmatpush1.xpose.msra.mxu0 0.0
      %1300 = vmatprep.subr.mxu0 0.0
      %1301 = vmatpush1.xpose.msra.mxu0 0.0
      %1302 = vmatprep.subr.mxu0 0.0
      %1303 = vmatpush1.xpose.msra.mxu0 0.0
      %1304 = vmatprep.subr.mxu0 0.0
      %1305 = vmatpush1.xpose.msra.mxu0 0.0
      %1306 = vmatprep.subr.mxu0 0.0
      %1307 = vmatpush1.xpose.msra.mxu0 0.0
      %1308 = vmatprep.subr.mxu0 0.0
      %1309 = vmatpush1.xpose.msra.mxu0 0.0
      %1310 = vmatprep.subr.mxu0 0.0
      %1311 = vmatpush1.xpose.msra.mxu0 0.0
      %1312 = vmatprep.subr.mxu0 0.0
      %1313 = vmatpush1.xpose.msra.mxu0 0.0
      %1314 = vmatprep.subr.mxu0 0.0
      %1315 = vmatpush1.xpose.msra.mxu0 0.0
      %1316 = vmatprep.subr.mxu0 0.0
      %1317 = vmatpush1.xpose.msra.mxu0 0.0
      %1318 = vmatprep.subr.mxu0 0.0
      %1319 = vmatpush1.xpose.msra.mxu0 0.0
      %1320 = vmatprep.subr.mxu0 0.0
      %1321 = vmatpush1.xpose.msra.mxu0 0.0
      %1322 = vmatprep.subr.mxu0 0.0
      %1323 = vmatpush1.xpose.msra.mxu0 0.0
      %1324 = vmatprep.subr.mxu0 0.0
      %1325 = vmatpush1.xpose.msra.mxu0 0.0
      %1326 = vmatprep.subr.mxu0 0.0
      %1327 = vmatpush1.xpose.msra.mxu0 0.0
      %1328 = vmatprep.subr.mxu0 0.0
      %1329 = vmatpush1.xpose.msra.mxu0 0.0
      %1330 = vmatprep.subr.mxu0 0.0
      %1331 = vmatpush1.xpose.msra.mxu0 0.0
      %1332 = vmatprep.mubr.f32.mxu0 0.0
      %1333 = vmatmul.mubr.f32.gmra.mrb[0].mxu0 %v1264
      %v1334 = vpop.f32.mrb[0].mxu0
      %v1335 = vadd.f32 0.0, %v1334
      %v1336 = vpop.f32.mrb[0].mxu0
      %1337 = vdwg.mxu0
      %v1338 = vsel %vm768, %v1335, -inf
      %1339 = vmax.xlane.f32.xlu0 %v1338
      %v1340 = vpop.xlane.xlu0 %1339
      %v1341 = vsub.f32 %v1335, %v1340
      %v1342 = vmul.f32 %v1341, 1.442695
      %v1343 = vpow.pop %v1342
      %v1344 = vsel %vm768, %v1343, 0.0
      %1345 = vadd.xlane.f32.xlu0 %v1344
      %v1346 = vpop.xlane.xlu0 %1345
      %v1347 = vrcp.pop %v1346
      %v1348 = vmul.f32 %v1343, %v1347
      %1349 = vrot.lane.b32.xlu0 %v765, 104
      %v1350 = vpop.permute.xlu0 %1349
      %v1353 = vsel %vm768, %v1348, 0
      %1355 = vmatprep.subr.mxu0 0.0
      %1356 = vmatpush1.msra.mxu0 %v1350
      %1357 = vmatprep.subr.mxu0 0.0
      %1358 = vmatpush1.msra.mxu0 0.0
      %1359 = vmatprep.subr.mxu0 0.0
      %1360 = vmatpush1.msra.mxu0 0.0
      %1361 = vmatprep.subr.mxu0 0.0
      %1362 = vmatpush1.msra.mxu0 0.0
      %1363 = vmatprep.subr.mxu0 0.0
      %1364 = vmatpush1.msra.mxu0 0.0
      %1365 = vmatprep.subr.mxu0 0.0
      %1366 = vmatpush1.msra.mxu0 0.0
      %1367 = vmatprep.subr.mxu0 0.0
      %1368 = vmatpush1.msra.mxu0 0.0
      %1369 = vmatprep.subr.mxu0 0.0
      %1370 = vmatpush1.msra.mxu0 0.0
      %1371 = vmatprep.subr.mxu0 0.0
      %1372 = vmatpush1.msra.mxu0 0.0
      %1373 = vmatprep.subr.mxu0 0.0
      %1374 = vmatpush1.msra.mxu0 0.0
      %1375 = vmatprep.subr.mxu0 0.0
      %1376 = vmatpush1.msra.mxu0 0.0
      %1377 = vmatprep.subr.mxu0 0.0
      %1378 = vmatpush1.msra.mxu0 0.0
      %1379 = vmatprep.subr.mxu0 0.0
      %1380 = vmatpush1.msra.mxu0 0.0
      %1381 = vmatprep.subr.mxu0 0.0
      %1382 = vmatpush1.msra.mxu0 0.0
      %1383 = vmatprep.subr.mxu0 0.0
      %1384 = vmatpush1.msra.mxu0 0.0
      %1385 = vmatprep.subr.mxu0 0.0
      %1386 = vmatpush1.msra.mxu0 0.0
      %1387 = vmatprep.subr.mxu0 0.0
      %1388 = vmatpush1.msra.mxu0 0.0
      %1389 = vmatprep.subr.mxu0 0.0
      %1390 = vmatpush1.msra.mxu0 0.0
      %1391 = vmatprep.subr.mxu0 0.0
      %1392 = vmatpush1.msra.mxu0 0.0
      %1393 = vmatprep.subr.mxu0 0.0
      %1394 = vmatpush1.msra.mxu0 0.0
      %1395 = vmatprep.subr.mxu0 0.0
      %1396 = vmatpush1.msra.mxu0 0.0
      %1397 = vmatprep.subr.mxu0 0.0
      %1398 = vmatpush1.msra.mxu0 0.0
      %1399 = vmatprep.subr.mxu0 0.0
      %1400 = vmatpush1.msra.mxu0 0.0
      %1401 = vmatprep.subr.mxu0 0.0
      %1402 = vmatpush1.msra.mxu0 0.0
      %1403 = vmatprep.subr.mxu0 0.0
      %1404 = vmatpush1.msra.mxu0 0.0
      %1405 = vmatprep.subr.mxu0 0.0
      %1406 = vmatpush1.msra.mxu0 0.0
      %1407 = vmatprep.subr.mxu0 0.0
      %1408 = vmatpush1.msra.mxu0 0.0
      %1409 = vmatprep.subr.mxu0 0.0
      %1410 = vmatpush1.msra.mxu0 0.0
      %1411 = vmatprep.subr.mxu0 0.0
      %1412 = vmatpush1.msra.mxu0 0.0
      %1413 = vmatprep.subr.mxu0 0.0
      %1414 = vmatpush1.msra.mxu0 0.0
      %1415 = vmatprep.subr.mxu0 0.0
      %1416 = vmatpush1.msra.mxu0 0.0
      %1417 = vmatprep.subr.mxu0 0.0
      %1418 = vmatpush1.msra.mxu0 0.0
      %1419 = vmatprep.mubr.f32.mxu0 0.0
      %1420 = vmatmul.mubr.f32.gmra.mrb[0].mxu0 %v1353
      %v1421 = vpop.f32.mrb[0].mxu0
      %v1422 = vadd.f32 0.0, %v1421
      %v1423 = vpop.f32.mrb[0].mxu0
      %1424 = vdwg.mxu0
      %1426 = vrot.lane.b32.xlu0 %v1092, 8
      %v1427 = vpop.permute.xlu0 %1426
      %1430 = vrot.lane.b32.xlu0 %v1257, 16
      %v1431 = vpop.permute.xlu0 %1430
      %1434 = vrot.lane.b32.xlu0 %v1422, 24
      %v1435 = vpop.permute.xlu0 %1434
      %v1437 = vsel %vm768, %v926, %v1427
      %vm1438 = vcmask 130048
      %v1439 = vsel %vm1438, %v1437, %v1431
      %vm1440 = vcmask 195584
      %v1441 = vsel %vm1440, %v1439, %v1435
      %v1442 = vlaneseq
      %v1443 = vshrl.u32 %v1442, 7
      %v1444 = vsub.s32 0, %v1443
      %v1445 = vrot.slane %v499, %v1444
      %v1447 = vsel %vm516, %v1441, 0
      %1449 = vmatprep.subr.mxu0 0.0
      %1450 = vmatpush1.msra.mxu0 %v508
      %1451 = vmatprep.subr.mxu0 0.0
      %1452 = vmatpush1.msra.mxu0 %v509
      %1453 = vmatprep.subr.mxu0 0.0
      %1454 = vmatpush1.msra.mxu0 %v510
      %1455 = vmatprep.subr.mxu0 0.0
      %1456 = vmatpush1.msra.mxu0 %v511
      %1457 = vmatprep.subr.mxu0 0.0
      %1458 = vmatpush1.msra.mxu0 0.0
      %1459 = vmatprep.subr.mxu0 0.0
      %1460 = vmatpush1.msra.mxu0 0.0
      %1461 = vmatprep.subr.mxu0 0.0
      %1462 = vmatpush1.msra.mxu0 0.0
      %1463 = vmatprep.subr.mxu0 0.0
      %1464 = vmatpush1.msra.mxu0 0.0
      %1465 = vmatprep.subr.mxu0 0.0
      %1466 = vmatpush1.msra.mxu0 0.0
      %1467 = vmatprep.subr.mxu0 0.0
      %1468 = vmatpush1.msra.mxu0 0.0
      %1469 = vmatprep.subr.mxu0 0.0
      %1470 = vmatpush1.msra.mxu0 0.0
      %1471 = vmatprep.subr.mxu0 0.0
      %1472 = vmatpush1.msra.mxu0 0.0
      %1473 = vmatprep.subr.mxu0 0.0
      %1474 = vmatpush1.msra.mxu0 0.0
      %1475 = vmatprep.subr.mxu0 0.0
      %1476 = vmatpush1.msra.mxu0 0.0
      %1477 = vmatprep.subr.mxu0 0.0
      %1478 = vmatpush1.msra.mxu0 0.0
      %1479 = vmatprep.subr.mxu0 0.0
      %1480 = vmatpush1.msra.mxu0 0.0
      %1481 = vmatprep.subr.mxu0 0.0
      %1482 = vmatpush1.msra.mxu0 0.0
      %1483 = vmatprep.subr.mxu0 0.0
      %1484 = vmatpush1.msra.mxu0 0.0
      %1485 = vmatprep.subr.mxu0 0.0
      %1486 = vmatpush1.msra.mxu0 0.0
      %1487 = vmatprep.subr.mxu0 0.0
      %1488 = vmatpush1.msra.mxu0 0.0
      %1489 = vmatprep.subr.mxu0 0.0
      %1490 = vmatpush1.msra.mxu0 0.0
      %1491 = vmatprep.subr.mxu0 0.0
      %1492 = vmatpush1.msra.mxu0 0.0
      %1493 = vmatprep.subr.mxu0 0.0
      %1494 = vmatpush1.msra.mxu0 0.0
      %1495 = vmatprep.subr.mxu0 0.0
      %1496 = vmatpush1.msra.mxu0 0.0
      %1497 = vmatprep.subr.mxu0 0.0
      %1498 = vmatpush1.msra.mxu0 0.0
      %1499 = vmatprep.subr.mxu0 0.0
      %1500 = vmatpush1.msra.mxu0 0.0
      %1501 = vmatprep.subr.mxu0 0.0
      %1502 = vmatpush1.msra.mxu0 0.0
      %1503 = vmatprep.subr.mxu0 0.0
      %1504 = vmatpush1.msra.mxu0 0.0
      %1505 = vmatprep.subr.mxu0 0.0
      %1506 = vmatpush1.msra.mxu0 0.0
      %1507 = vmatprep.subr.mxu0 0.0
      %1508 = vmatpush1.msra.mxu0 0.0
      %1509 = vmatprep.subr.mxu0 0.0
      %1510 = vmatpush1.msra.mxu0 0.0
      %1511 = vmatprep.subr.mxu0 0.0
      %1512 = vmatpush1.msra.mxu0 0.0
      %1513 = vmatprep.mubr.f32.mxu0 0.0
      %1514 = vmatmul.mubr.f32.gmra.mrb[0].mxu0 %v1447
      %v1515 = vpop.f32.mrb[0].mxu0
      %v1516 = vadd.f32 %v1445, %v1515
      %v1517 = vpop.f32.mrb[0].mxu0
      %1518 = vdwg.mxu0
      %v1519 = vadd.f32 %v493, %v1516
      %v1520 = vsel %vm516, %v1519, 0.0
      %1521 = vadd.xlane.f32.xlu0 %v1520
      %v1522 = vpop.xlane.xlu0 %1521
      %v1523 = vrcp.pop 32.0
      %v1524 = vmul.f32 %v1522, %v1523
      %v1525 = vsub.f32 %v1519, %v1524
      %v1526 = vmul.f32 %v1525, %v1525
      %v1527 = vsel %vm516, %v1526, 0.0
      %1528 = vadd.xlane.f32.xlu0 %v1527
      %v1529 = vpop.xlane.xlu0 %1528
      %v1530 = vmul.f32 %v1529, %v1523
      %v1531 = vadd.f32 %v1530, 1e-05
      %v1532 = vrsqrt.pop %v1531
      %v1533 = vmul.f32 %v1525, %v1532
      %v1534 = vlaneseq
      %v1535 = vshrl.u32 %v1534, 7
      %v1536 = vsub.s32 3, %v1535
      %v1537 = vrot.slane %v499, %v1536
      %v1538 = vmul.f32 %v1533, %v1537
      %v1539 = vlaneseq
      %v1540 = vshrl.u32 %v1539, 7
      %v1541 = vsub.s32 4, %v1540
      %v1542 = vrot.slane %v499, %v1541
      %v1543 = vadd.f32 %v1538, %v1542
      %v1544 = vadd.f32 %v1543, %v496
      %v1545 = vadd.f32 %v494, %v497
      %v1546 = vadd.f32 %v495, %v498
      %v1547 = vld [vmem:[%s6] sm:$0xff]
      %v1548 = vld [vmem:[%s6 + $0x8] sm:$0xff]
      %v1549 = vld [vmem:[%s6 + $0x10] sm:$0xff]
      %v1550 = vld [vmem:[%s6 + $0x18] sm:$0xff]
      %v1551 = vld [vmem:[%s7] sm:$0xff]
      %v1552 = vld [vmem:[%s7 + $0x8] sm:$0xff]
      %v1553 = vld [vmem:[%s7 + $0x10] sm:$0xff]
      %v1554 = vld [vmem:[%s7 + $0x18] sm:$0xff]
      %v1555 = vlaneseq
      %v1556 = vshrl.u32 %v1555, 7
      %v1557 = vsub.s32 0, %v1556
      %v1558 = vrot.slane %v502, %v1557
      %v1560 = vsel %vm516, %v1544, 0
      %1562 = vmatprep.subr.mxu0 0.0
      %1563 = vmatpush1.msra.mxu0 %v1547
      %1564 = vmatprep.subr.mxu0 0.0
      %1565 = vmatpush1.msra.mxu0 %v1548
      %1566 = vmatprep.subr.mxu0 0.0
      %1567 = vmatpush1.msra.mxu0 %v1549
      %1568 = vmatprep.subr.mxu0 0.0
      %1569 = vmatpush1.msra.mxu0 %v1550
      %1570 = vmatprep.subr.mxu0 0.0
      %1571 = vmatpush1.msra.mxu0 0.0
      %1572 = vmatprep.subr.mxu0 0.0
      %1573 = vmatpush1.msra.mxu0 0.0
      %1574 = vmatprep.subr.mxu0 0.0
      %1575 = vmatpush1.msra.mxu0 0.0
      %1576 = vmatprep.subr.mxu0 0.0
      %1577 = vmatpush1.msra.mxu0 0.0
      %1578 = vmatprep.subr.mxu0 0.0
      %1579 = vmatpush1.msra.mxu0 0.0
      %1580 = vmatprep.subr.mxu0 0.0
      %1581 = vmatpush1.msra.mxu0 0.0
      %1582 = vmatprep.subr.mxu0 0.0
      %1583 = vmatpush1.msra.mxu0 0.0
      %1584 = vmatprep.subr.mxu0 0.0
      %1585 = vmatpush1.msra.mxu0 0.0
      %1586 = vmatprep.subr.mxu0 0.0
      %1587 = vmatpush1.msra.mxu0 0.0
      %1588 = vmatprep.subr.mxu0 0.0
      %1589 = vmatpush1.msra.mxu0 0.0
      %1590 = vmatprep.subr.mxu0 0.0
      %1591 = vmatpush1.msra.mxu0 0.0
      %1592 = vmatprep.subr.mxu0 0.0
      %1593 = vmatpush1.msra.mxu0 0.0
      %1594 = vmatprep.subr.mxu0 0.0
      %1595 = vmatpush1.msra.mxu0 0.0
      %1596 = vmatprep.subr.mxu0 0.0
      %1597 = vmatpush1.msra.mxu0 0.0
      %1598 = vmatprep.subr.mxu0 0.0
      %1599 = vmatpush1.msra.mxu0 0.0
      %1600 = vmatprep.subr.mxu0 0.0
      %1601 = vmatpush1.msra.mxu0 0.0
      %1602 = vmatprep.subr.mxu0 0.0
      %1603 = vmatpush1.msra.mxu0 0.0
      %1604 = vmatprep.subr.mxu0 0.0
      %1605 = vmatpush1.msra.mxu0 0.0
      %1606 = vmatprep.subr.mxu0 0.0
      %1607 = vmatpush1.msra.mxu0 0.0
      %1608 = vmatprep.subr.mxu0 0.0
      %1609 = vmatpush1.msra.mxu0 0.0
      %1610 = vmatprep.subr.mxu0 0.0
      %1611 = vmatpush1.msra.mxu0 0.0
      %1612 = vmatprep.subr.mxu0 0.0
      %1613 = vmatpush1.msra.mxu0 0.0
      %1614 = vmatprep.subr.mxu0 0.0
      %1615 = vmatpush1.msra.mxu0 0.0
      %1616 = vmatprep.subr.mxu0 0.0
      %1617 = vmatpush1.msra.mxu0 0.0
      %1618 = vmatprep.subr.mxu0 0.0
      %1619 = vmatpush1.msra.mxu0 0.0
      %1620 = vmatprep.subr.mxu0 0.0
      %1621 = vmatpush1.msra.mxu0 0.0
      %1622 = vmatprep.subr.mxu0 0.0
      %1623 = vmatpush1.msra.mxu0 0.0
      %1624 = vmatprep.subr.mxu0 0.0
      %1625 = vmatpush1.msra.mxu0 0.0
      %1626 = vmatprep.mubr.f32.mxu0 0.0
      %1627 = vmatmul.mubr.f32.gmra.mrb[0].mxu0 %v1560
      %v1628 = vpop.f32.mrb[0].mxu0
      %v1629 = vadd.f32 %v1558, %v1628
      %v1630 = vpop.f32.mrb[0].mxu0
      %1631 = vdwg.mxu0
      %1636 = vrot.lane.b32.xlu0 %v1547, 96
      %v1637 = vpop.permute.xlu0 %1636
      %1638 = vrot.lane.b32.xlu0 %v1548, 96
      %v1639 = vpop.permute.xlu0 %1638
      %1640 = vrot.lane.b32.xlu0 %v1549, 96
      %v1641 = vpop.permute.xlu0 %1640
      %1642 = vrot.lane.b32.xlu0 %v1550, 96
      %v1643 = vpop.permute.xlu0 %1642
      %1649 = vrot.lane.b32.xlu0 %v1558, 96
      %v1650 = vpop.permute.xlu0 %1649
      %v1653 = vsel %vm516, %v1545, 0
      %v1656 = vsel %vm516, %v1546, 0
      %1658 = vmatprep.subr.mxu0 0.0
      %1659 = vmatpush1.msra.mxu0 %v1637
      %1660 = vmatprep.subr.mxu0 0.0
      %1661 = vmatpush1.msra.mxu0 %v1639
      %1662 = vmatprep.subr.mxu0 0.0
      %1663 = vmatpush1.msra.mxu0 %v1641
      %1664 = vmatprep.subr.mxu0 0.0
      %1665 = vmatpush1.msra.mxu0 %v1643
      %1666 = vmatprep.subr.mxu0 0.0
      %1667 = vmatpush1.msra.mxu0 0.0
      %1668 = vmatprep.subr.mxu0 0.0
      %1669 = vmatpush1.msra.mxu0 0.0
      %1670 = vmatprep.subr.mxu0 0.0
      %1671 = vmatpush1.msra.mxu0 0.0
      %1672 = vmatprep.subr.mxu0 0.0
      %1673 = vmatpush1.msra.mxu0 0.0
      %1674 = vmatprep.subr.mxu0 0.0
      %1675 = vmatpush1.msra.mxu0 0.0
      %1676 = vmatprep.subr.mxu0 0.0
      %1677 = vmatpush1.msra.mxu0 0.0
      %1678 = vmatprep.subr.mxu0 0.0
      %1679 = vmatpush1.msra.mxu0 0.0
      %1680 = vmatprep.subr.mxu0 0.0
      %1681 = vmatpush1.msra.mxu0 0.0
      %1682 = vmatprep.subr.mxu0 0.0
      %1683 = vmatpush1.msra.mxu0 0.0
      %1684 = vmatprep.subr.mxu0 0.0
      %1685 = vmatpush1.msra.mxu0 0.0
      %1686 = vmatprep.subr.mxu0 0.0
      %1687 = vmatpush1.msra.mxu0 0.0
      %1688 = vmatprep.subr.mxu0 0.0
      %1689 = vmatpush1.msra.mxu0 0.0
      %1690 = vmatprep.subr.mxu0 0.0
      %1691 = vmatpush1.msra.mxu0 0.0
      %1692 = vmatprep.subr.mxu0 0.0
      %1693 = vmatpush1.msra.mxu0 0.0
      %1694 = vmatprep.subr.mxu0 0.0
      %1695 = vmatpush1.msra.mxu0 0.0
      %1696 = vmatprep.subr.mxu0 0.0
      %1697 = vmatpush1.msra.mxu0 0.0
      %1698 = vmatprep.subr.mxu0 0.0
      %1699 = vmatpush1.msra.mxu0 0.0
      %1700 = vmatprep.subr.mxu0 0.0
      %1701 = vmatpush1.msra.mxu0 0.0
      %1702 = vmatprep.subr.mxu0 0.0
      %1703 = vmatpush1.msra.mxu0 0.0
      %1704 = vmatprep.subr.mxu0 0.0
      %1705 = vmatpush1.msra.mxu0 0.0
      %1706 = vmatprep.subr.mxu0 0.0
      %1707 = vmatpush1.msra.mxu0 0.0
      %1708 = vmatprep.subr.mxu0 0.0
      %1709 = vmatpush1.msra.mxu0 0.0
      %1710 = vmatprep.subr.mxu0 0.0
      %1711 = vmatpush1.msra.mxu0 0.0
      %1712 = vmatprep.subr.mxu0 0.0
      %1713 = vmatpush1.msra.mxu0 0.0
      %1714 = vmatprep.subr.mxu0 0.0
      %1715 = vmatpush1.msra.mxu0 0.0
      %1716 = vmatprep.subr.mxu0 0.0
      %1717 = vmatpush1.msra.mxu0 0.0
      %1718 = vmatprep.subr.mxu0 0.0
      %1719 = vmatpush1.msra.mxu0 0.0
      %1720 = vmatprep.subr.mxu0 0.0
      %1721 = vmatpush1.msra.mxu0 0.0
      %1722 = vmatprep.mubr.f32.mxu0 0.0
      %1723 = vmatmul.mubr.f32.gmra.mrb[0].mxu0 %v1653
      %v1724 = vpop.f32.mrb[0].mxu0
      %v1725 = vadd.f32 %v1650, %v1724
      %v1726 = vpop.f32.mrb[0].mxu0
      %1727 = vmatprep.mubr.f32.mxu0 0.0
      %1728 = vmatmul.mubr.f32.gmra.mrb[0].mxu0 %v1656
      %v1729 = vpop.f32.mrb[0].mxu0
      %v1730 = vadd.f32 %v1650, %v1729
      %v1731 = vpop.f32.mrb[0].mxu0
      %1732 = vdwg.mxu0
      %1733 = vrot.lane.b32.xlu0 %v1547, 64
      %v1734 = vpop.permute.xlu0 %1733
      %1735 = vrot.lane.b32.xlu0 %v1548, 64
      %v1736 = vpop.permute.xlu0 %1735
      %1737 = vrot.lane.b32.xlu0 %v1549, 64
      %v1738 = vpop.permute.xlu0 %1737
      %1739 = vrot.lane.b32.xlu0 %v1550, 64
      %v1740 = vpop.permute.xlu0 %1739
      %1745 = vrot.lane.b32.xlu0 %v1558, 64
      %v1746 = vpop.permute.xlu0 %1745
      %v1749 = vsel %vm516, %v494, 0
      %v1752 = vsel %vm516, %v495, 0
      %1754 = vmatprep.subr.mxu0 0.0
      %1755 = vmatpush1.msra.mxu0 %v1734
      %1756 = vmatprep.subr.mxu0 0.0
      %1757 = vmatpush1.msra.mxu0 %v1736
      %1758 = vmatprep.subr.mxu0 0.0
      %1759 = vmatpush1.msra.mxu0 %v1738
      %1760 = vmatprep.subr.mxu0 0.0
      %1761 = vmatpush1.msra.mxu0 %v1740
      %1762 = vmatprep.subr.mxu0 0.0
      %1763 = vmatpush1.msra.mxu0 0.0
      %1764 = vmatprep.subr.mxu0 0.0
      %1765 = vmatpush1.msra.mxu0 0.0
      %1766 = vmatprep.subr.mxu0 0.0
      %1767 = vmatpush1.msra.mxu0 0.0
      %1768 = vmatprep.subr.mxu0 0.0
      %1769 = vmatpush1.msra.mxu0 0.0
      %1770 = vmatprep.subr.mxu0 0.0
      %1771 = vmatpush1.msra.mxu0 0.0
      %1772 = vmatprep.subr.mxu0 0.0
      %1773 = vmatpush1.msra.mxu0 0.0
      %1774 = vmatprep.subr.mxu0 0.0
      %1775 = vmatpush1.msra.mxu0 0.0
      %1776 = vmatprep.subr.mxu0 0.0
      %1777 = vmatpush1.msra.mxu0 0.0
      %1778 = vmatprep.subr.mxu0 0.0
      %1779 = vmatpush1.msra.mxu0 0.0
      %1780 = vmatprep.subr.mxu0 0.0
      %1781 = vmatpush1.msra.mxu0 0.0
      %1782 = vmatprep.subr.mxu0 0.0
      %1783 = vmatpush1.msra.mxu0 0.0
      %1784 = vmatprep.subr.mxu0 0.0
      %1785 = vmatpush1.msra.mxu0 0.0
      %1786 = vmatprep.subr.mxu0 0.0
      %1787 = vmatpush1.msra.mxu0 0.0
      %1788 = vmatprep.subr.mxu0 0.0
      %1789 = vmatpush1.msra.mxu0 0.0
      %1790 = vmatprep.subr.mxu0 0.0
      %1791 = vmatpush1.msra.mxu0 0.0
      %1792 = vmatprep.subr.mxu0 0.0
      %1793 = vmatpush1.msra.mxu0 0.0
      %1794 = vmatprep.subr.mxu0 0.0
      %1795 = vmatpush1.msra.mxu0 0.0
      %1796 = vmatprep.subr.mxu0 0.0
      %1797 = vmatpush1.msra.mxu0 0.0
      %1798 = vmatprep.subr.mxu0 0.0
      %1799 = vmatpush1.msra.mxu0 0.0
      %1800 = vmatprep.subr.mxu0 0.0
      %1801 = vmatpush1.msra.mxu0 0.0
      %1802 = vmatprep.subr.mxu0 0.0
      %1803 = vmatpush1.msra.mxu0 0.0
      %1804 = vmatprep.subr.mxu0 0.0
      %1805 = vmatpush1.msra.mxu0 0.0
      %1806 = vmatprep.subr.mxu0 0.0
      %1807 = vmatpush1.msra.mxu0 0.0
      %1808 = vmatprep.subr.mxu0 0.0
      %1809 = vmatpush1.msra.mxu0 0.0
      %1810 = vmatprep.subr.mxu0 0.0
      %1811 = vmatpush1.msra.mxu0 0.0
      %1812 = vmatprep.subr.mxu0 0.0
      %1813 = vmatpush1.msra.mxu0 0.0
      %1814 = vmatprep.subr.mxu0 0.0
      %1815 = vmatpush1.msra.mxu0 0.0
      %1816 = vmatprep.subr.mxu0 0.0
      %1817 = vmatpush1.msra.mxu0 0.0
      %1818 = vmatprep.mubr.f32.mxu0 0.0
      %1819 = vmatmul.mubr.f32.gmra.mrb[0].mxu0 %v1749
      %v1820 = vpop.f32.mrb[0].mxu0
      %v1821 = vadd.f32 %v1746, %v1820
      %v1822 = vpop.f32.mrb[0].mxu0
      %1823 = vmatprep.mubr.f32.mxu0 0.0
      %1824 = vmatmul.mubr.f32.gmra.mrb[0].mxu0 %v1752
      %v1825 = vpop.f32.mrb[0].mxu0
      %v1826 = vadd.f32 %v1746, %v1825
      %v1827 = vpop.f32.mrb[0].mxu0
      %1828 = vdwg.mxu0
      %v1830 = vsel %vm768, %v1629, 0
      %v1833 = vsel %vm768, %v1725, 0
      %v1836 = vsel %vm768, %v1730, 0
      %1838 = vmatprep.subr.mxu0 0.0
      %1839 = vmatpush1.xpose.msra.mxu0 %v1833
      %1840 = vmatprep.subr.mxu0 0.0
      %1841 = vmatpush1.xpose.msra.mxu0 %v1836
      %1842 = vmatprep.subr.mxu0 0.0
      %1843 = vmatpush1.xpose.msra.mxu0 0.0
      %1844 = vmatprep.subr.mxu0 0.0
      %1845 = vmatpush1.xpose.msra.mxu0 0.0
      %1846 = vmatprep.subr.mxu0 0.0
      %1847 = vmatpush1.xpose.msra.mxu0 0.0
      %1848 = vmatprep.subr.mxu0 0.0
      %1849 = vmatpush1.xpose.msra.mxu0 0.0
      %1850 = vmatprep.subr.mxu0 0.0
      %1851 = vmatpush1.xpose.msra.mxu0 0.0
      %1852 = vmatprep.subr.mxu0 0.0
      %1853 = vmatpush1.xpose.msra.mxu0 0.0
      %1854 = vmatprep.subr.mxu0 0.0
      %1855 = vmatpush1.xpose.msra.mxu0 0.0
      %1856 = vmatprep.subr.mxu0 0.0
      %1857 = vmatpush1.xpose.msra.mxu0 0.0
      %1858 = vmatprep.subr.mxu0 0.0
      %1859 = vmatpush1.xpose.msra.mxu0 0.0
      %1860 = vmatprep.subr.mxu0 0.0
      %1861 = vmatpush1.xpose.msra.mxu0 0.0
      %1862 = vmatprep.subr.mxu0 0.0
      %1863 = vmatpush1.xpose.msra.mxu0 0.0
      %1864 = vmatprep.subr.mxu0 0.0
      %1865 = vmatpush1.xpose.msra.mxu0 0.0
      %1866 = vmatprep.subr.mxu0 0.0
      %1867 = vmatpush1.xpose.msra.mxu0 0.0
      %1868 = vmatprep.subr.mxu0 0.0
      %1869 = vmatpush1.xpose.msra.mxu0 0.0
      %1870 = vmatprep.subr.mxu0 0.0
      %1871 = vmatpush1.xpose.msra.mxu0 0.0
      %1872 = vmatprep.subr.mxu0 0.0
      %1873 = vmatpush1.xpose.msra.mxu0 0.0
      %1874 = vmatprep.subr.mxu0 0.0
      %1875 = vmatpush1.xpose.msra.mxu0 0.0
      %1876 = vmatprep.subr.mxu0 0.0
      %1877 = vmatpush1.xpose.msra.mxu0 0.0
      %1878 = vmatprep.subr.mxu0 0.0
      %1879 = vmatpush1.xpose.msra.mxu0 0.0
      %1880 = vmatprep.subr.mxu0 0.0
      %1881 = vmatpush1.xpose.msra.mxu0 0.0
      %1882 = vmatprep.subr.mxu0 0.0
      %1883 = vmatpush1.xpose.msra.mxu0 0.0
      %1884 = vmatprep.subr.mxu0 0.0
      %1885 = vmatpush1.xpose.msra.mxu0 0.0
      %1886 = vmatprep.subr.mxu0 0.0
      %1887 = vmatpush1.xpose.msra.mxu0 0.0
      %1888 = vmatprep.subr.mxu0 0.0
      %1889 = vmatpush1.xpose.msra.mxu0 0.0
      %1890 = vmatprep.subr.mxu0 0.0
      %1891 = vmatpush1.xpose.msra.mxu0 0.0
      %1892 = vmatprep.subr.mxu0 0.0
      %1893 = vmatpush1.xpose.msra.mxu0 0.0
      %1894 = vmatprep.subr.mxu0 0.0
      %1895 = vmatpush1.xpose.msra.mxu0 0.0
      %1896 = vmatprep.subr.mxu0 0.0
      %1897 = vmatpush1.xpose.msra.mxu0 0.0
      %1898 = vmatprep.subr.mxu0 0.0
      %1899 = vmatpush1.xpose.msra.mxu0 0.0
      %1900 = vmatprep.subr.mxu0 0.0
      %1901 = vmatpush1.xpose.msra.mxu0 0.0
      %1902 = vmatprep.mubr.f32.mxu0 0.0
      %1903 = vmatmul.mubr.f32.gmra.mrb[0].mxu0 %v1830
      %v1904 = vpop.f32.mrb[0].mxu0
      %v1905 = vadd.f32 0.0, %v1904
      %v1906 = vpop.f32.mrb[0].mxu0
      %1907 = vdwg.mxu0
      %v1908 = vsel %vm1438, %v1905, -inf
      %1909 = vmax.xlane.f32.xlu0 %v1908
      %v1910 = vpop.xlane.xlu0 %1909
      %v1911 = vsub.f32 %v1905, %v1910
      %v1912 = vmul.f32 %v1911, 1.442695
      %v1913 = vpow.pop %v1912
      %v1914 = vsel %vm1438, %v1913, 0.0
      %1915 = vadd.xlane.f32.xlu0 %v1914
      %v1916 = vpop.xlane.xlu0 %1915
      %v1917 = vrcp.pop %v1916
      %v1918 = vmul.f32 %v1913, %v1917
      %v1920 = vsel %vm1438, %v1918, 0
      %1922 = vmatprep.subr.mxu0 0.0
      %1923 = vmatpush1.msra.mxu0 %v1821
      %1924 = vmatprep.subr.mxu0 0.0
      %1925 = vmatpush1.msra.mxu0 %v1826
      %1926 = vmatprep.subr.mxu0 0.0
      %1927 = vmatpush1.msra.mxu0 0.0
      %1928 = vmatprep.subr.mxu0 0.0
      %1929 = vmatpush1.msra.mxu0 0.0
      %1930 = vmatprep.subr.mxu0 0.0
      %1931 = vmatpush1.msra.mxu0 0.0
      %1932 = vmatprep.subr.mxu0 0.0
      %1933 = vmatpush1.msra.mxu0 0.0
      %1934 = vmatprep.subr.mxu0 0.0
      %1935 = vmatpush1.msra.mxu0 0.0
      %1936 = vmatprep.subr.mxu0 0.0
      %1937 = vmatpush1.msra.mxu0 0.0
      %1938 = vmatprep.subr.mxu0 0.0
      %1939 = vmatpush1.msra.mxu0 0.0
      %1940 = vmatprep.subr.mxu0 0.0
      %1941 = vmatpush1.msra.mxu0 0.0
      %1942 = vmatprep.subr.mxu0 0.0
      %1943 = vmatpush1.msra.mxu0 0.0
      %1944 = vmatprep.subr.mxu0 0.0
      %1945 = vmatpush1.msra.mxu0 0.0
      %1946 = vmatprep.subr.mxu0 0.0
      %1947 = vmatpush1.msra.mxu0 0.0
      %1948 = vmatprep.subr.mxu0 0.0
      %1949 = vmatpush1.msra.mxu0 0.0
      %1950 = vmatprep.subr.mxu0 0.0
      %1951 = vmatpush1.msra.mxu0 0.0
      %1952 = vmatprep.subr.mxu0 0.0
      %1953 = vmatpush1.msra.mxu0 0.0
      %1954 = vmatprep.subr.mxu0 0.0
      %1955 = vmatpush1.msra.mxu0 0.0
      %1956 = vmatprep.subr.mxu0 0.0
      %1957 = vmatpush1.msra.mxu0 0.0
      %1958 = vmatprep.subr.mxu0 0.0
      %1959 = vmatpush1.msra.mxu0 0.0
      %1960 = vmatprep.subr.mxu0 0.0
      %1961 = vmatpush1.msra.mxu0 0.0
      %1962 = vmatprep.subr.mxu0 0.0
      %1963 = vmatpush1.msra.mxu0 0.0
      %1964 = vmatprep.subr.mxu0 0.0
      %1965 = vmatpush1.msra.mxu0 0.0
      %1966 = vmatprep.subr.mxu0 0.0
      %1967 = vmatpush1.msra.mxu0 0.0
      %1968 = vmatprep.subr.mxu0 0.0
      %1969 = vmatpush1.msra.mxu0 0.0
      %1970 = vmatprep.subr.mxu0 0.0
      %1971 = vmatpush1.msra.mxu0 0.0
      %1972 = vmatprep.subr.mxu0 0.0
      %1973 = vmatpush1.msra.mxu0 0.0
      %1974 = vmatprep.subr.mxu0 0.0
      %1975 = vmatpush1.msra.mxu0 0.0
      %1976 = vmatprep.subr.mxu0 0.0
      %1977 = vmatpush1.msra.mxu0 0.0
      %1978 = vmatprep.subr.mxu0 0.0
      %1979 = vmatpush1.msra.mxu0 0.0
      %1980 = vmatprep.subr.mxu0 0.0
      %1981 = vmatpush1.msra.mxu0 0.0
      %1982 = vmatprep.subr.mxu0 0.0
      %1983 = vmatpush1.msra.mxu0 0.0
      %1984 = vmatprep.subr.mxu0 0.0
      %1985 = vmatpush1.msra.mxu0 0.0
      %1986 = vmatprep.mubr.f32.mxu0 0.0
      %1987 = vmatmul.mubr.f32.gmra.mrb[0].mxu0 %v1920
      %v1988 = vpop.f32.mrb[0].mxu0
      %v1989 = vadd.f32 0.0, %v1988
      %v1990 = vpop.f32.mrb[0].mxu0
      %1991 = vdwg.mxu0
      %1992 = vrot.lane.b32.xlu0 %v1629, 120
      %v1993 = vpop.permute.xlu0 %1992
      %1994 = vrot.lane.b32.xlu0 %v1725, 120
      %v1995 = vpop.permute.xlu0 %1994
      %1996 = vrot.lane.b32.xlu0 %v1730, 120
      %v1997 = vpop.permute.xlu0 %1996
      %v1998 = vsel %vm768, %v1993, 0
      %v2000 = vsel %vm768, %v1995, 0
      %v2002 = vsel %vm768, %v1997, 0
      %2004 = vmatprep.subr.mxu0 0.0
      %2005 = vmatpush1.xpose.msra.mxu0 %v2000
      %2006 = vmatprep.subr.mxu0 0.0
      %2007 = vmatpush1.xpose.msra.mxu0 %v2002
      %2008 = vmatprep.subr.mxu0 0.0
      %2009 = vmatpush1.xpose.msra.mxu0 0.0
      %2010 = vmatprep.subr.mxu0 0.0
      %2011 = vmatpush1.xpose.msra.mxu0 0.0
      %2012 = vmatprep.subr.mxu0 0.0
      %2013 = vmatpush1.xpose.msra.mxu0 0.0
      %2014 = vmatprep.subr.mxu0 0.0
      %2015 = vmatpush1.xpose.msra.mxu0 0.0
      %2016 = vmatprep.subr.mxu0 0.0
      %2017 = vmatpush1.xpose.msra.mxu0 0.0
      %2018 = vmatprep.subr.mxu0 0.0
      %2019 = vmatpush1.xpose.msra.mxu0 0.0
      %2020 = vmatprep.subr.mxu0 0.0
      %2021 = vmatpush1.xpose.msra.mxu0 0.0
      %2022 = vmatprep.subr.mxu0 0.0
      %2023 = vmatpush1.xpose.msra.mxu0 0.0
      %2024 = vmatprep.subr.mxu0 0.0
      %2025 = vmatpush1.xpose.msra.mxu0 0.0
      %2026 = vmatprep.subr.mxu0 0.0
      %2027 = vmatpush1.xpose.msra.mxu0 0.0
      %2028 = vmatprep.subr.mxu0 0.0
      %2029 = vmatpush1.xpose.msra.mxu0 0.0
      %2030 = vmatprep.subr.mxu0 0.0
      %2031 = vmatpush1.xpose.msra.mxu0 0.0
      %2032 = vmatprep.subr.mxu0 0.0
      %2033 = vmatpush1.xpose.msra.mxu0 0.0
      %2034 = vmatprep.subr.mxu0 0.0
      %2035 = vmatpush1.xpose.msra.mxu0 0.0
      %2036 = vmatprep.subr.mxu0 0.0
      %2037 = vmatpush1.xpose.msra.mxu0 0.0
      %2038 = vmatprep.subr.mxu0 0.0
      %2039 = vmatpush1.xpose.msra.mxu0 0.0
      %2040 = vmatprep.subr.mxu0 0.0
      %2041 = vmatpush1.xpose.msra.mxu0 0.0
      %2042 = vmatprep.subr.mxu0 0.0
      %2043 = vmatpush1.xpose.msra.mxu0 0.0
      %2044 = vmatprep.subr.mxu0 0.0
      %2045 = vmatpush1.xpose.msra.mxu0 0.0
      %2046 = vmatprep.subr.mxu0 0.0
      %2047 = vmatpush1.xpose.msra.mxu0 0.0
      %2048 = vmatprep.subr.mxu0 0.0
      %2049 = vmatpush1.xpose.msra.mxu0 0.0
      %2050 = vmatprep.subr.mxu0 0.0
      %2051 = vmatpush1.xpose.msra.mxu0 0.0
      %2052 = vmatprep.subr.mxu0 0.0
      %2053 = vmatpush1.xpose.msra.mxu0 0.0
      %2054 = vmatprep.subr.mxu0 0.0
      %2055 = vmatpush1.xpose.msra.mxu0 0.0
      %2056 = vmatprep.subr.mxu0 0.0
      %2057 = vmatpush1.xpose.msra.mxu0 0.0
      %2058 = vmatprep.subr.mxu0 0.0
      %2059 = vmatpush1.xpose.msra.mxu0 0.0
      %2060 = vmatprep.subr.mxu0 0.0
      %2061 = vmatpush1.xpose.msra.mxu0 0.0
      %2062 = vmatprep.subr.mxu0 0.0
      %2063 = vmatpush1.xpose.msra.mxu0 0.0
      %2064 = vmatprep.subr.mxu0 0.0
      %2065 = vmatpush1.xpose.msra.mxu0 0.0
      %2066 = vmatprep.subr.mxu0 0.0
      %2067 = vmatpush1.xpose.msra.mxu0 0.0
      %2068 = vmatprep.mubr.f32.mxu0 0.0
      %2069 = vmatmul.mubr.f32.gmra.mrb[0].mxu0 %v1998
      %v2070 = vpop.f32.mrb[0].mxu0
      %v2071 = vadd.f32 0.0, %v2070
      %v2072 = vpop.f32.mrb[0].mxu0
      %2073 = vdwg.mxu0
      %v2074 = vsel %vm1438, %v2071, -inf
      %2075 = vmax.xlane.f32.xlu0 %v2074
      %v2076 = vpop.xlane.xlu0 %2075
      %v2077 = vsub.f32 %v2071, %v2076
      %v2078 = vmul.f32 %v2077, 1.442695
      %v2079 = vpow.pop %v2078
      %v2080 = vsel %vm1438, %v2079, 0.0
      %2081 = vadd.xlane.f32.xlu0 %v2080
      %v2082 = vpop.xlane.xlu0 %2081
      %v2083 = vrcp.pop %v2082
      %v2084 = vmul.f32 %v2079, %v2083
      %2087 = vrot.lane.b32.xlu0 %v1821, 120
      %v2088 = vpop.permute.xlu0 %2087
      %2089 = vrot.lane.b32.xlu0 %v1826, 120
      %v2090 = vpop.permute.xlu0 %2089
      %v2094 = vsel %vm1438, %v2084, 0
      %2096 = vmatprep.subr.mxu0 0.0
      %2097 = vmatpush1.msra.mxu0 %v2088
      %2098 = vmatprep.subr.mxu0 0.0
      %2099 = vmatpush1.msra.mxu0 %v2090
      %2100 = vmatprep.subr.mxu0 0.0
      %2101 = vmatpush1.msra.mxu0 0.0
      %2102 = vmatprep.subr.mxu0 0.0
      %2103 = vmatpush1.msra.mxu0 0.0
      %2104 = vmatprep.subr.mxu0 0.0
      %2105 = vmatpush1.msra.mxu0 0.0
      %2106 = vmatprep.subr.mxu0 0.0
      %2107 = vmatpush1.msra.mxu0 0.0
      %2108 = vmatprep.subr.mxu0 0.0
      %2109 = vmatpush1.msra.mxu0 0.0
      %2110 = vmatprep.subr.mxu0 0.0
      %2111 = vmatpush1.msra.mxu0 0.0
      %2112 = vmatprep.subr.mxu0 0.0
      %2113 = vmatpush1.msra.mxu0 0.0
      %2114 = vmatprep.subr.mxu0 0.0
      %2115 = vmatpush1.msra.mxu0 0.0
      %2116 = vmatprep.subr.mxu0 0.0
      %2117 = vmatpush1.msra.mxu0 0.0
      %2118 = vmatprep.subr.mxu0 0.0
      %2119 = vmatpush1.msra.mxu0 0.0
      %2120 = vmatprep.subr.mxu0 0.0
      %2121 = vmatpush1.msra.mxu0 0.0
      %2122 = vmatprep.subr.mxu0 0.0
      %2123 = vmatpush1.msra.mxu0 0.0
      %2124 = vmatprep.subr.mxu0 0.0
      %2125 = vmatpush1.msra.mxu0 0.0
      %2126 = vmatprep.subr.mxu0 0.0
      %2127 = vmatpush1.msra.mxu0 0.0
      %2128 = vmatprep.subr.mxu0 0.0
      %2129 = vmatpush1.msra.mxu0 0.0
      %2130 = vmatprep.subr.mxu0 0.0
      %2131 = vmatpush1.msra.mxu0 0.0
      %2132 = vmatprep.subr.mxu0 0.0
      %2133 = vmatpush1.msra.mxu0 0.0
      %2134 = vmatprep.subr.mxu0 0.0
      %2135 = vmatpush1.msra.mxu0 0.0
      %2136 = vmatprep.subr.mxu0 0.0
      %2137 = vmatpush1.msra.mxu0 0.0
      %2138 = vmatprep.subr.mxu0 0.0
      %2139 = vmatpush1.msra.mxu0 0.0
      %2140 = vmatprep.subr.mxu0 0.0
      %2141 = vmatpush1.msra.mxu0 0.0
      %2142 = vmatprep.subr.mxu0 0.0
      %2143 = vmatpush1.msra.mxu0 0.0
      %2144 = vmatprep.subr.mxu0 0.0
      %2145 = vmatpush1.msra.mxu0 0.0
      %2146 = vmatprep.subr.mxu0 0.0
      %2147 = vmatpush1.msra.mxu0 0.0
      %2148 = vmatprep.subr.mxu0 0.0
      %2149 = vmatpush1.msra.mxu0 0.0
      %2150 = vmatprep.subr.mxu0 0.0
      %2151 = vmatpush1.msra.mxu0 0.0
      %2152 = vmatprep.subr.mxu0 0.0
      %2153 = vmatpush1.msra.mxu0 0.0
      %2154 = vmatprep.subr.mxu0 0.0
      %2155 = vmatpush1.msra.mxu0 0.0
      %2156 = vmatprep.subr.mxu0 0.0
      %2157 = vmatpush1.msra.mxu0 0.0
      %2158 = vmatprep.subr.mxu0 0.0
      %2159 = vmatpush1.msra.mxu0 0.0
      %2160 = vmatprep.mubr.f32.mxu0 0.0
      %2161 = vmatmul.mubr.f32.gmra.mrb[0].mxu0 %v2094
      %v2162 = vpop.f32.mrb[0].mxu0
      %v2163 = vadd.f32 0.0, %v2162
      %v2164 = vpop.f32.mrb[0].mxu0
      %2165 = vdwg.mxu0
      %2166 = vrot.lane.b32.xlu0 %v1629, 112
      %v2167 = vpop.permute.xlu0 %2166
      %2168 = vrot.lane.b32.xlu0 %v1725, 112
      %v2169 = vpop.permute.xlu0 %2168
      %2170 = vrot.lane.b32.xlu0 %v1730, 112
      %v2171 = vpop.permute.xlu0 %2170
      %v2172 = vsel %vm768, %v2167, 0
      %v2174 = vsel %vm768, %v2169, 0
      %v2176 = vsel %vm768, %v2171, 0
      %2178 = vmatprep.subr.mxu0 0.0
      %2179 = vmatpush1.xpose.msra.mxu0 %v2174
      %2180 = vmatprep.subr.mxu0 0.0
      %2181 = vmatpush1.xpose.msra.mxu0 %v2176
      %2182 = vmatprep.subr.mxu0 0.0
      %2183 = vmatpush1.xpose.msra.mxu0 0.0
      %2184 = vmatprep.subr.mxu0 0.0
      %2185 = vmatpush1.xpose.msra.mxu0 0.0
      %2186 = vmatprep.subr.mxu0 0.0
      %2187 = vmatpush1.xpose.msra.mxu0 0.0
      %2188 = vmatprep.subr.mxu0 0.0
      %2189 = vmatpush1.xpose.msra.mxu0 0.0
      %2190 = vmatprep.subr.mxu0 0.0
      %2191 = vmatpush1.xpose.msra.mxu0 0.0
      %2192 = vmatprep.subr.mxu0 0.0
      %2193 = vmatpush1.xpose.msra.mxu0 0.0
      %2194 = vmatprep.subr.mxu0 0.0
      %2195 = vmatpush1.xpose.msra.mxu0 0.0
      %2196 = vmatprep.subr.mxu0 0.0
      %2197 = vmatpush1.xpose.msra.mxu0 0.0
      %2198 = vmatprep.subr.mxu0 0.0
      %2199 = vmatpush1.xpose.msra.mxu0 0.0
      %2200 = vmatprep.subr.mxu0 0.0
      %2201 = vmatpush1.xpose.msra.mxu0 0.0
      %2202 = vmatprep.subr.mxu0 0.0
      %2203 = vmatpush1.xpose.msra.mxu0 0.0
      %2204 = vmatprep.subr.mxu0 0.0
      %2205 = vmatpush1.xpose.msra.mxu0 0.0
      %2206 = vmatprep.subr.mxu0 0.0
      %2207 = vmatpush1.xpose.msra.mxu0 0.0
      %2208 = vmatprep.subr.mxu0 0.0
      %2209 = vmatpush1.xpose.msra.mxu0 0.0
      %2210 = vmatprep.subr.mxu0 0.0
      %2211 = vmatpush1.xpose.msra.mxu0 0.0
      %2212 = vmatprep.subr.mxu0 0.0
      %2213 = vmatpush1.xpose.msra.mxu0 0.0
      %2214 = vmatprep.subr.mxu0 0.0
      %2215 = vmatpush1.xpose.msra.mxu0 0.0
      %2216 = vmatprep.subr.mxu0 0.0
      %2217 = vmatpush1.xpose.msra.mxu0 0.0
      %2218 = vmatprep.subr.mxu0 0.0
      %2219 = vmatpush1.xpose.msra.mxu0 0.0
      %2220 = vmatprep.subr.mxu0 0.0
      %2221 = vmatpush1.xpose.msra.mxu0 0.0
      %2222 = vmatprep.subr.mxu0 0.0
      %2223 = vmatpush1.xpose.msra.mxu0 0.0
      %2224 = vmatprep.subr.mxu0 0.0
      %2225 = vmatpush1.xpose.msra.mxu0 0.0
      %2226 = vmatprep.subr.mxu0 0.0
      %2227 = vmatpush1.xpose.msra.mxu0 0.0
      %2228 = vmatprep.subr.mxu0 0.0
      %2229 = vmatpush1.xpose.msra.mxu0 0.0
      %2230 = vmatprep.subr.mxu0 0.0
      %2231 = vmatpush1.xpose.msra.mxu0 0.0
      %2232 = vmatprep.subr.mxu0 0.0
      %2233 = vmatpush1.xpose.msra.mxu0 0.0
      %2234 = vmatprep.subr.mxu0 0.0
      %2235 = vmatpush1.xpose.msra.mxu0 0.0
      %2236 = vmatprep.subr.mxu0 0.0
      %2237 = vmatpush1.xpose.msra.mxu0 0.0
      %2238 = vmatprep.subr.mxu0 0.0
      %2239 = vmatpush1.xpose.msra.mxu0 0.0
      %2240 = vmatprep.subr.mxu0 0.0
      %2241 = vmatpush1.xpose.msra.mxu0 0.0
      %2242 = vmatprep.mubr.f32.mxu0 0.0
      %2243 = vmatmul.mubr.f32.gmra.mrb[0].mxu0 %v2172
      %v2244 = vpop.f32.mrb[0].mxu0
      %v2245 = vadd.f32 0.0, %v2244
      %v2246 = vpop.f32.mrb[0].mxu0
      %2247 = vdwg.mxu0
      %v2248 = vsel %vm1438, %v2245, -inf
      %2249 = vmax.xlane.f32.xlu0 %v2248
      %v2250 = vpop.xlane.xlu0 %2249
      %v2251 = vsub.f32 %v2245, %v2250
      %v2252 = vmul.f32 %v2251, 1.442695
      %v2253 = vpow.pop %v2252
      %v2254 = vsel %vm1438, %v2253, 0.0
      %2255 = vadd.xlane.f32.xlu0 %v2254
      %v2256 = vpop.xlane.xlu0 %2255
      %v2257 = vrcp.pop %v2256
      %v2258 = vmul.f32 %v2253, %v2257
      %2259 = vrot.lane.b32.xlu0 %v1821, 112
      %v2260 = vpop.permute.xlu0 %2259
      %2261 = vrot.lane.b32.xlu0 %v1826, 112
      %v2262 = vpop.permute.xlu0 %2261
      %v2266 = vsel %vm1438, %v2258, 0
      %2268 = vmatprep.subr.mxu0 0.0
      %2269 = vmatpush1.msra.mxu0 %v2260
      %2270 = vmatprep.subr.mxu0 0.0
      %2271 = vmatpush1.msra.mxu0 %v2262
      %2272 = vmatprep.subr.mxu0 0.0
      %2273 = vmatpush1.msra.mxu0 0.0
      %2274 = vmatprep.subr.mxu0 0.0
      %2275 = vmatpush1.msra.mxu0 0.0
      %2276 = vmatprep.subr.mxu0 0.0
      %2277 = vmatpush1.msra.mxu0 0.0
      %2278 = vmatprep.subr.mxu0 0.0
      %2279 = vmatpush1.msra.mxu0 0.0
      %2280 = vmatprep.subr.mxu0 0.0
      %2281 = vmatpush1.msra.mxu0 0.0
      %2282 = vmatprep.subr.mxu0 0.0
      %2283 = vmatpush1.msra.mxu0 0.0
      %2284 = vmatprep.subr.mxu0 0.0
      %2285 = vmatpush1.msra.mxu0 0.0
      %2286 = vmatprep.subr.mxu0 0.0
      %2287 = vmatpush1.msra.mxu0 0.0
      %2288 = vmatprep.subr.mxu0 0.0
      %2289 = vmatpush1.msra.mxu0 0.0
      %2290 = vmatprep.subr.mxu0 0.0
      %2291 = vmatpush1.msra.mxu0 0.0
      %2292 = vmatprep.subr.mxu0 0.0
      %2293 = vmatpush1.msra.mxu0 0.0
      %2294 = vmatprep.subr.mxu0 0.0
      %2295 = vmatpush1.msra.mxu0 0.0
      %2296 = vmatprep.subr.mxu0 0.0
      %2297 = vmatpush1.msra.mxu0 0.0
      %2298 = vmatprep.subr.mxu0 0.0
      %2299 = vmatpush1.msra.mxu0 0.0
      %2300 = vmatprep.subr.mxu0 0.0
      %2301 = vmatpush1.msra.mxu0 0.0
      %2302 = vmatprep.subr.mxu0 0.0
      %2303 = vmatpush1.msra.mxu0 0.0
      %2304 = vmatprep.subr.mxu0 0.0
      %2305 = vmatpush1.msra.mxu0 0.0
      %2306 = vmatprep.subr.mxu0 0.0
      %2307 = vmatpush1.msra.mxu0 0.0
      %2308 = vmatprep.subr.mxu0 0.0
      %2309 = vmatpush1.msra.mxu0 0.0
      %2310 = vmatprep.subr.mxu0 0.0
      %2311 = vmatpush1.msra.mxu0 0.0
      %2312 = vmatprep.subr.mxu0 0.0
      %2313 = vmatpush1.msra.mxu0 0.0
      %2314 = vmatprep.subr.mxu0 0.0
      %2315 = vmatpush1.msra.mxu0 0.0
      %2316 = vmatprep.subr.mxu0 0.0
      %2317 = vmatpush1.msra.mxu0 0.0
      %2318 = vmatprep.subr.mxu0 0.0
      %2319 = vmatpush1.msra.mxu0 0.0
      %2320 = vmatprep.subr.mxu0 0.0
      %2321 = vmatpush1.msra.mxu0 0.0
      %2322 = vmatprep.subr.mxu0 0.0
      %2323 = vmatpush1.msra.mxu0 0.0
      %2324 = vmatprep.subr.mxu0 0.0
      %2325 = vmatpush1.msra.mxu0 0.0
      %2326 = vmatprep.subr.mxu0 0.0
      %2327 = vmatpush1.msra.mxu0 0.0
      %2328 = vmatprep.subr.mxu0 0.0
      %2329 = vmatpush1.msra.mxu0 0.0
      %2330 = vmatprep.subr.mxu0 0.0
      %2331 = vmatpush1.msra.mxu0 0.0
      %2332 = vmatprep.mubr.f32.mxu0 0.0
      %2333 = vmatmul.mubr.f32.gmra.mrb[0].mxu0 %v2266
      %v2334 = vpop.f32.mrb[0].mxu0
      %v2335 = vadd.f32 0.0, %v2334
      %v2336 = vpop.f32.mrb[0].mxu0
      %2337 = vdwg.mxu0
      %2338 = vrot.lane.b32.xlu0 %v1629, 104
      %v2339 = vpop.permute.xlu0 %2338
      %2340 = vrot.lane.b32.xlu0 %v1725, 104
      %v2341 = vpop.permute.xlu0 %2340
      %2342 = vrot.lane.b32.xlu0 %v1730, 104
      %v2343 = vpop.permute.xlu0 %2342
      %v2344 = vsel %vm768, %v2339, 0
      %v2346 = vsel %vm768, %v2341, 0
      %v2348 = vsel %vm768, %v2343, 0
      %2350 = vmatprep.subr.mxu0 0.0
      %2351 = vmatpush1.xpose.msra.mxu0 %v2346
      %2352 = vmatprep.subr.mxu0 0.0
      %2353 = vmatpush1.xpose.msra.mxu0 %v2348
      %2354 = vmatprep.subr.mxu0 0.0
      %2355 = vmatpush1.xpose.msra.mxu0 0.0
      %2356 = vmatprep.subr.mxu0 0.0
      %2357 = vmatpush1.xpose.msra.mxu0 0.0
      %2358 = vmatprep.subr.mxu0 0.0
      %2359 = vmatpush1.xpose.msra.mxu0 0.0
      %2360 = vmatprep.subr.mxu0 0.0
      %2361 = vmatpush1.xpose.msra.mxu0 0.0
      %2362 = vmatprep.subr.mxu0 0.0
      %2363 = vmatpush1.xpose.msra.mxu0 0.0
      %2364 = vmatprep.subr.mxu0 0.0
      %2365 = vmatpush1.xpose.msra.mxu0 0.0
      %2366 = vmatprep.subr.mxu0 0.0
      %2367 = vmatpush1.xpose.msra.mxu0 0.0
      %2368 = vmatprep.subr.mxu0 0.0
      %2369 = vmatpush1.xpose.msra.mxu0 0.0
      %2370 = vmatprep.subr.mxu0 0.0
      %2371 = vmatpush1.xpose.msra.mxu0 0.0
      %2372 = vmatprep.subr.mxu0 0.0
      %2373 = vmatpush1.xpose.msra.mxu0 0.0
      %2374 = vmatprep.subr.mxu0 0.0
      %2375 = vmatpush1.xpose.msra.mxu0 0.0
      %2376 = vmatprep.subr.mxu0 0.0
      %2377 = vmatpush1.xpose.msra.mxu0 0.0
      %2378 = vmatprep.subr.mxu0 0.0
      %2379 = vmatpush1.xpose.msra.mxu0 0.0
      %2380 = vmatprep.subr.mxu0 0.0
      %2381 = vmatpush1.xpose.msra.mxu0 0.0
      %2382 = vmatprep.subr.mxu0 0.0
      %2383 = vmatpush1.xpose.msra.mxu0 0.0
      %2384 = vmatprep.subr.mxu0 0.0
      %2385 = vmatpush1.xpose.msra.mxu0 0.0
      %2386 = vmatprep.subr.mxu0 0.0
      %2387 = vmatpush1.xpose.msra.mxu0 0.0
      %2388 = vmatprep.subr.mxu0 0.0
      %2389 = vmatpush1.xpose.msra.mxu0 0.0
      %2390 = vmatprep.subr.mxu0 0.0
      %2391 = vmatpush1.xpose.msra.mxu0 0.0
      %2392 = vmatprep.subr.mxu0 0.0
      %2393 = vmatpush1.xpose.msra.mxu0 0.0
      %2394 = vmatprep.subr.mxu0 0.0
      %2395 = vmatpush1.xpose.msra.mxu0 0.0
      %2396 = vmatprep.subr.mxu0 0.0
      %2397 = vmatpush1.xpose.msra.mxu0 0.0
      %2398 = vmatprep.subr.mxu0 0.0
      %2399 = vmatpush1.xpose.msra.mxu0 0.0
      %2400 = vmatprep.subr.mxu0 0.0
      %2401 = vmatpush1.xpose.msra.mxu0 0.0
      %2402 = vmatprep.subr.mxu0 0.0
      %2403 = vmatpush1.xpose.msra.mxu0 0.0
      %2404 = vmatprep.subr.mxu0 0.0
      %2405 = vmatpush1.xpose.msra.mxu0 0.0
      %2406 = vmatprep.subr.mxu0 0.0
      %2407 = vmatpush1.xpose.msra.mxu0 0.0
      %2408 = vmatprep.subr.mxu0 0.0
      %2409 = vmatpush1.xpose.msra.mxu0 0.0
      %2410 = vmatprep.subr.mxu0 0.0
      %2411 = vmatpush1.xpose.msra.mxu0 0.0
      %2412 = vmatprep.subr.mxu0 0.0
      %2413 = vmatpush1.xpose.msra.mxu0 0.0
      %2414 = vmatprep.mubr.f32.mxu0 0.0
      %2415 = vmatmul.mubr.f32.gmra.mrb[0].mxu0 %v2344
      %v2416 = vpop.f32.mrb[0].mxu0
      %v2417 = vadd.f32 0.0, %v2416
      %v2418 = vpop.f32.mrb[0].mxu0
      %2419 = vdwg.mxu0
      %v2420 = vsel %vm1438, %v2417, -inf
      %2421 = vmax.xlane.f32.xlu0 %v2420
      %v2422 = vpop.xlane.xlu0 %2421
      %v2423 = vsub.f32 %v2417, %v2422
      %v2424 = vmul.f32 %v2423, 1.442695
      %v2425 = vpow.pop %v2424
      %v2426 = vsel %vm1438, %v2425, 0.0
      %2427 = vadd.xlane.f32.xlu0 %v2426
      %v2428 = vpop.xlane.xlu0 %2427
      %v2429 = vrcp.pop %v2428
      %v2430 = vmul.f32 %v2425, %v2429
      %2431 = vrot.lane.b32.xlu0 %v1821, 104
      %v2432 = vpop.permute.xlu0 %2431
      %2433 = vrot.lane.b32.xlu0 %v1826, 104
      %v2434 = vpop.permute.xlu0 %2433
      %v2438 = vsel %vm1438, %v2430, 0
      %2440 = vmatprep.subr.mxu0 0.0
      %2441 = vmatpush1.msra.mxu0 %v2432
      %2442 = vmatprep.subr.mxu0 0.0
      %2443 = vmatpush1.msra.mxu0 %v2434
      %2444 = vmatprep.subr.mxu0 0.0
      %2445 = vmatpush1.msra.mxu0 0.0
      %2446 = vmatprep.subr.mxu0 0.0
      %2447 = vmatpush1.msra.mxu0 0.0
      %2448 = vmatprep.subr.mxu0 0.0
      %2449 = vmatpush1.msra.mxu0 0.0
      %2450 = vmatprep.subr.mxu0 0.0
      %2451 = vmatpush1.msra.mxu0 0.0
      %2452 = vmatprep.subr.mxu0 0.0
      %2453 = vmatpush1.msra.mxu0 0.0
      %2454 = vmatprep.subr.mxu0 0.0
      %2455 = vmatpush1.msra.mxu0 0.0
      %2456 = vmatprep.subr.mxu0 0.0
      %2457 = vmatpush1.msra.mxu0 0.0
      %2458 = vmatprep.subr.mxu0 0.0
      %2459 = vmatpush1.msra.mxu0 0.0
      %2460 = vmatprep.subr.mxu0 0.0
      %2461 = vmatpush1.msra.mxu0 0.0
      %2462 = vmatprep.subr.mxu0 0.0
      %2463 = vmatpush1.msra.mxu0 0.0
      %2464 = vmatprep.subr.mxu0 0.0
      %2465 = vmatpush1.msra.mxu0 0.0
      %2466 = vmatprep.subr.mxu0 0.0
      %2467 = vmatpush1.msra.mxu0 0.0
      %2468 = vmatprep.subr.mxu0 0.0
      %2469 = vmatpush1.msra.mxu0 0.0
      %2470 = vmatprep.subr.mxu0 0.0
      %2471 = vmatpush1.msra.mxu0 0.0
      %2472 = vmatprep.subr.mxu0 0.0
      %2473 = vmatpush1.msra.mxu0 0.0
      %2474 = vmatprep.subr.mxu0 0.0
      %2475 = vmatpush1.msra.mxu0 0.0
      %2476 = vmatprep.subr.mxu0 0.0
      %2477 = vmatpush1.msra.mxu0 0.0
      %2478 = vmatprep.subr.mxu0 0.0
      %2479 = vmatpush1.msra.mxu0 0.0
      %2480 = vmatprep.subr.mxu0 0.0
      %2481 = vmatpush1.msra.mxu0 0.0
      %2482 = vmatprep.subr.mxu0 0.0
      %2483 = vmatpush1.msra.mxu0 0.0
      %2484 = vmatprep.subr.mxu0 0.0
      %2485 = vmatpush1.msra.mxu0 0.0
      %2486 = vmatprep.subr.mxu0 0.0
      %2487 = vmatpush1.msra.mxu0 0.0
      %2488 = vmatprep.subr.mxu0 0.0
      %2489 = vmatpush1.msra.mxu0 0.0
      %2490 = vmatprep.subr.mxu0 0.0
      %2491 = vmatpush1.msra.mxu0 0.0
      %2492 = vmatprep.subr.mxu0 0.0
      %2493 = vmatpush1.msra.mxu0 0.0
      %2494 = vmatprep.subr.mxu0 0.0
      %2495 = vmatpush1.msra.mxu0 0.0
      %2496 = vmatprep.subr.mxu0 0.0
      %2497 = vmatpush1.msra.mxu0 0.0
      %2498 = vmatprep.subr.mxu0 0.0
      %2499 = vmatpush1.msra.mxu0 0.0
      %2500 = vmatprep.subr.mxu0 0.0
      %2501 = vmatpush1.msra.mxu0 0.0
      %2502 = vmatprep.subr.mxu0 0.0
      %2503 = vmatpush1.msra.mxu0 0.0
      %2504 = vmatprep.mubr.f32.mxu0 0.0
      %2505 = vmatmul.mubr.f32.gmra.mrb[0].mxu0 %v2438
      %v2506 = vpop.f32.mrb[0].mxu0
      %v2507 = vadd.f32 0.0, %v2506
      %v2508 = vpop.f32.mrb[0].mxu0
      %2509 = vdwg.mxu0
      %2511 = vrot.lane.b32.xlu0 %v2163, 8
      %v2512 = vpop.permute.xlu0 %2511
      %2515 = vrot.lane.b32.xlu0 %v2335, 16
      %v2516 = vpop.permute.xlu0 %2515
      %2519 = vrot.lane.b32.xlu0 %v2507, 24
      %v2520 = vpop.permute.xlu0 %2519
      %v2522 = vsel %vm768, %v1989, %v2512
      %v2523 = vsel %vm1438, %v2522, %v2516
      %v2524 = vsel %vm1440, %v2523, %v2520
      %v2525 = vlaneseq
      %v2526 = vshrl.u32 %v2525, 7
      %v2527 = vsub.s32 1, %v2526
      %v2528 = vrot.slane %v499, %v2527
      %v2530 = vsel %vm516, %v2524, 0
      %2532 = vmatprep.subr.mxu0 0.0
      %2533 = vmatpush1.msra.mxu0 %v1551
      %2534 = vmatprep.subr.mxu0 0.0
      %2535 = vmatpush1.msra.mxu0 %v1552
      %2536 = vmatprep.subr.mxu0 0.0
      %2537 = vmatpush1.msra.mxu0 %v1553
      %2538 = vmatprep.subr.mxu0 0.0
      %2539 = vmatpush1.msra.mxu0 %v1554
      %2540 = vmatprep.subr.mxu0 0.0
      %2541 = vmatpush1.msra.mxu0 0.0
      %2542 = vmatprep.subr.mxu0 0.0
      %2543 = vmatpush1.msra.mxu0 0.0
      %2544 = vmatprep.subr.mxu0 0.0
      %2545 = vmatpush1.msra.mxu0 0.0
      %2546 = vmatprep.subr.mxu0 0.0
      %2547 = vmatpush1.msra.mxu0 0.0
      %2548 = vmatprep.subr.mxu0 0.0
      %2549 = vmatpush1.msra.mxu0 0.0
      %2550 = vmatprep.subr.mxu0 0.0
      %2551 = vmatpush1.msra.mxu0 0.0
      %2552 = vmatprep.subr.mxu0 0.0
      %2553 = vmatpush1.msra.mxu0 0.0
      %2554 = vmatprep.subr.mxu0 0.0
      %2555 = vmatpush1.msra.mxu0 0.0
      %2556 = vmatprep.subr.mxu0 0.0
      %2557 = vmatpush1.msra.mxu0 0.0
      %2558 = vmatprep.subr.mxu0 0.0
      %2559 = vmatpush1.msra.mxu0 0.0
      %2560 = vmatprep.subr.mxu0 0.0
      %2561 = vmatpush1.msra.mxu0 0.0
      %2562 = vmatprep.subr.mxu0 0.0
      %2563 = vmatpush1.msra.mxu0 0.0
      %2564 = vmatprep.subr.mxu0 0.0
      %2565 = vmatpush1.msra.mxu0 0.0
      %2566 = vmatprep.subr.mxu0 0.0
      %2567 = vmatpush1.msra.mxu0 0.0
      %2568 = vmatprep.subr.mxu0 0.0
      %2569 = vmatpush1.msra.mxu0 0.0
      %2570 = vmatprep.subr.mxu0 0.0
      %2571 = vmatpush1.msra.mxu0 0.0
      %2572 = vmatprep.subr.mxu0 0.0
      %2573 = vmatpush1.msra.mxu0 0.0
      %2574 = vmatprep.subr.mxu0 0.0
      %2575 = vmatpush1.msra.mxu0 0.0
      %2576 = vmatprep.subr.mxu0 0.0
      %2577 = vmatpush1.msra.mxu0 0.0
      %2578 = vmatprep.subr.mxu0 0.0
      %2579 = vmatpush1.msra.mxu0 0.0
      %2580 = vmatprep.subr.mxu0 0.0
      %2581 = vmatpush1.msra.mxu0 0.0
      %2582 = vmatprep.subr.mxu0 0.0
      %2583 = vmatpush1.msra.mxu0 0.0
      %2584 = vmatprep.subr.mxu0 0.0
      %2585 = vmatpush1.msra.mxu0 0.0
      %2586 = vmatprep.subr.mxu0 0.0
      %2587 = vmatpush1.msra.mxu0 0.0
      %2588 = vmatprep.subr.mxu0 0.0
      %2589 = vmatpush1.msra.mxu0 0.0
      %2590 = vmatprep.subr.mxu0 0.0
      %2591 = vmatpush1.msra.mxu0 0.0
      %2592 = vmatprep.subr.mxu0 0.0
      %2593 = vmatpush1.msra.mxu0 0.0
      %2594 = vmatprep.subr.mxu0 0.0
      %2595 = vmatpush1.msra.mxu0 0.0
      %2596 = vmatprep.mubr.f32.mxu0 0.0
      %2597 = vmatmul.mubr.f32.gmra.mrb[0].mxu0 %v2530
      %v2598 = vpop.f32.mrb[0].mxu0
      %v2599 = vadd.f32 %v2528, %v2598
      %v2600 = vpop.f32.mrb[0].mxu0
      %2601 = vdwg.mxu0
      %v2602 = vadd.f32 %v1543, %v2599
      %v2603 = vsel %vm516, %v2602, 0.0
      %2604 = vadd.xlane.f32.xlu0 %v2603
      %v2605 = vpop.xlane.xlu0 %2604
      %v2606 = vmul.f32 %v2605, %v1523
      %v2607 = vsub.f32 %v2602, %v2606
      %v2608 = vmul.f32 %v2607, %v2607
      %v2609 = vsel %vm516, %v2608, 0.0
      %2610 = vadd.xlane.f32.xlu0 %v2609
      %v2611 = vpop.xlane.xlu0 %2610
      %v2612 = vmul.f32 %v2611, %v1523
      %v2613 = vadd.f32 %v2612, 1e-05
      %v2614 = vrsqrt.pop %v2613
      %v2615 = vmul.f32 %v2607, %v2614
      %v2616 = vlaneseq
      %v2617 = vshrl.u32 %v2616, 7
      %v2618 = vsub.s32 5, %v2617
      %v2619 = vrot.slane %v499, %v2618
      %v2620 = vmul.f32 %v2615, %v2619
      %v2621 = vlaneseq
      %v2622 = vshrl.u32 %v2621, 7
      %v2623 = vsub.s32 6, %v2622
      %v2624 = vrot.slane %v499, %v2623
      %v2625 = vadd.f32 %v2620, %v2624
      %v2626 = vld [vmem:[%s9] sm:$0xff]
      %v2627 = vld [vmem:[%s9 + $0x8] sm:$0xff]
      %v2628 = vld [vmem:[%s9 + $0x10] sm:$0xff]
      %v2629 = vld [vmem:[%s9 + $0x18] sm:$0xff]
      %v2630 = vld [vmem:[%s10] sm:$0x1]
      %v2632 = vlaneseq
      %v2633 = vshrl.u32 %v2632, 7
      %v2634 = vsub.s32 0, %v2633
      %v2635 = vrot.slane %v2630, %v2634
      %v2638 = vsel %vm516, %v2625, 0
      %2640 = vmatprep.subr.mxu0 0.0
      %2641 = vmatpush1.msra.mxu0 %v2626
      %2642 = vmatprep.subr.mxu0 0.0
      %2643 = vmatpush1.msra.mxu0 %v2627
      %2644 = vmatprep.subr.mxu0 0.0
      %2645 = vmatpush1.msra.mxu0 %v2628
      %2646 = vmatprep.subr.mxu0 0.0
      %2647 = vmatpush1.msra.mxu0 %v2629
      %2648 = vmatprep.subr.mxu0 0.0
      %2649 = vmatpush1.msra.mxu0 0.0
      %2650 = vmatprep.subr.mxu0 0.0
      %2651 = vmatpush1.msra.mxu0 0.0
      %2652 = vmatprep.subr.mxu0 0.0
      %2653 = vmatpush1.msra.mxu0 0.0
      %2654 = vmatprep.subr.mxu0 0.0
      %2655 = vmatpush1.msra.mxu0 0.0
      %2656 = vmatprep.subr.mxu0 0.0
      %2657 = vmatpush1.msra.mxu0 0.0
      %2658 = vmatprep.subr.mxu0 0.0
      %2659 = vmatpush1.msra.mxu0 0.0
      %2660 = vmatprep.subr.mxu0 0.0
      %2661 = vmatpush1.msra.mxu0 0.0
      %2662 = vmatprep.subr.mxu0 0.0
      %2663 = vmatpush1.msra.mxu0 0.0
      %2664 = vmatprep.subr.mxu0 0.0
      %2665 = vmatpush1.msra.mxu0 0.0
      %2666 = vmatprep.subr.mxu0 0.0
      %2667 = vmatpush1.msra.mxu0 0.0
      %2668 = vmatprep.subr.mxu0 0.0
      %2669 = vmatpush1.msra.mxu0 0.0
      %2670 = vmatprep.subr.mxu0 0.0
      %2671 = vmatpush1.msra.mxu0 0.0
      %2672 = vmatprep.subr.mxu0 0.0
      %2673 = vmatpush1.msra.mxu0 0.0
      %2674 = vmatprep.subr.mxu0 0.0
      %2675 = vmatpush1.msra.mxu0 0.0
      %2676 = vmatprep.subr.mxu0 0.0
      %2677 = vmatpush1.msra.mxu0 0.0
      %2678 = vmatprep.subr.mxu0 0.0
      %2679 = vmatpush1.msra.mxu0 0.0
      %2680 = vmatprep.subr.mxu0 0.0
      %2681 = vmatpush1.msra.mxu0 0.0
      %2682 = vmatprep.subr.mxu0 0.0
      %2683 = vmatpush1.msra.mxu0 0.0
      %2684 = vmatprep.subr.mxu0 0.0
      %2685 = vmatpush1.msra.mxu0 0.0
      %2686 = vmatprep.subr.mxu0 0.0
      %2687 = vmatpush1.msra.mxu0 0.0
      %2688 = vmatprep.subr.mxu0 0.0
      %2689 = vmatpush1.msra.mxu0 0.0
      %2690 = vmatprep.subr.mxu0 0.0
      %2691 = vmatpush1.msra.mxu0 0.0
      %2692 = vmatprep.subr.mxu0 0.0
      %2693 = vmatpush1.msra.mxu0 0.0
      %2694 = vmatprep.subr.mxu0 0.0
      %2695 = vmatpush1.msra.mxu0 0.0
      %2696 = vmatprep.subr.mxu0 0.0
      %2697 = vmatpush1.msra.mxu0 0.0
      %2698 = vmatprep.subr.mxu0 0.0
      %2699 = vmatpush1.msra.mxu0 0.0
      %2700 = vmatprep.subr.mxu0 0.0
      %2701 = vmatpush1.msra.mxu0 0.0
      %2702 = vmatprep.subr.mxu0 0.0
      %2703 = vmatpush1.msra.mxu0 0.0
      %2704 = vmatprep.mubr.f32.mxu0 0.0
      %2705 = vmatmul.mubr.f32.gmra.mrb[0].mxu0 %v2638
      %v2706 = vpop.f32.mrb[0].mxu0
      %v2707 = vadd.f32 %v2635, %v2706
      %v2708 = vpop.f32.mrb[0].mxu0
      %2709 = vdwg.mxu0
      %v2710 = vmax.f32 %v2707, 0.0
      %v2711 = vld [vmem:[%s11] sm:$0xff]
      %v2712 = vld [vmem:[%s11 + $0x8] sm:$0xff]
      %v2713 = vld [vmem:[%s11 + $0x10] sm:$0xff]
      %v2714 = vld [vmem:[%s11 + $0x18] sm:$0xff]
      %v2715 = vld [vmem:[%s11 + $0x20] sm:$0xff]
      %v2716 = vld [vmem:[%s11 + $0x28] sm:$0xff]
      %v2717 = vld [vmem:[%s11 + $0x30] sm:$0xff]
      %v2718 = vld [vmem:[%s11 + $0x38] sm:$0xff]
      %v2719 = vlaneseq
      %v2720 = vshrl.u32 %v2719, 7
      %v2721 = vsub.s32 2, %v2720
      %v2722 = vrot.slane %v499, %v2721
      %vm2723 = vcmask 523264
      %v2725 = vsel %vm2723, %v2710, 0
      %2727 = vmatprep.subr.mxu0 0.0
      %2728 = vmatpush1.msra.mxu0 %v2711
      %2729 = vmatprep.subr.mxu0 0.0
      %2730 = vmatpush1.msra.mxu0 %v2712
      %2731 = vmatprep.subr.mxu0 0.0
      %2732 = vmatpush1.msra.mxu0 %v2713
      %2733 = vmatprep.subr.mxu0 0.0
      %2734 = vmatpush1.msra.mxu0 %v2714
      %2735 = vmatprep.subr.mxu0 0.0
      %2736 = vmatpush1.msra.mxu0 %v2715
      %2737 = vmatprep.subr.mxu0 0.0
      %2738 = vmatpush1.msra.mxu0 %v2716
      %2739 = vmatprep.subr.mxu0 0.0
      %2740 = vmatpush1.msra.mxu0 %v2717
      %2741 = vmatprep.subr.mxu0 0.0
      %2742 = vmatpush1.msra.mxu0 %v2718
      %2743 = vmatprep.subr.mxu0 0.0
      %2744 = vmatpush1.msra.mxu0 0.0
      %2745 = vmatprep.subr.mxu0 0.0
      %2746 = vmatpush1.msra.mxu0 0.0
      %2747 = vmatprep.subr.mxu0 0.0
      %2748 = vmatpush1.msra.mxu0 0.0
      %2749 = vmatprep.subr.mxu0 0.0
      %2750 = vmatpush1.msra.mxu0 0.0
      %2751 = vmatprep.subr.mxu0 0.0
      %2752 = vmatpush1.msra.mxu0 0.0
      %2753 = vmatprep.subr.mxu0 0.0
      %2754 = vmatpush1.msra.mxu0 0.0
      %2755 = vmatprep.subr.mxu0 0.0
      %2756 = vmatpush1.msra.mxu0 0.0
      %2757 = vmatprep.subr.mxu0 0.0
      %2758 = vmatpush1.msra.mxu0 0.0
      %2759 = vmatprep.subr.mxu0 0.0
      %2760 = vmatpush1.msra.mxu0 0.0
      %2761 = vmatprep.subr.mxu0 0.0
      %2762 = vmatpush1.msra.mxu0 0.0
      %2763 = vmatprep.subr.mxu0 0.0
      %2764 = vmatpush1.msra.mxu0 0.0
      %2765 = vmatprep.subr.mxu0 0.0
      %2766 = vmatpush1.msra.mxu0 0.0
      %2767 = vmatprep.subr.mxu0 0.0
      %2768 = vmatpush1.msra.mxu0 0.0
      %2769 = vmatprep.subr.mxu0 0.0
      %2770 = vmatpush1.msra.mxu0 0.0
      %2771 = vmatprep.subr.mxu0 0.0
      %2772 = vmatpush1.msra.mxu0 0.0
      %2773 = vmatprep.subr.mxu0 0.0
      %2774 = vmatpush1.msra.mxu0 0.0
      %2775 = vmatprep.subr.mxu0 0.0
      %2776 = vmatpush1.msra.mxu0 0.0
      %2777 = vmatprep.subr.mxu0 0.0
      %2778 = vmatpush1.msra.mxu0 0.0
      %2779 = vmatprep.subr.mxu0 0.0
      %2780 = vmatpush1.msra.mxu0 0.0
      %2781 = vmatprep.subr.mxu0 0.0
      %2782 = vmatpush1.msra.mxu0 0.0
      %2783 = vmatprep.subr.mxu0 0.0
      %2784 = vmatpush1.msra.mxu0 0.0
      %2785 = vmatprep.subr.mxu0 0.0
      %2786 = vmatpush1.msra.mxu0 0.0
      %2787 = vmatprep.subr.mxu0 0.0
      %2788 = vmatpush1.msra.mxu0 0.0
      %2789 = vmatprep.subr.mxu0 0.0
      %2790 = vmatpush1.msra.mxu0 0.0
      %2791 = vmatprep.mubr.f32.mxu0 0.0
      %2792 = vmatmul.mubr.f32.gmra.mrb[0].mxu0 %v2725
      %v2793 = vpop.f32.mrb[0].mxu0
      %v2794 = vadd.f32 %v2722, %v2793
      %v2795 = vpop.f32.mrb[0].mxu0
      %2796 = vdwg.mxu0
      %v2797 = vadd.f32 %v2625, %v2794
      %v2798 = vsel %vm516, %v2797, 0.0
      %2799 = vadd.xlane.f32.xlu0 %v2798
      %v2800 = vpop.xlane.xlu0 %2799
      %v2801 = vmul.f32 %v2800, %v1523
      %v2802 = vsub.f32 %v2797, %v2801
      %v2803 = vmul.f32 %v2802, %v2802
      %v2804 = vsel %vm516, %v2803, 0.0
      %2805 = vadd.xlane.f32.xlu0 %v2804
      %v2806 = vpop.xlane.xlu0 %2805
      %v2807 = vmul.f32 %v2806, %v1523
      %v2808 = vadd.f32 %v2807, 1e-05
      %v2809 = vrsqrt.pop %v2808
      %v2810 = vmul.f32 %v2802, %v2809
      %v2811 = vlaneseq
      %v2812 = vshrl.u32 %v2811, 7
      %v2813 = vsub.s32 7, %v2812
      %v2814 = vrot.slane %v499, %v2813
      %v2815 = vmul.f32 %v2810, %v2814
      %v2816 = vlaneseq
      %v2817 = vshrl.u32 %v2816, 7
      %v2818 = vsub.s32 0, %v2817
      %v2819 = vrot.slane %v500, %v2818
      %v2820 = vadd.f32 %v2815, %v2819
      %2821 = vst.msk [vmem:[%s492] sm:$0xff] %vm516, %v2820
      %p2822 = scmp.lt.s32.totalorder %s24, 1
      %s2823 = scalar_select %p2822, %s24, 1
      %s2824 = smul.addr %s2823, 8
      %s2825 = scalar_lea.vmem %s13, %s2824
      // Predicated region
      $region73: #{transformer_decoder_layer.1} parent=71 // pred_check
        %p2826 = pneg %p335
      $region74: #{transformer_decoder_layer.1} parent=71 // pred_check_branch
        %2828 = sbr.rel (%p2826) target = $region76
      $region75: #{transformer_decoder_layer.1} parent=71 // pred_region
        _
      $region76: #{transformer_decoder_layer.1} parent=71 // pred_fallthru
        _
    $region72: #{transformer_decoder_layer.1} parent=5 // pred_fallthru
      _
    %p2829 = scmp.le.s32.totalorder 2, %s19
    // Predicated region
    $region77: #{transformer_decoder_layer.1} parent=5 // pred_check
      %p2830 = pneg %p2829
    $region78: #{transformer_decoder_layer.1} parent=5 // pred_check_branch
      %2832 = sbr.rel (%p2830) target = $region80
    $region79: #{transformer_decoder_layer.1} parent=5 // pred_region
      %s2833 = ssub.s32 %s19, 2
      // Predicated region
      $region81: #{transformer_decoder_layer.1} parent=79 // pred_check
        %p2834 = pneg %p341
      $region82: #{transformer_decoder_layer.1} parent=79 // pred_check_branch
        %2836 = sbr.rel (%p2834) target = $region84
      $region83: #{transformer_decoder_layer.1} parent=79 // pred_region
        %p2837 = scmp.lt.s32.totalorder %s25, 1
        %s2838 = scalar_select %p2837, %s25, 1
        %s2839 = smul.addr %s2838, 8
        %s2840 = scalar_lea.vmem %s13, %s2839
      $region84: #{transformer_decoder_layer.1} parent=79 // pred_fallthru
        _
    $region80: #{transformer_decoder_layer.1} parent=5 // pred_fallthru
      _
  $region6: #{transformer_decoder_layer.1} parent=0 // loop_footer
    %s23 = sadd.s32 1, %s19
  $region7: #{transformer_decoder_layer.1} parent=0 // loop_footer_branch
    %18 = sbr.rel target = $region3
  $region8: #{transformer_decoder_layer.1} parent=0 // loop_exit
    _

</llo_original>
